<compile_context>
chip_gen: v7x
topology: tpu7x:2x2x1
jax: 0.10.0
libtpu: 0.0.40
codegen_flags: <defaults>
</compile_context>

<pallas_src>
import functools

import jax
import jax.numpy as jnp
from jax.experimental import pallas as pl
from jax.experimental.pallas import tpu as pltpu

_BN_EPS = 1e-5


def _round_up(x, m):
    return ((x + m - 1) // m) * m


def _softplus(x):
    # Matches torch.nn.Softplus(beta=1, threshold=20)
    return jnp.where(x > 20.0, x, jnp.log1p(jnp.exp(jnp.minimum(x, 20.0))))


def _conv_layer_kernel(
        atom_ref, gath_ref, bond_ref, expand_ref, summat_ref,
        ws_ref, wn_ref, wb_ref, b_ref, g1_ref, be1_ref, g2_ref, be2_ref,
        out_ref,
        z_cache, nbr_sum_ref, s1_ref, q1_ref, s2_ref, q2_ref,
        *, N, M, A, TA, AP):
    phase = pl.program_id(0)          # 0: fc+sum, 1: centred sq-sum, 2: gate+sum, 3: finalize
    tile = pl.program_id(1)           # atom tile
    R = TA * M                        # (atom, neighbour) rows handled per tile
    r0 = pl.multiple_of(tile * R, 8)  # first flattened row of this tile
    a0 = pl.multiple_of(tile * TA, 8) # first atom of this tile
    inv_nm = 1.0 / float(N * M)
    inv_n = 1.0 / float(N)

    @pl.when(jnp.logical_and(phase == 0, tile == 0))
    def _init():
        s1_ref[...] = jnp.zeros_like(s1_ref)
        q1_ref[...] = jnp.zeros_like(q1_ref)
        s2_ref[...] = jnp.zeros_like(s2_ref)
        q2_ref[...] = jnp.zeros_like(q2_ref)

    def row_mask():
        # rows belonging to real (non-padded) atoms
        return (jax.lax.broadcasted_iota(jnp.int32, (R, 1), 0) + r0) < (N * M)

    # ---------------- phase 0: fc_full (computed ONCE), cache z, bn1 sum ----------
    @pl.when(phase == 0)
    def _p0():
        cdt = ws_ref.dtype
        self_proj = jnp.dot(atom_ref[...].astype(cdt), ws_ref[...],
                            preferred_element_type=jnp.float32)           # (TA, 2AP)
        # broadcast each atom's self projection over its M neighbour slots (MXU)
        self_rep = jnp.dot(expand_ref[...], self_proj,
                           preferred_element_type=jnp.float32)            # (R, 2AP)
        nbr_proj = jnp.dot(gath_ref[...], wn_ref[...],
                           preferred_element_type=jnp.float32)            # (R, 2AP)
        bond_proj = jnp.dot(bond_ref[...], wb_ref[...],
                            preferred_element_type=jnp.float32)           # (R, 2AP)
        z = self_rep + nbr_proj + bond_proj + b_ref[...]
        z_cache[pl.ds(r0, R), :] = z
        zm = jnp.where(row_mask(), z, 0.0)
        s1_ref[...] += jnp.sum(zm, axis=0, keepdims=True)

    # ---------------- phase 1: centred bn1 sum of squares (two-pass variance) -----
    @pl.when(phase == 1)
    def _p1():
        mean1 = s1_ref[...] * inv_nm
        d = jnp.where(row_mask(), z_cache[pl.ds(r0, R), :] - mean1, 0.0)
        q1_ref[...] += jnp.sum(d * d, axis=0, keepdims=True)

    # ---------------- phase 2: bn1 + gate + neighbour sum + bn2 statistics --------
    @pl.when(phase == 2)
    def _p2():
        mean1 = s1_ref[...] * inv_nm
        rstd1 = jax.lax.rsqrt(q1_ref[...] * inv_nm + _BN_EPS)
        zn = (z_cache[pl.ds(r0, R), :] - mean1) * rstd1 * g1_ref[...] + be1_ref[...]
        gated = jax.nn.sigmoid(zn[:, :AP]) * _softplus(zn[:, AP:])        # (R, AP)
        # sum over the M neighbour slots of each atom via the block-sum matrix (MXU)
        nbr_sumed = jnp.dot(summat_ref[...], gated,
                            preferred_element_type=jnp.float32)           # (TA, AP)
        # zero padded lanes so bn2 statistics on them are exactly zero
        lane_ok = jax.lax.broadcasted_iota(jnp.int32, (TA, AP), 1) < A
        nbr_sumed = jnp.where(lane_ok, nbr_sumed, 0.0)
        nbr_sum_ref[pl.ds(a0, TA), :] = nbr_sumed
        amask = (jax.lax.broadcasted_iota(jnp.int32, (TA, 1), 0) + a0) < N
        nm = jnp.where(amask, nbr_sumed, 0.0)
        s2_ref[...] += jnp.sum(nm, axis=0, keepdims=True)
        # TODO(synk): bn2 variance stays single-pass (E[x^2]-E[x]^2); values are bounded
        # post-gating so cancellation is mild (clamped at 0 in phase 3).
        q2_ref[...] += jnp.sum(nm * nm, axis=0, keepdims=True)

    # ---------------- phase 3: per-tile bn2 + residual + softplus (tiled store) ---
    @pl.when(phase == 3)
    def _p3():
        mean2 = s2_ref[...] * inv_n
        var2 = jnp.maximum(q2_ref[...] * inv_n - mean2 * mean2, 0.0)
        rstd2 = jax.lax.rsqrt(var2 + _BN_EPS)
        ns = ((nbr_sum_ref[pl.ds(a0, TA), :] - mean2) * rstd2
              * g2_ref[...] + be2_ref[...])
        out_ref[...] = _softplus(atom_ref[...] + ns)


def conv_layer_forward(atom_in_fea, nbr_fea, nbr_fea_idx, params, *,
                       tile_atoms=128, compute_dtype=jnp.bfloat16):
    """ConvLayer forward via one Pallas kernel (training-mode BatchNorm)."""
    N, M = nbr_fea_idx.shape
    A = atom_in_fea.shape[1]
    B = nbr_fea.shape[2]
    f32 = jnp.float32
    cdt = jnp.dtype(compute_dtype)

    AP = _round_up(A, 128)                       # lane-padded atom feature width
    # Tile size: TA multiple of 8, and TA*M a multiple of the sublane packing (16)
    # for sub-32-bit streamed blocks.  (On v6e/v7x sweep tile_atoms so TA*M hits
    # 256-multiples for the 256-wide MXU.)
    TA = _round_up(min(tile_atoms, N), 8)
    if cdt.itemsize < 4 and (TA * M) % 16 != 0:
        TA = _round_up(TA, 16)
    NP = _round_up(N, TA)                        # padded atom count
    T = NP // TA
    R = TA * M

    # --- lane-padded parameters: filter half at cols [:A], core half at [AP:AP+A]
    wt = params["fc_w"].astype(f32).T            # (2A+B, 2A)

    def pad_cols(m):                             # (rows, 2A) -> (rows, 2*AP)
        out = jnp.zeros((m.shape[0], 2 * AP), f32)
        return out.at[:, :A].set(m[:, :A]).at[:, AP:AP + A].set(m[:, A:])

    ws = jnp.zeros((AP, 2 * AP), f32).at[:A].set(pad_cols(wt[:A])).astype(cdt)
    wn = jnp.zeros((AP, 2 * AP), f32).at[:A].set(pad_cols(wt[A:2 * A])).astype(cdt)
    wb = pad_cols(wt[2 * A:]).astype(cdt)        # (B, 2AP)
    bias = pad_cols(params["fc_b"].astype(f32)[None, :])
    g1 = pad_cols(params["bn1_g"].astype(f32)[None, :])
    be1 = pad_cols(params["bn1_b"].astype(f32)[None, :])
    g2 = jnp.zeros((1, AP), f32).at[0, :A].set(params["bn2_g"].astype(f32))
    be2 = jnp.zeros((1, AP), f32).at[0, :A].set(params["bn2_b"].astype(f32))

    # --- activations: atom tiles stay f32 (residual precision); neighbour rows are
    # pre-gathered ONCE in XLA (no quadratic one-hot matmul) and streamed, like the
    # bond features, in the MXU compute dtype.
    atom_pad = jnp.zeros((NP, AP), f32).at[:N, :A].set(atom_in_fea.astype(f32))
    gathered = atom_in_fea.astype(f32)[nbr_fea_idx.reshape(-1).astype(jnp.int32)]
    gath_pad = jnp.zeros((NP * M, AP), cdt).at[:N * M, :A].set(gathered.astype(cdt))
    bond_pad = jnp.zeros((NP * M, B), cdt).at[:N * M].set(
        nbr_fea.reshape(N * M, B).astype(cdt))

    # --- tile-invariant expansion (R, TA) and block-sum (TA, R) constants
    row_atom = jnp.arange(R, dtype=jnp.int32)[:, None] // M
    expand = (row_atom == jnp.arange(TA, dtype=jnp.int32)[None, :]).astype(f32)
    summat = expand.T

    # Streamed-block index maps: fetch tiles only in the phases that use them.
    def idx_p0(p, t):            # gathered-nbr / bond rows: phase 0 only
        return (jnp.where(p == 0, t, 0), 0)

    def idx_p03(p, t):           # atom tile: phase 0 (self proj) and phase 3 (residual)
        return (jnp.where(jnp.logical_or(p == 0, p == 3), t, 0), 0)

    def idx_out(p, t):           # output tile is written (and copied out) only in phase 3
        return (jnp.where(p == 3, t, 0), 0)

    kernel = functools.partial(_conv_layer_kernel, N=N, M=M, A=A, TA=TA, AP=AP)

    # Explicit scoped-VMEM limit sized to the real footprint (with margin); never
    # request less than the 32 MiB default.
    isz = cdt.itemsize
    vmem_bytes = (
        2 * (2 * AP * 2 * AP * isz + B * 2 * AP * isz          # ws, wn, wb
             + 5 * 2 * AP * 4 + 2 * R * max(TA, 128) * 4)      # bn params, expand, summat
        + 2 * (TA * AP * 4 + R * AP * isz + R * max(B, 128) * isz)  # streamed (dbl-buf)
        + 2 * TA * AP * 4                                       # output (dbl-buf)
        + NP * M * 2 * AP * 4 + NP * AP * 4 + 4 * 2 * AP * 4)   # scratch (z cache etc.)
    vmem_limit = int(min(max(2 * vmem_bytes + (4 << 20), 32 << 20), 128 << 20))

    def run(single_buffer_resident):
        if single_buffer_resident:
            resident = lambda shape: pl.BlockSpec(shape, lambda p, t: (0, 0),
                                                  pipeline_mode=pl.Buffered(1))
        else:
            resident = lambda shape: pl.BlockSpec(shape, lambda p, t: (0, 0))
        return pl.pallas_call(
            kernel,
            out_shape=jax.ShapeDtypeStruct((NP, AP), f32),
            grid=(4, T),
            in_specs=[
                pl.BlockSpec((TA, AP), idx_p03),      # atom tile (f32)
                pl.BlockSpec((R, AP), idx_p0),        # pre-gathered neighbour rows (cdt)
                pl.BlockSpec((R, B), idx_p0),         # bond feature rows (cdt)
                resident((R, TA)),                    # expansion matrix
                resident((TA, R)),                    # block-sum matrix
                resident((AP, 2 * AP)),               # W_self^T (padded)
                resident((AP, 2 * AP)),               # W_nbr^T  (padded)
                resident((B, 2 * AP)),                # W_bond^T (padded)
                resident((1, 2 * AP)),                # bias
                resident((1, 2 * AP)),                # bn1 gamma
                resident((1, 2 * AP)),                # bn1 beta
                resident((1, AP)),                    # bn2 gamma
                resident((1, AP)),                    # bn2 beta
            ],
            out_specs=pl.BlockSpec((TA, AP), idx_out),
            scratch_shapes=[
                # TODO(synk): for very large graphs, round-trip the z cache through HBM
                # (second output written in phase 0, streamed back) instead of VMEM.
                pltpu.VMEM((NP * M, 2 * AP), f32),    # cached fc_full output z
                pltpu.VMEM((NP, AP), f32),            # per-atom gated neighbour sums
                pltpu.VMEM((1, 2 * AP), f32),         # bn1 sum
                pltpu.VMEM((1, 2 * AP), f32),         # bn1 centred sum of squares
                pltpu.VMEM((1, AP), f32),             # bn2 sum
                pltpu.VMEM((1, AP), f32),             # bn2 sum of squares
            ],
            compiler_params=pltpu.CompilerParams(
                dimension_semantics=("arbitrary", "arbitrary"),
                vmem_limit_bytes=vmem_limit),
        )(atom_pad, gath_pad, bond_pad, expand, summat, ws, wn, wb,
          bias, g1, be1, g2, be2)

    try:
        out = run(single_buffer_resident=True)
    except Exception:
        # Fallback if this JAX/Mosaic build rejects single-buffered (Buffered(1)) specs.
        out = run(single_buffer_resident=False)
    return out[:N, :A]


# ----------------------------- pure-JAX reference ---------------------------
def _batchnorm_train(x, gamma, beta, eps=_BN_EPS):
    mean = jnp.mean(x, axis=0, keepdims=True)
    var = jnp.mean((x - mean) ** 2, axis=0, keepdims=True)
    return (x - mean) * jax.lax.rsqrt(var + eps) * gamma + beta


def conv_layer_reference(atom_in_fea, nbr_fea, nbr_fea_idx, params):
    N, M = nbr_fea_idx.shape
    A = atom_in_fea.shape[1]
    atom_nbr_fea = atom_in_fea[nbr_fea_idx, :]
    total = jnp.concatenate(
        [jnp.broadcast_to(atom_in_fea[:, None, :], (N, M, A)), atom_nbr_fea, nbr_fea],
        axis=2)
    z = total.reshape(N * M, -1) @ params["fc_w"].T + params["fc_b"]
    z = _batchnorm_train(z, params["bn1_g"], params["bn1_b"])
    filt = jax.nn.sigmoid(z[:, :A])
    core = _softplus(z[:, A:])
    s = jnp.sum((filt * core).reshape(N, M, A), axis=1)
    s = _batchnorm_train(s, params["bn2_g"], params["bn2_b"])
    return _softplus(atom_in_fea + s)


if __name__ == "__main__":
    # Small graph: 20 atoms, 8 neighbours each, 32 atom feats, 16 bond feats.
    # (N=20 with tile_atoms=8 exercises multi-tile pipelining + padded-row masking.)
    N, M, A, B = 20, 8, 32, 16

    key = jax.random.PRNGKey(0)
    k1, k2, k3, k4, k5, k6, k7 = jax.random.split(key, 7)

    atom_in_fea = jax.random.normal(k1, (N, A), dtype=jnp.float32)
    nbr_fea = jax.random.normal(k2, (N, M, B), dtype=jnp.float32)
    nbr_fea_idx = jax.random.randint(k3, (N, M), 0, N, dtype=jnp.int32)

    fan_in = 2 * A + B
    params = {
        "fc_w": jax.random.normal(k4, (2 * A, fan_in), dtype=jnp.float32)
                / jnp.sqrt(fan_in),
        "fc_b": jax.random.normal(k5, (2 * A,), dtype=jnp.float32) * 0.01,
        "bn1_g": 1.0 + 0.1 * jax.random.normal(k6, (2 * A,), dtype=jnp.float32),
        "bn1_b": 0.1 * jax.random.normal(k7, (2 * A,), dtype=jnp.float32),
        "bn2_g": jnp.ones((A,), dtype=jnp.float32),
        "bn2_b": jnp.zeros((A,), dtype=jnp.float32),
    }

    ref = conv_layer_reference(atom_in_fea, nbr_fea, nbr_fea_idx, params)

    # f32 MXU operands: checks the phased structure (cached z, two-pass bn1 stats,
    # tiled finalize, padded-row/lane masking) without bf16 rounding.
    out_f32 = jax.block_until_ready(
        conv_layer_forward(atom_in_fea, nbr_fea, nbr_fea_idx, params,
                           tile_atoms=8, compute_dtype=jnp.float32))
    assert out_f32.shape == (N, A)
    assert jnp.allclose(out_f32, ref, atol=2e-2, rtol=2e-2), "f32 kernel mismatch"

    # bf16 MXU operands (default fast path): looser tolerance for bf16 rounding.
    out_bf16 = jax.block_until_ready(
        conv_layer_forward(atom_in_fea, nbr_fea, nbr_fea_idx, params,
                           tile_atoms=8, compute_dtype=jnp.bfloat16))
    assert out_bf16.shape == (N, A)
    assert jnp.allclose(out_bf16, ref, atol=6e-2, rtol=6e-2), "bf16 kernel mismatch"

    print("KERNEL_OK")
</pallas_src>

<mosaic_0001>
module attributes {stable_mosaic.version = 11 : i64} {
  func.func @_conv_layer_kernel(%arg0: i32, %arg1: i32, %arg2: memref<8x128xf32, #tpu.memory_space<vmem>>, %arg3: memref<64x128xf32, #tpu.memory_space<vmem>>, %arg4: memref<64x16xf32, #tpu.memory_space<vmem>>, %arg5: memref<64x8xf32, #tpu.memory_space<vmem>>, %arg6: memref<8x64xf32, #tpu.memory_space<vmem>>, %arg7: memref<128x256xf32, #tpu.memory_space<vmem>>, %arg8: memref<128x256xf32, #tpu.memory_space<vmem>>, %arg9: memref<16x256xf32, #tpu.memory_space<vmem>>, %arg10: memref<1x256xf32, #tpu.memory_space<vmem>>, %arg11: memref<1x256xf32, #tpu.memory_space<vmem>>, %arg12: memref<1x256xf32, #tpu.memory_space<vmem>>, %arg13: memref<1x128xf32, #tpu.memory_space<vmem>>, %arg14: memref<1x128xf32, #tpu.memory_space<vmem>>, %arg15: memref<8x128xf32, #tpu.memory_space<vmem>>, %arg16: memref<192x256xf32, #tpu.memory_space<vmem>>, %arg17: memref<24x128xf32, #tpu.memory_space<vmem>>, %arg18: memref<1x256xf32, #tpu.memory_space<vmem>>, %arg19: memref<1x256xf32, #tpu.memory_space<vmem>>, %arg20: memref<1x128xf32, #tpu.memory_space<vmem>>, %arg21: memref<1x128xf32, #tpu.memory_space<vmem>>) attributes {dimension_semantics = [#tpu.dimension_semantics<arbitrary>, #tpu.dimension_semantics<arbitrary>], iteration_bounds = array<i64: 4, 3>, scalar_prefetch = 0 : i64, scratch_operands = 6 : i64, tpu.core_type = #tpu.core_type<tc>, window_params = [{transform_indices = @transform_0, window_bounds = array<i64: 8, 128>}, {transform_indices = @transform_1, window_bounds = array<i64: 64, 128>}, {transform_indices = @transform_2, window_bounds = array<i64: 64, 16>}, {pipeline_mode = #tpu.pipeline_mode<synchronous>, transform_indices = @transform_3, window_bounds = array<i64: 64, 8>}, {pipeline_mode = #tpu.pipeline_mode<synchronous>, transform_indices = @transform_4, window_bounds = array<i64: 8, 64>}, {pipeline_mode = #tpu.pipeline_mode<synchronous>, transform_indices = @transform_5, window_bounds = array<i64: 128, 256>}, {pipeline_mode = #tpu.pipeline_mode<synchronous>, transform_indices = @transform_6, window_bounds = array<i64: 128, 256>}, {pipeline_mode = #tpu.pipeline_mode<synchronous>, transform_indices = @transform_7, window_bounds = array<i64: 16, 256>}, {pipeline_mode = #tpu.pipeline_mode<synchronous>, transform_indices = @transform_8, window_bounds = array<i64: 1, 256>}, {pipeline_mode = #tpu.pipeline_mode<synchronous>, transform_indices = @transform_9, window_bounds = array<i64: 1, 256>}, {pipeline_mode = #tpu.pipeline_mode<synchronous>, transform_indices = @transform_10, window_bounds = array<i64: 1, 256>}, {pipeline_mode = #tpu.pipeline_mode<synchronous>, transform_indices = @transform_11, window_bounds = array<i64: 1, 128>}, {pipeline_mode = #tpu.pipeline_mode<synchronous>, transform_indices = @transform_12, window_bounds = array<i64: 1, 128>}, {transform_indices = @transform_13, window_bounds = array<i64: 8, 128>}]} {
    %c64_i32 = arith.constant 64 : i32
    %0 = arith.muli %arg1, %c64_i32 : i32
    %1 = tpu.assume_multiple %0, 8 : i32
    %c8_i32 = arith.constant 8 : i32
    %2 = arith.muli %arg1, %c8_i32 : i32
    %3 = tpu.assume_multiple %2, 8 : i32
    %c0_i32 = arith.constant 0 : i32
    %4 = arith.cmpi eq, %arg0, %c0_i32 : i32
    %c0_i32_0 = arith.constant 0 : i32
    %5 = arith.cmpi eq, %arg1, %c0_i32_0 : i32
    %6 = arith.andi %4, %5 : i1
    %7 = arith.extui %6 : i1 to i32
    %c0_i32_1 = arith.constant 0 : i32
    %8 = arith.cmpi ne, %7, %c0_i32_1 : i32
    scf.if %8 {
      %cst = arith.constant 0.000000e+00 : f32
      %21 = vector.broadcast %cst : f32 to vector<1x256xf32>
      %c0 = arith.constant 0 : index
      %c0_7 = arith.constant 0 : index
      %22 = vector.load %arg18[%c0, %c0_7] : memref<1x256xf32, #tpu.memory_space<vmem>>, vector<1x256xf32>
      tpu.vector_store %arg18[%c0, %c0_7], %21 {strides = array<i32>} : memref<1x256xf32, #tpu.memory_space<vmem>>, vector<1x256xf32>,
      %cst_8 = arith.constant 0.000000e+00 : f32
      %23 = vector.broadcast %cst_8 : f32 to vector<1x256xf32>
      %c0_9 = arith.constant 0 : index
      %c0_10 = arith.constant 0 : index
      %24 = vector.load %arg19[%c0_9, %c0_10] : memref<1x256xf32, #tpu.memory_space<vmem>>, vector<1x256xf32>
      tpu.vector_store %arg19[%c0_9, %c0_10], %23 {strides = array<i32>} : memref<1x256xf32, #tpu.memory_space<vmem>>, vector<1x256xf32>,
      %cst_11 = arith.constant 0.000000e+00 : f32
      %25 = vector.broadcast %cst_11 : f32 to vector<1x128xf32>
      %c0_12 = arith.constant 0 : index
      %c0_13 = arith.constant 0 : index
      %26 = vector.load %arg20[%c0_12, %c0_13] : memref<1x128xf32, #tpu.memory_space<vmem>>, vector<1x128xf32>
      tpu.vector_store %arg20[%c0_12, %c0_13], %25 {strides = array<i32>} : memref<1x128xf32, #tpu.memory_space<vmem>>, vector<1x128xf32>,
      %cst_14 = arith.constant 0.000000e+00 : f32
      %27 = vector.broadcast %cst_14 : f32 to vector<1x128xf32>
      %c0_15 = arith.constant 0 : index
      %c0_16 = arith.constant 0 : index
      %28 = vector.load %arg21[%c0_15, %c0_16] : memref<1x128xf32, #tpu.memory_space<vmem>>, vector<1x128xf32>
      tpu.vector_store %arg21[%c0_15, %c0_16], %27 {strides = array<i32>} : memref<1x128xf32, #tpu.memory_space<vmem>>, vector<1x128xf32>,
    } else {
    }
    %c0_i32_2 = arith.constant 0 : i32
    %9 = arith.cmpi eq, %arg0, %c0_i32_2 : i32
    %10 = arith.extui %9 : i1 to i32
    %c0_i32_3 = arith.constant 0 : i32
    %11 = arith.cmpi ne, %10, %c0_i32_3 : i32
    scf.if %11 {
      %c0 = arith.constant 0 : index
      %c0_7 = arith.constant 0 : index
      %21 = vector.load %arg2[%c0, %c0_7] : memref<8x128xf32, #tpu.memory_space<vmem>>, vector<8x128xf32>
      %c0_8 = arith.constant 0 : index
      %c0_9 = arith.constant 0 : index
      %22 = vector.load %arg7[%c0_8, %c0_9] : memref<128x256xf32, #tpu.memory_space<vmem>>, vector<128x256xf32>
      %cst = arith.constant dense<0.000000e+00> : vector<8x256xf32>
      %23 = tpu.matmul %21, %22, %cst {dimension_numbers = #tpu.dot_dimension_numbers<[1], [0], [0], [1], [0, 0, 1, 1], [], []>} : vector<8x128xf32>, vector<128x256xf32>, vector<8x256xf32> -> vector<8x256xf32>
      %c0_10 = arith.constant 0 : index
      %c0_11 = arith.constant 0 : index
      %24 = vector.load %arg5[%c0_10, %c0_11] : memref<64x8xf32, #tpu.memory_space<vmem>>, vector<64x8xf32>
      %cst_12 = arith.constant dense<0.000000e+00> : vector<64x256xf32>
      %25 = tpu.matmul %24, %23, %cst_12 {dimension_numbers = #tpu.dot_dimension_numbers<[1], [0], [0], [1], [0, 0, 1, 1], [], []>} : vector<64x8xf32>, vector<8x256xf32>, vector<64x256xf32> -> vector<64x256xf32>
      %c0_13 = arith.constant 0 : index
      %c0_14 = arith.constant 0 : index
      %26 = vector.load %arg3[%c0_13, %c0_14] : memref<64x128xf32, #tpu.memory_space<vmem>>, vector<64x128xf32>
      %c0_15 = arith.constant 0 : index
      %c0_16 = arith.constant 0 : index
      %27 = vector.load %arg8[%c0_15, %c0_16] : memref<128x256xf32, #tpu.memory_space<vmem>>, vector<128x256xf32>
      %cst_17 = arith.constant dense<0.000000e+00> : vector<64x256xf32>
      %28 = tpu.matmul %26, %27, %cst_17 {dimension_numbers = #tpu.dot_dimension_numbers<[1], [0], [0], [1], [0, 0, 1, 1], [], []>} : vector<64x128xf32>, vector<128x256xf32>, vector<64x256xf32> -> vector<64x256xf32>
      %c0_18 = arith.constant 0 : index
      %c0_19 = arith.constant 0 : index
      %29 = vector.load %arg4[%c0_18, %c0_19] : memref<64x16xf32, #tpu.memory_space<vmem>>, vector<64x16xf32>
      %c0_20 = arith.constant 0 : index
      %c0_21 = arith.constant 0 : index
      %30 = vector.load %arg9[%c0_20, %c0_21] : memref<16x256xf32, #tpu.memory_space<vmem>>, vector<16x256xf32>
      %cst_22 = arith.constant dense<0.000000e+00> : vector<64x256xf32>
      %31 = tpu.matmul %29, %30, %cst_22 {dimension_numbers = #tpu.dot_dimension_numbers<[1], [0], [0], [1], [0, 0, 1, 1], [], []>} : vector<64x16xf32>, vector<16x256xf32>, vector<64x256xf32> -> vector<64x256xf32>
      %32 = arith.addf %25, %28 : vector<64x256xf32>
      %33 = arith.addf %32, %31 : vector<64x256xf32>
      %c0_23 = arith.constant 0 : index
      %c0_24 = arith.constant 0 : index
      %34 = vector.load %arg10[%c0_23, %c0_24] : memref<1x256xf32, #tpu.memory_space<vmem>>, vector<1x256xf32>
      %35 = vector.broadcast %34 : vector<1x256xf32> to vector<64x256xf32>
      %36 = arith.addf %33, %35 : vector<64x256xf32>
      %37 = arith.index_cast %1 : i32 to index
      %c0_25 = arith.constant 0 : index
      %38 = vector.load %arg16[%37, %c0_25] : memref<192x256xf32, #tpu.memory_space<vmem>>, vector<64x256xf32>
      tpu.vector_store %arg16[%37, %c0_25], %36 {strides = array<i32>} : memref<192x256xf32, #tpu.memory_space<vmem>>, vector<64x256xf32>,
      %39 = tpu.iota {dimensions = array<i32: 0>} : vector<64x1xi32>
      %40 = vector.broadcast %1 : i32 to vector<64x1xi32>
      %41 = arith.addi %39, %40 : vector<64x1xi32>
      %c160_i32 = arith.constant 160 : i32
      %42 = vector.broadcast %c160_i32 : i32 to vector<64x1xi32>
      %43 = arith.cmpi slt, %41, %42 : vector<64x1xi32>
      %cst_26 = arith.constant 0.000000e+00 : f32
      %44 = vector.shape_cast %43 : vector<64x1xi1> to vector<64x1xi1>
      %45 = vector.broadcast %44 : vector<64x1xi1> to vector<64x256xi1>
      %46 = vector.broadcast %cst_26 : f32 to vector<64x256xf32>
      %47 = arith.select %45, %36, %46 : vector<64x256xi1>, vector<64x256xf32>
      %c0_27 = arith.constant 0 : index
      %c0_28 = arith.constant 0 : index
      %48 = vector.load %arg18[%c0_27, %c0_28] : memref<1x256xf32, #tpu.memory_space<vmem>>, vector<1x256xf32>
      %cst_29 = arith.constant dense<0.000000e+00> : vector<256xf32>
      %49 = vector.multi_reduction <add>, %47, %cst_29 [0] : vector<64x256xf32> to vector<256xf32>
      %50 = vector.shape_cast %49 : vector<256xf32> to vector<1x256xf32>
      %51 = arith.addf %48, %50 : vector<1x256xf32>
      %c0_30 = arith.constant 0 : index
      %c0_31 = arith.constant 0 : index
      %52 = vector.load %arg18[%c0_30, %c0_31] : memref<1x256xf32, #tpu.memory_space<vmem>>, vector<1x256xf32>
      tpu.vector_store %arg18[%c0_30, %c0_31], %51 {strides = array<i32>} : memref<1x256xf32, #tpu.memory_space<vmem>>, vector<1x256xf32>,
    } else {
    }
    %c1_i32 = arith.constant 1 : i32
    %12 = arith.cmpi eq, %arg0, %c1_i32 : i32
    %13 = arith.extui %12 : i1 to i32
    %c0_i32_4 = arith.constant 0 : i32
    %14 = arith.cmpi ne, %13, %c0_i32_4 : i32
    scf.if %14 {
      %c0 = arith.constant 0 : index
      %c0_7 = arith.constant 0 : index
      %21 = vector.load %arg18[%c0, %c0_7] : memref<1x256xf32, #tpu.memory_space<vmem>>, vector<1x256xf32>
      %cst = arith.constant 6.250000e-03 : f32
      %22 = vector.broadcast %cst : f32 to vector<1x256xf32>
      %23 = arith.mulf %21, %22 : vector<1x256xf32>
      %24 = tpu.iota {dimensions = array<i32: 0>} : vector<64x1xi32>
      %25 = vector.broadcast %1 : i32 to vector<64x1xi32>
      %26 = arith.addi %24, %25 : vector<64x1xi32>
      %c160_i32 = arith.constant 160 : i32
      %27 = vector.broadcast %c160_i32 : i32 to vector<64x1xi32>
      %28 = arith.cmpi slt, %26, %27 : vector<64x1xi32>
      %29 = arith.index_cast %1 : i32 to index
      %c0_8 = arith.constant 0 : index
      %30 = vector.load %arg16[%29, %c0_8] : memref<192x256xf32, #tpu.memory_space<vmem>>, vector<64x256xf32>
      %31 = vector.broadcast %23 : vector<1x256xf32> to vector<64x256xf32>
      %32 = arith.subf %30, %31 : vector<64x256xf32>
      %cst_9 = arith.constant 0.000000e+00 : f32
      %33 = vector.shape_cast %28 : vector<64x1xi1> to vector<64x1xi1>
      %34 = vector.broadcast %33 : vector<64x1xi1> to vector<64x256xi1>
      %35 = vector.broadcast %cst_9 : f32 to vector<64x256xf32>
      %36 = arith.select %34, %32, %35 : vector<64x256xi1>, vector<64x256xf32>
      %c0_10 = arith.constant 0 : index
      %c0_11 = arith.constant 0 : index
      %37 = vector.load %arg19[%c0_10, %c0_11] : memref<1x256xf32, #tpu.memory_space<vmem>>, vector<1x256xf32>
      %38 = arith.mulf %36, %36 : vector<64x256xf32>
      %cst_12 = arith.constant dense<0.000000e+00> : vector<256xf32>
      %39 = vector.multi_reduction <add>, %38, %cst_12 [0] : vector<64x256xf32> to vector<256xf32>
      %40 = vector.shape_cast %39 : vector<256xf32> to vector<1x256xf32>
      %41 = arith.addf %37, %40 : vector<1x256xf32>
      %c0_13 = arith.constant 0 : index
      %c0_14 = arith.constant 0 : index
      %42 = vector.load %arg19[%c0_13, %c0_14] : memref<1x256xf32, #tpu.memory_space<vmem>>, vector<1x256xf32>
      tpu.vector_store %arg19[%c0_13, %c0_14], %41 {strides = array<i32>} : memref<1x256xf32, #tpu.memory_space<vmem>>, vector<1x256xf32>,
    } else {
    }
    %c2_i32 = arith.constant 2 : i32
    %15 = arith.cmpi eq, %arg0, %c2_i32 : i32
    %16 = arith.extui %15 : i1 to i32
    %c0_i32_5 = arith.constant 0 : i32
    %17 = arith.cmpi ne, %16, %c0_i32_5 : i32
    scf.if %17 {
      %c0 = arith.constant 0 : index
      %c0_7 = arith.constant 0 : index
      %21 = vector.load %arg18[%c0, %c0_7] : memref<1x256xf32, #tpu.memory_space<vmem>>, vector<1x256xf32>
      %cst = arith.constant 6.250000e-03 : f32
      %22 = vector.broadcast %cst : f32 to vector<1x256xf32>
      %23 = arith.mulf %21, %22 : vector<1x256xf32>
      %c0_8 = arith.constant 0 : index
      %c0_9 = arith.constant 0 : index
      %24 = vector.load %arg19[%c0_8, %c0_9] : memref<1x256xf32, #tpu.memory_space<vmem>>, vector<1x256xf32>
      %cst_10 = arith.constant 6.250000e-03 : f32
      %25 = vector.broadcast %cst_10 : f32 to vector<1x256xf32>
      %26 = arith.mulf %24, %25 : vector<1x256xf32>
      %cst_11 = arith.constant 9.99999974E-6 : f32
      %27 = vector.broadcast %cst_11 : f32 to vector<1x256xf32>
      %28 = arith.addf %26, %27 : vector<1x256xf32>
      %29 = math.rsqrt %28 : vector<1x256xf32>
      %30 = arith.index_cast %1 : i32 to index
      %c0_12 = arith.constant 0 : index
      %31 = vector.load %arg16[%30, %c0_12] : memref<192x256xf32, #tpu.memory_space<vmem>>, vector<64x256xf32>
      %32 = vector.broadcast %23 : vector<1x256xf32> to vector<64x256xf32>
      %33 = arith.subf %31, %32 : vector<64x256xf32>
      %34 = vector.broadcast %29 : vector<1x256xf32> to vector<64x256xf32>
      %35 = arith.mulf %33, %34 : vector<64x256xf32>
      %c0_13 = arith.constant 0 : index
      %c0_14 = arith.constant 0 : index
      %36 = vector.load %arg11[%c0_13, %c0_14] : memref<1x256xf32, #tpu.memory_space<vmem>>, vector<1x256xf32>
      %37 = vector.broadcast %36 : vector<1x256xf32> to vector<64x256xf32>
      %38 = arith.mulf %35, %37 : vector<64x256xf32>
      %c0_15 = arith.constant 0 : index
      %c0_16 = arith.constant 0 : index
      %39 = vector.load %arg12[%c0_15, %c0_16] : memref<1x256xf32, #tpu.memory_space<vmem>>, vector<1x256xf32>
      %40 = vector.broadcast %39 : vector<1x256xf32> to vector<64x256xf32>
      %41 = arith.addf %38, %40 : vector<64x256xf32>
      %42 = vector.extract_strided_slice %41 {offsets = [0, 0], sizes = [64, 128], strides = [1, 1]} : vector<64x256xf32> to vector<64x128xf32>
      %43 = arith.negf %42 : vector<64x128xf32>
      %44 = math.exp %43 : vector<64x128xf32>
      %cst_17 = arith.constant 1.000000e+00 : f32
      %45 = vector.broadcast %cst_17 : f32 to vector<64x128xf32>
      %46 = arith.addf %45, %44 : vector<64x128xf32>
      %47 = arith.divf %45, %46 : vector<64x128xf32>
      %48 = vector.extract_strided_slice %41 {offsets = [0, 128], sizes = [64, 128], strides = [1, 1]} : vector<64x256xf32> to vector<64x128xf32>
      %cst_18 = arith.constant 2.000000e+01 : f32
      %49 = vector.broadcast %cst_18 : f32 to vector<64x128xf32>
      %50 = arith.cmpf ogt, %48, %49 : vector<64x128xf32>
      %cst_19 = arith.constant 2.000000e+01 : f32
      %51 = vector.broadcast %cst_19 : f32 to vector<64x128xf32>
      %52 = arith.minimumf %48, %51 : vector<64x128xf32>
      %53 = math.exp %52 : vector<64x128xf32>
      %54 = math.log1p %53 : vector<64x128xf32>
      %55 = arith.select %50, %48, %54 : vector<64x128xi1>, vector<64x128xf32>
      %56 = arith.mulf %47, %55 : vector<64x128xf32>
      %c0_20 = arith.constant 0 : index
      %c0_21 = arith.constant 0 : index
      %57 = vector.load %arg6[%c0_20, %c0_21] : memref<8x64xf32, #tpu.memory_space<vmem>>, vector<8x64xf32>
      %cst_22 = arith.constant dense<0.000000e+00> : vector<8x128xf32>
      %58 = tpu.matmul %57, %56, %cst_22 {dimension_numbers = #tpu.dot_dimension_numbers<[1], [0], [0], [1], [0, 0, 1, 1], [], []>} : vector<8x64xf32>, vector<64x128xf32>, vector<8x128xf32> -> vector<8x128xf32>
      %59 = tpu.iota {dimensions = array<i32: 1>} : vector<8x128xi32>
      %c32_i32 = arith.constant 32 : i32
      %60 = vector.broadcast %c32_i32 : i32 to vector<8x128xi32>
      %61 = arith.cmpi slt, %59, %60 : vector<8x128xi32>
      %cst_23 = arith.constant 0.000000e+00 : f32
      %62 = vector.broadcast %cst_23 : f32 to vector<8x128xf32>
      %63 = arith.select %61, %58, %62 : vector<8x128xi1>, vector<8x128xf32>
      %64 = arith.index_cast %3 : i32 to index
      %c0_24 = arith.constant 0 : index
      %65 = vector.load %arg17[%64, %c0_24] : memref<24x128xf32, #tpu.memory_space<vmem>>, vector<8x128xf32>
      tpu.vector_store %arg17[%64, %c0_24], %63 {strides = array<i32>} : memref<24x128xf32, #tpu.memory_space<vmem>>, vector<8x128xf32>,
      %66 = tpu.iota {dimensions = array<i32: 0>} : vector<8x1xi32>
      %67 = vector.broadcast %3 : i32 to vector<8x1xi32>
      %68 = arith.addi %66, %67 : vector<8x1xi32>
      %c20_i32 = arith.constant 20 : i32
      %69 = vector.broadcast %c20_i32 : i32 to vector<8x1xi32>
      %70 = arith.cmpi slt, %68, %69 : vector<8x1xi32>
      %cst_25 = arith.constant 0.000000e+00 : f32
      %71 = vector.shape_cast %70 : vector<8x1xi1> to vector<8x1xi1>
      %72 = vector.broadcast %71 : vector<8x1xi1> to vector<8x128xi1>
      %73 = vector.broadcast %cst_25 : f32 to vector<8x128xf32>
      %74 = arith.select %72, %63, %73 : vector<8x128xi1>, vector<8x128xf32>
      %c0_26 = arith.constant 0 : index
      %c0_27 = arith.constant 0 : index
      %75 = vector.load %arg20[%c0_26, %c0_27] : memref<1x128xf32, #tpu.memory_space<vmem>>, vector<1x128xf32>
      %cst_28 = arith.constant dense<0.000000e+00> : vector<128xf32>
      %76 = vector.multi_reduction <add>, %74, %cst_28 [0] : vector<8x128xf32> to vector<128xf32>
      %77 = vector.shape_cast %76 : vector<128xf32> to vector<1x128xf32>
      %78 = arith.addf %75, %77 : vector<1x128xf32>
      %c0_29 = arith.constant 0 : index
      %c0_30 = arith.constant 0 : index
      %79 = vector.load %arg20[%c0_29, %c0_30] : memref<1x128xf32, #tpu.memory_space<vmem>>, vector<1x128xf32>
      tpu.vector_store %arg20[%c0_29, %c0_30], %78 {strides = array<i32>} : memref<1x128xf32, #tpu.memory_space<vmem>>, vector<1x128xf32>,
      %c0_31 = arith.constant 0 : index
      %c0_32 = arith.constant 0 : index
      %80 = vector.load %arg21[%c0_31, %c0_32] : memref<1x128xf32, #tpu.memory_space<vmem>>, vector<1x128xf32>
      %81 = arith.mulf %74, %74 : vector<8x128xf32>
      %cst_33 = arith.constant dense<0.000000e+00> : vector<128xf32>
      %82 = vector.multi_reduction <add>, %81, %cst_33 [0] : vector<8x128xf32> to vector<128xf32>
      %83 = vector.shape_cast %82 : vector<128xf32> to vector<1x128xf32>
      %84 = arith.addf %80, %83 : vector<1x128xf32>
      %c0_34 = arith.constant 0 : index
      %c0_35 = arith.constant 0 : index
      %85 = vector.load %arg21[%c0_34, %c0_35] : memref<1x128xf32, #tpu.memory_space<vmem>>, vector<1x128xf32>
      tpu.vector_store %arg21[%c0_34, %c0_35], %84 {strides = array<i32>} : memref<1x128xf32, #tpu.memory_space<vmem>>, vector<1x128xf32>,
    } else {
    }
    %c3_i32 = arith.constant 3 : i32
    %18 = arith.cmpi eq, %arg0, %c3_i32 : i32
    %19 = arith.extui %18 : i1 to i32
    %c0_i32_6 = arith.constant 0 : i32
    %20 = arith.cmpi ne, %19, %c0_i32_6 : i32
    scf.if %20 {
      %c0 = arith.constant 0 : index
      %c0_7 = arith.constant 0 : index
      %21 = vector.load %arg20[%c0, %c0_7] : memref<1x128xf32, #tpu.memory_space<vmem>>, vector<1x128xf32>
      %cst = arith.constant 5.000000e-02 : f32
      %22 = vector.broadcast %cst : f32 to vector<1x128xf32>
      %23 = arith.mulf %21, %22 : vector<1x128xf32>
      %c0_8 = arith.constant 0 : index
      %c0_9 = arith.constant 0 : index
      %24 = vector.load %arg21[%c0_8, %c0_9] : memref<1x128xf32, #tpu.memory_space<vmem>>, vector<1x128xf32>
      %cst_10 = arith.constant 5.000000e-02 : f32
      %25 = vector.broadcast %cst_10 : f32 to vector<1x128xf32>
      %26 = arith.mulf %24, %25 : vector<1x128xf32>
      %27 = arith.mulf %23, %23 : vector<1x128xf32>
      %28 = arith.subf %26, %27 : vector<1x128xf32>
      %cst_11 = arith.constant 0.000000e+00 : f32
      %29 = vector.broadcast %cst_11 : f32 to vector<1x128xf32>
      %30 = arith.maximumf %28, %29 : vector<1x128xf32>
      %cst_12 = arith.constant 9.99999974E-6 : f32
      %31 = vector.broadcast %cst_12 : f32 to vector<1x128xf32>
      %32 = arith.addf %30, %31 : vector<1x128xf32>
      %33 = math.rsqrt %32 : vector<1x128xf32>
      %34 = arith.index_cast %3 : i32 to index
      %c0_13 = arith.constant 0 : index
      %35 = vector.load %arg17[%34, %c0_13] : memref<24x128xf32, #tpu.memory_space<vmem>>, vector<8x128xf32>
      %36 = vector.broadcast %23 : vector<1x128xf32> to vector<8x128xf32>
      %37 = arith.subf %35, %36 : vector<8x128xf32>
      %38 = vector.broadcast %33 : vector<1x128xf32> to vector<8x128xf32>
      %39 = arith.mulf %37, %38 : vector<8x128xf32>
      %c0_14 = arith.constant 0 : index
      %c0_15 = arith.constant 0 : index
      %40 = vector.load %arg13[%c0_14, %c0_15] : memref<1x128xf32, #tpu.memory_space<vmem>>, vector<1x128xf32>
      %41 = vector.broadcast %40 : vector<1x128xf32> to vector<8x128xf32>
      %42 = arith.mulf %39, %41 : vector<8x128xf32>
      %c0_16 = arith.constant 0 : index
      %c0_17 = arith.constant 0 : index
      %43 = vector.load %arg14[%c0_16, %c0_17] : memref<1x128xf32, #tpu.memory_space<vmem>>, vector<1x128xf32>
      %44 = vector.broadcast %43 : vector<1x128xf32> to vector<8x128xf32>
      %45 = arith.addf %42, %44 : vector<8x128xf32>
      %c0_18 = arith.constant 0 : index
      %c0_19 = arith.constant 0 : index
      %46 = vector.load %arg2[%c0_18, %c0_19] : memref<8x128xf32, #tpu.memory_space<vmem>>, vector<8x128xf32>
      %47 = arith.addf %46, %45 : vector<8x128xf32>
      %cst_20 = arith.constant 2.000000e+01 : f32
      %48 = vector.broadcast %cst_20 : f32 to vector<8x128xf32>
      %49 = arith.cmpf ogt, %47, %48 : vector<8x128xf32>
      %cst_21 = arith.constant 2.000000e+01 : f32
      %50 = vector.broadcast %cst_21 : f32 to vector<8x128xf32>
      %51 = arith.minimumf %47, %50 : vector<8x128xf32>
      %52 = math.exp %51 : vector<8x128xf32>
      %53 = math.log1p %52 : vector<8x128xf32>
      %54 = arith.select %49, %47, %53 : vector<8x128xi1>, vector<8x128xf32>
      %c0_22 = arith.constant 0 : index
      %c0_23 = arith.constant 0 : index
      %55 = vector.load %arg15[%c0_22, %c0_23] : memref<8x128xf32, #tpu.memory_space<vmem>>, vector<8x128xf32>
      tpu.vector_store %arg15[%c0_22, %c0_23], %54 {strides = array<i32>} : memref<8x128xf32, #tpu.memory_space<vmem>>, vector<8x128xf32>,
    } else {
    }
    return
  }
  func.func @transform_0(%arg0: i32, %arg1: i32) -> (i32, i32) {
    %c0_i32 = arith.constant 0 : i32
    %0 = arith.cmpi eq, %arg0, %c0_i32 : i32
    %c3_i32 = arith.constant 3 : i32
    %1 = arith.cmpi eq, %arg0, %c3_i32 : i32
    %2 = arith.ori %0, %1 : i1
    %c0_i32_0 = arith.constant 0 : i32
    %3 = arith.select %2, %arg1, %c0_i32_0 : i32
    %c0_i32_1 = arith.constant 0 : i32
    %c0_i32_2 = arith.constant 0 : i32
    return %3, %c0_i32_1 : i32, i32
  }
  func.func @transform_1(%arg0: i32, %arg1: i32) -> (i32, i32) {
    %c0_i32 = arith.constant 0 : i32
    %0 = arith.cmpi eq, %arg0, %c0_i32 : i32
    %c0_i32_0 = arith.constant 0 : i32
    %1 = arith.select %0, %arg1, %c0_i32_0 : i32
    %c0_i32_1 = arith.constant 0 : i32
    %c0_i32_2 = arith.constant 0 : i32
    return %1, %c0_i32_1 : i32, i32
  }
  func.func @transform_2(%arg0: i32, %arg1: i32) -> (i32, i32) {
    %c0_i32 = arith.constant 0 : i32
    %0 = arith.cmpi eq, %arg0, %c0_i32 : i32
    %c0_i32_0 = arith.constant 0 : i32
    %1 = arith.select %0, %arg1, %c0_i32_0 : i32
    %c0_i32_1 = arith.constant 0 : i32
    %c0_i32_2 = arith.constant 0 : i32
    return %1, %c0_i32_1 : i32, i32
  }
  func.func @transform_3(%arg0: i32, %arg1: i32) -> (i32, i32) {
    %c0_i32 = arith.constant 0 : i32
    %c0_i32_0 = arith.constant 0 : i32
    %c0_i32_1 = arith.constant 0 : i32
    return %c0_i32, %c0_i32_0 : i32, i32
  }
  func.func @transform_4(%arg0: i32, %arg1: i32) -> (i32, i32) {
    %c0_i32 = arith.constant 0 : i32
    %c0_i32_0 = arith.constant 0 : i32
    %c0_i32_1 = arith.constant 0 : i32
    return %c0_i32, %c0_i32_0 : i32, i32
  }
  func.func @transform_5(%arg0: i32, %arg1: i32) -> (i32, i32) {
    %c0_i32 = arith.constant 0 : i32
    %c0_i32_0 = arith.constant 0 : i32
    %c0_i32_1 = arith.constant 0 : i32
    return %c0_i32, %c0_i32_0 : i32, i32
  }
  func.func @transform_6(%arg0: i32, %arg1: i32) -> (i32, i32) {
    %c0_i32 = arith.constant 0 : i32
    %c0_i32_0 = arith.constant 0 : i32
    %c0_i32_1 = arith.constant 0 : i32
    return %c0_i32, %c0_i32_0 : i32, i32
  }
  func.func @transform_7(%arg0: i32, %arg1: i32) -> (i32, i32) {
    %c0_i32 = arith.constant 0 : i32
    %c0_i32_0 = arith.constant 0 : i32
    %c0_i32_1 = arith.constant 0 : i32
    return %c0_i32, %c0_i32_0 : i32, i32
  }
  func.func @transform_8(%arg0: i32, %arg1: i32) -> (i32, i32) {
    %c0_i32 = arith.constant 0 : i32
    %c0_i32_0 = arith.constant 0 : i32
    %c0_i32_1 = arith.constant 0 : i32
    return %c0_i32, %c0_i32_0 : i32, i32
  }
  func.func @transform_9(%arg0: i32, %arg1: i32) -> (i32, i32) {
    %c0_i32 = arith.constant 0 : i32
    %c0_i32_0 = arith.constant 0 : i32
    %c0_i32_1 = arith.constant 0 : i32
    return %c0_i32, %c0_i32_0 : i32, i32
  }
  func.func @transform_10(%arg0: i32, %arg1: i32) -> (i32, i32) {
    %c0_i32 = arith.constant 0 : i32
    %c0_i32_0 = arith.constant 0 : i32
    %c0_i32_1 = arith.constant 0 : i32
    return %c0_i32, %c0_i32_0 : i32, i32
  }
  func.func @transform_11(%arg0: i32, %arg1: i32) -> (i32, i32) {
    %c0_i32 = arith.constant 0 : i32
    %c0_i32_0 = arith.constant 0 : i32
    %c0_i32_1 = arith.constant 0 : i32
    return %c0_i32, %c0_i32_0 : i32, i32
  }
  func.func @transform_12(%arg0: i32, %arg1: i32) -> (i32, i32) {
    %c0_i32 = arith.constant 0 : i32
    %c0_i32_0 = arith.constant 0 : i32
    %c0_i32_1 = arith.constant 0 : i32
    return %c0_i32, %c0_i32_0 : i32, i32
  }
  func.func @transform_13(%arg0: i32, %arg1: i32) -> (i32, i32) {
    %c3_i32 = arith.constant 3 : i32
    %0 = arith.cmpi eq, %arg0, %c3_i32 : i32
    %c0_i32 = arith.constant 0 : i32
    %1 = arith.select %0, %arg1, %c0_i32 : i32
    %c0_i32_0 = arith.constant 0 : i32
    %c0_i32_1 = arith.constant 0 : i32
    return %1, %c0_i32_0 : i32, i32
  }
}

module attributes {stable_mosaic.version = 11 : i64} {
  func.func @_conv_layer_kernel(%arg0: i32, %arg1: i32, %arg2: memref<8x128xf32, #tpu.memory_space<vmem>>, %arg3: memref<64x128xf32, #tpu.memory_space<vmem>>, %arg4: memref<64x16xf32, #tpu.memory_space<vmem>>, %arg5: memref<64x8xf32, #tpu.memory_space<vmem>>, %arg6: memref<8x64xf32, #tpu.memory_space<vmem>>, %arg7: memref<128x256xf32, #tpu.memory_space<vmem>>, %arg8: memref<128x256xf32, #tpu.memory_space<vmem>>, %arg9: memref<16x256xf32, #tpu.memory_space<vmem>>, %arg10: memref<1x256xf32, #tpu.memory_space<vmem>>, %arg11: memref<1x256xf32, #tpu.memory_space<vmem>>, %arg12: memref<1x256xf32, #tpu.memory_space<vmem>>, %arg13: memref<1x128xf32, #tpu.memory_space<vmem>>, %arg14: memref<1x128xf32, #tpu.memory_space<vmem>>, %arg15: memref<8x128xf32, #tpu.memory_space<vmem>>, %arg16: memref<192x256xf32, #tpu.memory_space<vmem>>, %arg17: memref<24x128xf32, #tpu.memory_space<vmem>>, %arg18: memref<1x256xf32, #tpu.memory_space<vmem>>, %arg19: memref<1x256xf32, #tpu.memory_space<vmem>>, %arg20: memref<1x128xf32, #tpu.memory_space<vmem>>, %arg21: memref<1x128xf32, #tpu.memory_space<vmem>>) attributes {dimension_semantics = [#tpu.dimension_semantics<arbitrary>, #tpu.dimension_semantics<arbitrary>], iteration_bounds = array<i64: 4, 3>, scalar_prefetch = 0 : i64, scratch_operands = 6 : i64, tpu.core_type = #tpu.core_type<tc>, window_params = [{transform_indices = @transform_0, window_bounds = array<i64: 8, 128>}, {transform_indices = @transform_1, window_bounds = array<i64: 64, 128>}, {transform_indices = @transform_2, window_bounds = array<i64: 64, 16>}, {pipeline_mode = #tpu.pipeline_mode<synchronous>, transform_indices = @transform_3, window_bounds = array<i64: 64, 8>}, {pipeline_mode = #tpu.pipeline_mode<synchronous>, transform_indices = @transform_4, window_bounds = array<i64: 8, 64>}, {pipeline_mode = #tpu.pipeline_mode<synchronous>, transform_indices = @transform_5, window_bounds = array<i64: 128, 256>}, {pipeline_mode = #tpu.pipeline_mode<synchronous>, transform_indices = @transform_6, window_bounds = array<i64: 128, 256>}, {pipeline_mode = #tpu.pipeline_mode<synchronous>, transform_indices = @transform_7, window_bounds = array<i64: 16, 256>}, {pipeline_mode = #tpu.pipeline_mode<synchronous>, transform_indices = @transform_8, window_bounds = array<i64: 1, 256>}, {pipeline_mode = #tpu.pipeline_mode<synchronous>, transform_indices = @transform_9, window_bounds = array<i64: 1, 256>}, {pipeline_mode = #tpu.pipeline_mode<synchronous>, transform_indices = @transform_10, window_bounds = array<i64: 1, 256>}, {pipeline_mode = #tpu.pipeline_mode<synchronous>, transform_indices = @transform_11, window_bounds = array<i64: 1, 128>}, {pipeline_mode = #tpu.pipeline_mode<synchronous>, transform_indices = @transform_12, window_bounds = array<i64: 1, 128>}, {transform_indices = @transform_13, window_bounds = array<i64: 8, 128>}]} {
    %c64_i32 = arith.constant 64 : i32
    %0 = arith.muli %arg1, %c64_i32 : i32
    %1 = tpu.assume_multiple %0, 8 : i32
    %c8_i32 = arith.constant 8 : i32
    %2 = arith.muli %arg1, %c8_i32 : i32
    %3 = tpu.assume_multiple %2, 8 : i32
    %c0_i32 = arith.constant 0 : i32
    %4 = arith.cmpi eq, %arg0, %c0_i32 : i32
    %c0_i32_0 = arith.constant 0 : i32
    %5 = arith.cmpi eq, %arg1, %c0_i32_0 : i32
    %6 = arith.andi %4, %5 : i1
    %7 = arith.extui %6 : i1 to i32
    %c0_i32_1 = arith.constant 0 : i32
    %8 = arith.cmpi ne, %7, %c0_i32_1 : i32
    scf.if %8 {
      %cst = arith.constant 0.000000e+00 : f32
      %21 = vector.broadcast %cst : f32 to vector<1x256xf32>
      %c0 = arith.constant 0 : index
      %c0_7 = arith.constant 0 : index
      %22 = vector.load %arg18[%c0, %c0_7] : memref<1x256xf32, #tpu.memory_space<vmem>>, vector<1x256xf32>
      tpu.vector_store %arg18[%c0, %c0_7], %21 {strides = array<i32>} : memref<1x256xf32, #tpu.memory_space<vmem>>, vector<1x256xf32>,
      %cst_8 = arith.constant 0.000000e+00 : f32
      %23 = vector.broadcast %cst_8 : f32 to vector<1x256xf32>
      %c0_9 = arith.constant 0 : index
      %c0_10 = arith.constant 0 : index
      %24 = vector.load %arg19[%c0_9, %c0_10] : memref<1x256xf32, #tpu.memory_space<vmem>>, vector<1x256xf32>
      tpu.vector_store %arg19[%c0_9, %c0_10], %23 {strides = array<i32>} : memref<1x256xf32, #tpu.memory_space<vmem>>, vector<1x256xf32>,
      %cst_11 = arith.constant 0.000000e+00 : f32
      %25 = vector.broadcast %cst_11 : f32 to vector<1x128xf32>
      %c0_12 = arith.constant 0 : index
      %c0_13 = arith.constant 0 : index
      %26 = vector.load %arg20[%c0_12, %c0_13] : memref<1x128xf32, #tpu.memory_space<vmem>>, vector<1x128xf32>
      tpu.vector_store %arg20[%c0_12, %c0_13], %25 {strides = array<i32>} : memref<1x128xf32, #tpu.memory_space<vmem>>, vector<1x128xf32>,
      %cst_14 = arith.constant 0.000000e+00 : f32
      %27 = vector.broadcast %cst_14 : f32 to vector<1x128xf32>
      %c0_15 = arith.constant 0 : index
      %c0_16 = arith.constant 0 : index
      %28 = vector.load %arg21[%c0_15, %c0_16] : memref<1x128xf32, #tpu.memory_space<vmem>>, vector<1x128xf32>
      tpu.vector_store %arg21[%c0_15, %c0_16], %27 {strides = array<i32>} : memref<1x128xf32, #tpu.memory_space<vmem>>, vector<1x128xf32>,
    } else {
    }
    %c0_i32_2 = arith.constant 0 : i32
    %9 = arith.cmpi eq, %arg0, %c0_i32_2 : i32
    %10 = arith.extui %9 : i1 to i32
    %c0_i32_3 = arith.constant 0 : i32
    %11 = arith.cmpi ne, %10, %c0_i32_3 : i32
    scf.if %11 {
      %c0 = arith.constant 0 : index
      %c0_7 = arith.constant 0 : index
      %21 = vector.load %arg2[%c0, %c0_7] : memref<8x128xf32, #tpu.memory_space<vmem>>, vector<8x128xf32>
      %c0_8 = arith.constant 0 : index
      %c0_9 = arith.constant 0 : index
      %22 = vector.load %arg7[%c0_8, %c0_9] : memref<128x256xf32, #tpu.memory_space<vmem>>, vector<128x256xf32>
      %cst = arith.constant dense<0.000000e+00> : vector<8x256xf32>
      %23 = tpu.matmul %21, %22, %cst {dimension_numbers = #tpu.dot_dimension_numbers<[1], [0], [0], [1], [0, 0, 1, 1], [], []>} : vector<8x128xf32>, vector<128x256xf32>, vector<8x256xf32> -> vector<8x256xf32>
      %c0_10 = arith.constant 0 : index
      %c0_11 = arith.constant 0 : index
      %24 = vector.load %arg5[%c0_10, %c0_11] : memref<64x8xf32, #tpu.memory_space<vmem>>, vector<64x8xf32>
      %cst_12 = arith.constant dense<0.000000e+00> : vector<64x256xf32>
      %25 = tpu.matmul %24, %23, %cst_12 {dimension_numbers = #tpu.dot_dimension_numbers<[1], [0], [0], [1], [0, 0, 1, 1], [], []>} : vector<64x8xf32>, vector<8x256xf32>, vector<64x256xf32> -> vector<64x256xf32>
      %c0_13 = arith.constant 0 : index
      %c0_14 = arith.constant 0 : index
      %26 = vector.load %arg3[%c0_13, %c0_14] : memref<64x128xf32, #tpu.memory_space<vmem>>, vector<64x128xf32>
      %c0_15 = arith.constant 0 : index
      %c0_16 = arith.constant 0 : index
      %27 = vector.load %arg8[%c0_15, %c0_16] : memref<128x256xf32, #tpu.memory_space<vmem>>, vector<128x256xf32>
      %cst_17 = arith.constant dense<0.000000e+00> : vector<64x256xf32>
      %28 = tpu.matmul %26, %27, %cst_17 {dimension_numbers = #tpu.dot_dimension_numbers<[1], [0], [0], [1], [0, 0, 1, 1], [], []>} : vector<64x128xf32>, vector<128x256xf32>, vector<64x256xf32> -> vector<64x256xf32>
      %c0_18 = arith.constant 0 : index
      %c0_19 = arith.constant 0 : index
      %29 = vector.load %arg4[%c0_18, %c0_19] : memref<64x16xf32, #tpu.memory_space<vmem>>, vector<64x16xf32>
      %c0_20 = arith.constant 0 : index
      %c0_21 = arith.constant 0 : index
      %30 = vector.load %arg9[%c0_20, %c0_21] : memref<16x256xf32, #tpu.memory_space<vmem>>, vector<16x256xf32>
      %cst_22 = arith.constant dense<0.000000e+00> : vector<64x256xf32>
      %31 = tpu.matmul %29, %30, %cst_22 {dimension_numbers = #tpu.dot_dimension_numbers<[1], [0], [0], [1], [0, 0, 1, 1], [], []>} : vector<64x16xf32>, vector<16x256xf32>, vector<64x256xf32> -> vector<64x256xf32>
      %32 = arith.addf %25, %28 : vector<64x256xf32>
      %33 = arith.addf %32, %31 : vector<64x256xf32>
      %c0_23 = arith.constant 0 : index
      %c0_24 = arith.constant 0 : index
      %34 = vector.load %arg10[%c0_23, %c0_24] : memref<1x256xf32, #tpu.memory_space<vmem>>, vector<1x256xf32>
      %35 = vector.broadcast %34 : vector<1x256xf32> to vector<64x256xf32>
      %36 = arith.addf %33, %35 : vector<64x256xf32>
      %37 = arith.index_cast %1 : i32 to index
      %c0_25 = arith.constant 0 : index
      %38 = vector.load %arg16[%37, %c0_25] : memref<192x256xf32, #tpu.memory_space<vmem>>, vector<64x256xf32>
      tpu.vector_store %arg16[%37, %c0_25], %36 {strides = array<i32>} : memref<192x256xf32, #tpu.memory_space<vmem>>, vector<64x256xf32>,
      %39 = tpu.iota {dimensions = array<i32: 0>} : vector<64x1xi32>
      %40 = vector.broadcast %1 : i32 to vector<64x1xi32>
      %41 = arith.addi %39, %40 : vector<64x1xi32>
      %c160_i32 = arith.constant 160 : i32
      %42 = vector.broadcast %c160_i32 : i32 to vector<64x1xi32>
      %43 = arith.cmpi slt, %41, %42 : vector<64x1xi32>
      %cst_26 = arith.constant 0.000000e+00 : f32
      %44 = vector.shape_cast %43 : vector<64x1xi1> to vector<64x1xi1>
      %45 = vector.broadcast %44 : vector<64x1xi1> to vector<64x256xi1>
      %46 = vector.broadcast %cst_26 : f32 to vector<64x256xf32>
      %47 = arith.select %45, %36, %46 : vector<64x256xi1>, vector<64x256xf32>
      %c0_27 = arith.constant 0 : index
      %c0_28 = arith.constant 0 : index
      %48 = vector.load %arg18[%c0_27, %c0_28] : memref<1x256xf32, #tpu.memory_space<vmem>>, vector<1x256xf32>
      %cst_29 = arith.constant dense<0.000000e+00> : vector<256xf32>
      %49 = vector.multi_reduction <add>, %47, %cst_29 [0] : vector<64x256xf32> to vector<256xf32>
      %50 = vector.shape_cast %49 : vector<256xf32> to vector<1x256xf32>
      %51 = arith.addf %48, %50 : vector<1x256xf32>
      %c0_30 = arith.constant 0 : index
      %c0_31 = arith.constant 0 : index
      %52 = vector.load %arg18[%c0_30, %c0_31] : memref<1x256xf32, #tpu.memory_space<vmem>>, vector<1x256xf32>
      tpu.vector_store %arg18[%c0_30, %c0_31], %51 {strides = array<i32>} : memref<1x256xf32, #tpu.memory_space<vmem>>, vector<1x256xf32>,
    } else {
    }
    %c1_i32 = arith.constant 1 : i32
    %12 = arith.cmpi eq, %arg0, %c1_i32 : i32
    %13 = arith.extui %12 : i1 to i32
    %c0_i32_4 = arith.constant 0 : i32
    %14 = arith.cmpi ne, %13, %c0_i32_4 : i32
    scf.if %14 {
      %c0 = arith.constant 0 : index
      %c0_7 = arith.constant 0 : index
      %21 = vector.load %arg18[%c0, %c0_7] : memref<1x256xf32, #tpu.memory_space<vmem>>, vector<1x256xf32>
      %cst = arith.constant 6.250000e-03 : f32
      %22 = vector.broadcast %cst : f32 to vector<1x256xf32>
      %23 = arith.mulf %21, %22 : vector<1x256xf32>
      %24 = tpu.iota {dimensions = array<i32: 0>} : vector<64x1xi32>
      %25 = vector.broadcast %1 : i32 to vector<64x1xi32>
      %26 = arith.addi %24, %25 : vector<64x1xi32>
      %c160_i32 = arith.constant 160 : i32
      %27 = vector.broadcast %c160_i32 : i32 to vector<64x1xi32>
      %28 = arith.cmpi slt, %26, %27 : vector<64x1xi32>
      %29 = arith.index_cast %1 : i32 to index
      %c0_8 = arith.constant 0 : index
      %30 = vector.load %arg16[%29, %c0_8] : memref<192x256xf32, #tpu.memory_space<vmem>>, vector<64x256xf32>
      %31 = vector.broadcast %23 : vector<1x256xf32> to vector<64x256xf32>
      %32 = arith.subf %30, %31 : vector<64x256xf32>
      %cst_9 = arith.constant 0.000000e+00 : f32
      %33 = vector.shape_cast %28 : vector<64x1xi1> to vector<64x1xi1>
      %34 = vector.broadcast %33 : vector<64x1xi1> to vector<64x256xi1>
      %35 = vector.broadcast %cst_9 : f32 to vector<64x256xf32>
      %36 = arith.select %34, %32, %35 : vector<64x256xi1>, vector<64x256xf32>
      %c0_10 = arith.constant 0 : index
      %c0_11 = arith.constant 0 : index
      %37 = vector.load %arg19[%c0_10, %c0_11] : memref<1x256xf32, #tpu.memory_space<vmem>>, vector<1x256xf32>
      %38 = arith.mulf %36, %36 : vector<64x256xf32>
      %cst_12 = arith.constant dense<0.000000e+00> : vector<256xf32>
      %39 = vector.multi_reduction <add>, %38, %cst_12 [0] : vector<64x256xf32> to vector<256xf32>
      %40 = vector.shape_cast %39 : vector<256xf32> to vector<1x256xf32>
      %41 = arith.addf %37, %40 : vector<1x256xf32>
      %c0_13 = arith.constant 0 : index
      %c0_14 = arith.constant 0 : index
      %42 = vector.load %arg19[%c0_13, %c0_14] : memref<1x256xf32, #tpu.memory_space<vmem>>, vector<1x256xf32>
      tpu.vector_store %arg19[%c0_13, %c0_14], %41 {strides = array<i32>} : memref<1x256xf32, #tpu.memory_space<vmem>>, vector<1x256xf32>,
    } else {
    }
    %c2_i32 = arith.constant 2 : i32
    %15 = arith.cmpi eq, %arg0, %c2_i32 : i32
    %16 = arith.extui %15 : i1 to i32
    %c0_i32_5 = arith.constant 0 : i32
    %17 = arith.cmpi ne, %16, %c0_i32_5 : i32
    scf.if %17 {
      %c0 = arith.constant 0 : index
      %c0_7 = arith.constant 0 : index
      %21 = vector.load %arg18[%c0, %c0_7] : memref<1x256xf32, #tpu.memory_space<vmem>>, vector<1x256xf32>
      %cst = arith.constant 6.250000e-03 : f32
      %22 = vector.broadcast %cst : f32 to vector<1x256xf32>
      %23 = arith.mulf %21, %22 : vector<1x256xf32>
      %c0_8 = arith.constant 0 : index
      %c0_9 = arith.constant 0 : index
      %24 = vector.load %arg19[%c0_8, %c0_9] : memref<1x256xf32, #tpu.memory_space<vmem>>, vector<1x256xf32>
      %cst_10 = arith.constant 6.250000e-03 : f32
      %25 = vector.broadcast %cst_10 : f32 to vector<1x256xf32>
      %26 = arith.mulf %24, %25 : vector<1x256xf32>
      %cst_11 = arith.constant 9.99999974E-6 : f32
      %27 = vector.broadcast %cst_11 : f32 to vector<1x256xf32>
      %28 = arith.addf %26, %27 : vector<1x256xf32>
      %29 = math.rsqrt %28 : vector<1x256xf32>
      %30 = arith.index_cast %1 : i32 to index
      %c0_12 = arith.constant 0 : index
      %31 = vector.load %arg16[%30, %c0_12] : memref<192x256xf32, #tpu.memory_space<vmem>>, vector<64x256xf32>
      %32 = vector.broadcast %23 : vector<1x256xf32> to vector<64x256xf32>
      %33 = arith.subf %31, %32 : vector<64x256xf32>
      %34 = vector.broadcast %29 : vector<1x256xf32> to vector<64x256xf32>
      %35 = arith.mulf %33, %34 : vector<64x256xf32>
      %c0_13 = arith.constant 0 : index
      %c0_14 = arith.constant 0 : index
      %36 = vector.load %arg11[%c0_13, %c0_14] : memref<1x256xf32, #tpu.memory_space<vmem>>, vector<1x256xf32>
      %37 = vector.broadcast %36 : vector<1x256xf32> to vector<64x256xf32>
      %38 = arith.mulf %35, %37 : vector<64x256xf32>
      %c0_15 = arith.constant 0 : index
      %c0_16 = arith.constant 0 : index
      %39 = vector.load %arg12[%c0_15, %c0_16] : memref<1x256xf32, #tpu.memory_space<vmem>>, vector<1x256xf32>
      %40 = vector.broadcast %39 : vector<1x256xf32> to vector<64x256xf32>
      %41 = arith.addf %38, %40 : vector<64x256xf32>
      %42 = vector.extract_strided_slice %41 {offsets = [0, 0], sizes = [64, 128], strides = [1, 1]} : vector<64x256xf32> to vector<64x128xf32>
      %43 = arith.negf %42 : vector<64x128xf32>
      %44 = math.exp %43 : vector<64x128xf32>
      %cst_17 = arith.constant 1.000000e+00 : f32
      %45 = vector.broadcast %cst_17 : f32 to vector<64x128xf32>
      %46 = arith.addf %45, %44 : vector<64x128xf32>
      %47 = arith.divf %45, %46 : vector<64x128xf32>
      %48 = vector.extract_strided_slice %41 {offsets = [0, 128], sizes = [64, 128], strides = [1, 1]} : vector<64x256xf32> to vector<64x128xf32>
      %cst_18 = arith.constant 2.000000e+01 : f32
      %49 = vector.broadcast %cst_18 : f32 to vector<64x128xf32>
      %50 = arith.cmpf ogt, %48, %49 : vector<64x128xf32>
      %cst_19 = arith.constant 2.000000e+01 : f32
      %51 = vector.broadcast %cst_19 : f32 to vector<64x128xf32>
      %52 = arith.minimumf %48, %51 : vector<64x128xf32>
      %53 = math.exp %52 : vector<64x128xf32>
      %54 = math.log1p %53 : vector<64x128xf32>
      %55 = arith.select %50, %48, %54 : vector<64x128xi1>, vector<64x128xf32>
      %56 = arith.mulf %47, %55 : vector<64x128xf32>
      %c0_20 = arith.constant 0 : index
      %c0_21 = arith.constant 0 : index
      %57 = vector.load %arg6[%c0_20, %c0_21] : memref<8x64xf32, #tpu.memory_space<vmem>>, vector<8x64xf32>
      %cst_22 = arith.constant dense<0.000000e+00> : vector<8x128xf32>
      %58 = tpu.matmul %57, %56, %cst_22 {dimension_numbers = #tpu.dot_dimension_numbers<[1], [0], [0], [1], [0, 0, 1, 1], [], []>} : vector<8x64xf32>, vector<64x128xf32>, vector<8x128xf32> -> vector<8x128xf32>
      %59 = tpu.iota {dimensions = array<i32: 1>} : vector<8x128xi32>
      %c32_i32 = arith.constant 32 : i32
      %60 = vector.broadcast %c32_i32 : i32 to vector<8x128xi32>
      %61 = arith.cmpi slt, %59, %60 : vector<8x128xi32>
      %cst_23 = arith.constant 0.000000e+00 : f32
      %62 = vector.broadcast %cst_23 : f32 to vector<8x128xf32>
      %63 = arith.select %61, %58, %62 : vector<8x128xi1>, vector<8x128xf32>
      %64 = arith.index_cast %3 : i32 to index
      %c0_24 = arith.constant 0 : index
      %65 = vector.load %arg17[%64, %c0_24] : memref<24x128xf32, #tpu.memory_space<vmem>>, vector<8x128xf32>
      tpu.vector_store %arg17[%64, %c0_24], %63 {strides = array<i32>} : memref<24x128xf32, #tpu.memory_space<vmem>>, vector<8x128xf32>,
      %66 = tpu.iota {dimensions = array<i32: 0>} : vector<8x1xi32>
      %67 = vector.broadcast %3 : i32 to vector<8x1xi32>
      %68 = arith.addi %66, %67 : vector<8x1xi32>
      %c20_i32 = arith.constant 20 : i32
      %69 = vector.broadcast %c20_i32 : i32 to vector<8x1xi32>
      %70 = arith.cmpi slt, %68, %69 : vector<8x1xi32>
      %cst_25 = arith.constant 0.000000e+00 : f32
      %71 = vector.shape_cast %70 : vector<8x1xi1> to vector<8x1xi1>
      %72 = vector.broadcast %71 : vector<8x1xi1> to vector<8x128xi1>
      %73 = vector.broadcast %cst_25 : f32 to vector<8x128xf32>
      %74 = arith.select %72, %63, %73 : vector<8x128xi1>, vector<8x128xf32>
      %c0_26 = arith.constant 0 : index
      %c0_27 = arith.constant 0 : index
      %75 = vector.load %arg20[%c0_26, %c0_27] : memref<1x128xf32, #tpu.memory_space<vmem>>, vector<1x128xf32>
      %cst_28 = arith.constant dense<0.000000e+00> : vector<128xf32>
      %76 = vector.multi_reduction <add>, %74, %cst_28 [0] : vector<8x128xf32> to vector<128xf32>
      %77 = vector.shape_cast %76 : vector<128xf32> to vector<1x128xf32>
      %78 = arith.addf %75, %77 : vector<1x128xf32>
      %c0_29 = arith.constant 0 : index
      %c0_30 = arith.constant 0 : index
      %79 = vector.load %arg20[%c0_29, %c0_30] : memref<1x128xf32, #tpu.memory_space<vmem>>, vector<1x128xf32>
      tpu.vector_store %arg20[%c0_29, %c0_30], %78 {strides = array<i32>} : memref<1x128xf32, #tpu.memory_space<vmem>>, vector<1x128xf32>,
      %c0_31 = arith.constant 0 : index
      %c0_32 = arith.constant 0 : index
      %80 = vector.load %arg21[%c0_31, %c0_32] : memref<1x128xf32, #tpu.memory_space<vmem>>, vector<1x128xf32>
      %81 = arith.mulf %74, %74 : vector<8x128xf32>
      %cst_33 = arith.constant dense<0.000000e+00> : vector<128xf32>
      %82 = vector.multi_reduction <add>, %81, %cst_33 [0] : vector<8x128xf32> to vector<128xf32>
      %83 = vector.shape_cast %82 : vector<128xf32> to vector<1x128xf32>
      %84 = arith.addf %80, %83 : vector<1x128xf32>
      %c0_34 = arith.constant 0 : index
      %c0_35 = arith.constant 0 : index
      %85 = vector.load %arg21[%c0_34, %c0_35] : memref<1x128xf32, #tpu.memory_space<vmem>>, vector<1x128xf32>
      tpu.vector_store %arg21[%c0_34, %c0_35], %84 {strides = array<i32>} : memref<1x128xf32, #tpu.memory_space<vmem>>, vector<1x128xf32>,
    } else {
    }
    %c3_i32 = arith.constant 3 : i32
    %18 = arith.cmpi eq, %arg0, %c3_i32 : i32
    %19 = arith.extui %18 : i1 to i32
    %c0_i32_6 = arith.constant 0 : i32
    %20 = arith.cmpi ne, %19, %c0_i32_6 : i32
    scf.if %20 {
      %c0 = arith.constant 0 : index
      %c0_7 = arith.constant 0 : index
      %21 = vector.load %arg20[%c0, %c0_7] : memref<1x128xf32, #tpu.memory_space<vmem>>, vector<1x128xf32>
      %cst = arith.constant 5.000000e-02 : f32
      %22 = vector.broadcast %cst : f32 to vector<1x128xf32>
      %23 = arith.mulf %21, %22 : vector<1x128xf32>
      %c0_8 = arith.constant 0 : index
      %c0_9 = arith.constant 0 : index
      %24 = vector.load %arg21[%c0_8, %c0_9] : memref<1x128xf32, #tpu.memory_space<vmem>>, vector<1x128xf32>
      %cst_10 = arith.constant 5.000000e-02 : f32
      %25 = vector.broadcast %cst_10 : f32 to vector<1x128xf32>
      %26 = arith.mulf %24, %25 : vector<1x128xf32>
      %27 = arith.mulf %23, %23 : vector<1x128xf32>
      %28 = arith.subf %26, %27 : vector<1x128xf32>
      %cst_11 = arith.constant 0.000000e+00 : f32
      %29 = vector.broadcast %cst_11 : f32 to vector<1x128xf32>
      %30 = arith.maximumf %28, %29 : vector<1x128xf32>
      %cst_12 = arith.constant 9.99999974E-6 : f32
      %31 = vector.broadcast %cst_12 : f32 to vector<1x128xf32>
      %32 = arith.addf %30, %31 : vector<1x128xf32>
      %33 = math.rsqrt %32 : vector<1x128xf32>
      %34 = arith.index_cast %3 : i32 to index
      %c0_13 = arith.constant 0 : index
      %35 = vector.load %arg17[%34, %c0_13] : memref<24x128xf32, #tpu.memory_space<vmem>>, vector<8x128xf32>
      %36 = vector.broadcast %23 : vector<1x128xf32> to vector<8x128xf32>
      %37 = arith.subf %35, %36 : vector<8x128xf32>
      %38 = vector.broadcast %33 : vector<1x128xf32> to vector<8x128xf32>
      %39 = arith.mulf %37, %38 : vector<8x128xf32>
      %c0_14 = arith.constant 0 : index
      %c0_15 = arith.constant 0 : index
      %40 = vector.load %arg13[%c0_14, %c0_15] : memref<1x128xf32, #tpu.memory_space<vmem>>, vector<1x128xf32>
      %41 = vector.broadcast %40 : vector<1x128xf32> to vector<8x128xf32>
      %42 = arith.mulf %39, %41 : vector<8x128xf32>
      %c0_16 = arith.constant 0 : index
      %c0_17 = arith.constant 0 : index
      %43 = vector.load %arg14[%c0_16, %c0_17] : memref<1x128xf32, #tpu.memory_space<vmem>>, vector<1x128xf32>
      %44 = vector.broadcast %43 : vector<1x128xf32> to vector<8x128xf32>
      %45 = arith.addf %42, %44 : vector<8x128xf32>
      %c0_18 = arith.constant 0 : index
      %c0_19 = arith.constant 0 : index
      %46 = vector.load %arg2[%c0_18, %c0_19] : memref<8x128xf32, #tpu.memory_space<vmem>>, vector<8x128xf32>
      %47 = arith.addf %46, %45 : vector<8x128xf32>
      %cst_20 = arith.constant 2.000000e+01 : f32
      %48 = vector.broadcast %cst_20 : f32 to vector<8x128xf32>
      %49 = arith.cmpf ogt, %47, %48 : vector<8x128xf32>
      %cst_21 = arith.constant 2.000000e+01 : f32
      %50 = vector.broadcast %cst_21 : f32 to vector<8x128xf32>
      %51 = arith.minimumf %47, %50 : vector<8x128xf32>
      %52 = math.exp %51 : vector<8x128xf32>
      %53 = math.log1p %52 : vector<8x128xf32>
      %54 = arith.select %49, %47, %53 : vector<8x128xi1>, vector<8x128xf32>
      %c0_22 = arith.constant 0 : index
      %c0_23 = arith.constant 0 : index
      %55 = vector.load %arg15[%c0_22, %c0_23] : memref<8x128xf32, #tpu.memory_space<vmem>>, vector<8x128xf32>
      tpu.vector_store %arg15[%c0_22, %c0_23], %54 {strides = array<i32>} : memref<8x128xf32, #tpu.memory_space<vmem>>, vector<8x128xf32>,
    } else {
    }
    return
  }
  func.func @transform_0(%arg0: i32, %arg1: i32) -> (i32, i32) {
    %c0_i32 = arith.constant 0 : i32
    %0 = arith.cmpi eq, %arg0, %c0_i32 : i32
    %c3_i32 = arith.constant 3 : i32
    %1 = arith.cmpi eq, %arg0, %c3_i32 : i32
    %2 = arith.ori %0, %1 : i1
    %c0_i32_0 = arith.constant 0 : i32
    %3 = arith.select %2, %arg1, %c0_i32_0 : i32
    %c0_i32_1 = arith.constant 0 : i32
    %c0_i32_2 = arith.constant 0 : i32
    return %3, %c0_i32_1 : i32, i32
  }
  func.func @transform_1(%arg0: i32, %arg1: i32) -> (i32, i32) {
    %c0_i32 = arith.constant 0 : i32
    %0 = arith.cmpi eq, %arg0, %c0_i32 : i32
    %c0_i32_0 = arith.constant 0 : i32
    %1 = arith.select %0, %arg1, %c0_i32_0 : i32
    %c0_i32_1 = arith.constant 0 : i32
    %c0_i32_2 = arith.constant 0 : i32
    return %1, %c0_i32_1 : i32, i32
  }
  func.func @transform_2(%arg0: i32, %arg1: i32) -> (i32, i32) {
    %c0_i32 = arith.constant 0 : i32
    %0 = arith.cmpi eq, %arg0, %c0_i32 : i32
    %c0_i32_0 = arith.constant 0 : i32
    %1 = arith.select %0, %arg1, %c0_i32_0 : i32
    %c0_i32_1 = arith.constant 0 : i32
    %c0_i32_2 = arith.constant 0 : i32
    return %1, %c0_i32_1 : i32, i32
  }
  func.func @transform_3(%arg0: i32, %arg1: i32) -> (i32, i32) {
    %c0_i32 = arith.constant 0 : i32
    %c0_i32_0 = arith.constant 0 : i32
    %c0_i32_1 = arith.constant 0 : i32
    return %c0_i32, %c0_i32_0 : i32, i32
  }
  func.func @transform_4(%arg0: i32, %arg1: i32) -> (i32, i32) {
    %c0_i32 = arith.constant 0 : i32
    %c0_i32_0 = arith.constant 0 : i32
    %c0_i32_1 = arith.constant 0 : i32
    return %c0_i32, %c0_i32_0 : i32, i32
  }
  func.func @transform_5(%arg0: i32, %arg1: i32) -> (i32, i32) {
    %c0_i32 = arith.constant 0 : i32
    %c0_i32_0 = arith.constant 0 : i32
    %c0_i32_1 = arith.constant 0 : i32
    return %c0_i32, %c0_i32_0 : i32, i32
  }
  func.func @transform_6(%arg0: i32, %arg1: i32) -> (i32, i32) {
    %c0_i32 = arith.constant 0 : i32
    %c0_i32_0 = arith.constant 0 : i32
    %c0_i32_1 = arith.constant 0 : i32
    return %c0_i32, %c0_i32_0 : i32, i32
  }
  func.func @transform_7(%arg0: i32, %arg1: i32) -> (i32, i32) {
    %c0_i32 = arith.constant 0 : i32
    %c0_i32_0 = arith.constant 0 : i32
    %c0_i32_1 = arith.constant 0 : i32
    return %c0_i32, %c0_i32_0 : i32, i32
  }
  func.func @transform_8(%arg0: i32, %arg1: i32) -> (i32, i32) {
    %c0_i32 = arith.constant 0 : i32
    %c0_i32_0 = arith.constant 0 : i32
    %c0_i32_1 = arith.constant 0 : i32
    return %c0_i32, %c0_i32_0 : i32, i32
  }
  func.func @transform_9(%arg0: i32, %arg1: i32) -> (i32, i32) {
    %c0_i32 = arith.constant 0 : i32
    %c0_i32_0 = arith.constant 0 : i32
    %c0_i32_1 = arith.constant 0 : i32
    return %c0_i32, %c0_i32_0 : i32, i32
  }
  func.func @transform_10(%arg0: i32, %arg1: i32) -> (i32, i32) {
    %c0_i32 = arith.constant 0 : i32
    %c0_i32_0 = arith.constant 0 : i32
    %c0_i32_1 = arith.constant 0 : i32
    return %c0_i32, %c0_i32_0 : i32, i32
  }
  func.func @transform_11(%arg0: i32, %arg1: i32) -> (i32, i32) {
    %c0_i32 = arith.constant 0 : i32
    %c0_i32_0 = arith.constant 0 : i32
    %c0_i32_1 = arith.constant 0 : i32
    return %c0_i32, %c0_i32_0 : i32, i32
  }
  func.func @transform_12(%arg0: i32, %arg1: i32) -> (i32, i32) {
    %c0_i32 = arith.constant 0 : i32
    %c0_i32_0 = arith.constant 0 : i32
    %c0_i32_1 = arith.constant 0 : i32
    return %c0_i32, %c0_i32_0 : i32, i32
  }
  func.func @transform_13(%arg0: i32, %arg1: i32) -> (i32, i32) {
    %c3_i32 = arith.constant 3 : i32
    %0 = arith.cmpi eq, %arg0, %c3_i32 : i32
    %c0_i32 = arith.constant 0 : i32
    %1 = arith.select %0, %arg1, %c0_i32 : i32
    %c0_i32_0 = arith.constant 0 : i32
    %c0_i32_1 = arith.constant 0 : i32
    return %1, %c0_i32_0 : i32, i32
  }
}

</mosaic_0001>

<llo_original>
// kernel: tpu_custom_call.1
$region0: #{tpu_custom_call.1}
  #allocation0 [shape = 'u32[]', space=smem, size = 0x4, offset = 0x4, fixed_abs, tag = 'smem constant byte address 0x4 - core index']
  #allocation1 [shape = 'u32[144,128]{1,0:T(1,128)}', space=vmem, size = 0x12000, scoped, tag = 'internal scratch']
  #allocation2 [shape = 'f32[192,256]{1,0:T(8,128)}', space=vmem, size = 0x30000, scoped, tag = 'scratch operand']
  #allocation3 [shape = 'f32[24,128]{1,0:T(8,128)}', space=vmem, size = 0x3000, scoped, tag = 'scratch operand']
  #allocation4 [shape = 'f32[1,256]{1,0:T(1,128)}', space=vmem, size = 0x400, scoped, tag = 'scratch operand']
  #allocation5 [shape = 'f32[1,256]{1,0:T(1,128)}', space=vmem, size = 0x400, scoped, tag = 'scratch operand']
  #allocation6 [shape = 'f32[1,128]{1,0:T(1,128)}', space=vmem, size = 0x200, scoped, tag = 'scratch operand']
  #allocation7 [shape = 'f32[1,128]{1,0:T(1,128)}', space=vmem, size = 0x200, scoped, tag = 'scratch operand']
  %s0 = inlined_call_operand.vmem [shape: f32[24,128], index: 0, kind: input, shape index: {}]
  %s1 = inlined_call_operand.hbm [shape: f32[192,128], index: 1, kind: input, shape index: {}]
  %s2 = inlined_call_operand.vmem [shape: f32[192,16], index: 2, kind: input, shape index: {}]
  %s3 = inlined_call_operand.vmem [shape: f32[64,8], index: 3, kind: input, shape index: {}]
  %s4 = inlined_call_operand.hbm [shape: f32[8,64], index: 4, kind: input, shape index: {}]
  %s5 = inlined_call_operand.vmem [shape: f32[128,256], index: 5, kind: input, shape index: {}]
  %s6 = inlined_call_operand.hbm [shape: f32[128,256], index: 6, kind: input, shape index: {}]
  %s7 = inlined_call_operand.vmem [shape: f32[16,256], index: 7, kind: input, shape index: {}]
  %s8 = inlined_call_operand.vmem [shape: f32[1,256], index: 8, kind: input, shape index: {}]
  %s9 = inlined_call_operand.vmem [shape: f32[1,256], index: 9, kind: input, shape index: {}]
  %s10 = inlined_call_operand.vmem [shape: f32[1,256], index: 10, kind: input, shape index: {}]
  %s11 = inlined_call_operand.vmem [shape: f32[1,128], index: 11, kind: input, shape index: {}]
  %s12 = inlined_call_operand.vmem [shape: f32[1,128], index: 12, kind: input, shape index: {}]
  %s13 = inlined_call_operand.hbm [shape: f32[24,128], index: 13, kind: output, shape index: {}]
  %s14 = sld [smem:[#allocation0]]
  $region117: #{tpu_custom_call.1} parent=0
    _
  %s16 = ssub.s32 1, %s14
  %s17 = scalar_select 0, %s16, %s14
  $region1: #{tpu_custom_call.1} parent=0
    #allocation8 [shape = 'u8[65536]{0}', space=vmem, size = 0x10000, scoped, tag = 'input window, operand 1']
    #allocation9 [shape = 's32[2]{0}', space=sflag, size = 0x8, scoped, tag = 'scoped memory for tpu_custom_call.1']
    #allocation10 [shape = 's32[2]{0}', space=sflag, size = 0x8, scoped, tag = 'scoped memory for tpu_custom_call.1']
    #allocation11 [shape = 'u8[4096]{0}', space=vmem, size = 0x1000, scoped, tag = 'input window, operand 4, single buffered']
    #allocation12 [shape = 's32[1]{0}', space=sflag, size = 0x4, scoped, tag = 'scoped memory for tpu_custom_call.1']
    #allocation13 [shape = 'u8[131072]{0}', space=vmem, size = 0x20000, scoped, tag = 'input window, operand 6, single buffered']
    #allocation14 [shape = 'u8[8192]{0}', space=vmem, size = 0x2000, scoped, tag = 'output window, operand 0']
    %18 = vsyncpa [#allocation9], 0
    %s19 = scalar_lea.sflag [#allocation9], 1
    %20 = vsyncpa %s19, 0
    %21 = vsyncpa [#allocation12], 0
    %22 = vsyncpa [#allocation10], 0
    %s23 = scalar_lea.sflag [#allocation10], 1
    %24 = vsyncpa %s23, 0
    loop: start=0, step=1, limit=14
    $region2: #{tpu_custom_call.1} parent=1 // loop_pre_header
      _
    $region3: #{tpu_custom_call.1} parent=1 // loop_header
      %s26 = sphi 0, %s30
      %p27 = scmp.ge.s32.totalorder %s26, 14
      %s33 = sphi 0, %s45
      %s34 = sphi 0, %s41
      %s35 = sphi 0, %s33
      %s36 = sphi 0, %s34
      %s37 = sphi 0, %s35
      %s38 = sphi 0, %s36
      %s56 = sphi 0, %s58
      %s59 = sphi 0, %s56
      %s60 = sphi 0, %s59
      %s76 = sphi 0, %s60
      %s86 = sphi 0, %s88
      %s89 = sphi 0, %s86
      %s90 = sphi 0, %s89
      %s106 = sphi 0, %s90
      %s116 = sphi 0, %s118
      %s119 = sphi 0, %s116
      %s120 = sphi 0, %s119
      %s136 = sphi 0, %s120
      %s140 = sphi 0, %s140
      %s142 = sphi 0, %s140
      %s143 = sphi 0, %s142
      %s157 = sphi 0, %s143
      %s161 = sphi 0, %s161
      %s163 = sphi 0, %s161
      %s164 = sphi 0, %s163
      %s178 = sphi 0, %s164
      %s182 = sphi 0, %s182
      %s184 = sphi 0, %s182
      %s185 = sphi 0, %s184
      %s199 = sphi 0, %s185
      %s203 = sphi 0, %s203
      %s205 = sphi 0, %s203
      %s206 = sphi 0, %s205
      %s220 = sphi 0, %s206
      %s224 = sphi 0, %s224
      %s226 = sphi 0, %s224
      %s227 = sphi 0, %s226
      %s241 = sphi 0, %s227
      %s245 = sphi 0, %s245
      %s247 = sphi 0, %s245
      %s248 = sphi 0, %s247
      %s262 = sphi 0, %s248
      %s266 = sphi 0, %s266
      %s268 = sphi 0, %s266
      %s269 = sphi 0, %s268
      %s283 = sphi 0, %s269
      %s287 = sphi 0, %s287
      %s289 = sphi 0, %s287
      %s290 = sphi 0, %s289
      %s304 = sphi 0, %s290
      %s308 = sphi 0, %s308
      %s310 = sphi 0, %s308
      %s311 = sphi 0, %s310
      %s325 = sphi 0, %s311
      %s329 = sphi 0, %s329
      %s331 = sphi 0, %s329
      %s332 = sphi 0, %s331
      %s346 = sphi 0, %s332
      %s356 = sphi 0, %s358
      %s359 = sphi 0, %s356
      %s360 = sphi 0, %s359
      %s376 = sphi 0, %s360
    $region4: #{tpu_custom_call.1} parent=1 // loop_header_branch
      %29 = sbr.rel (%p27) target = $region8
    $region5: #{tpu_custom_call.1} parent=1 // loop_body
      %s31 = ssub.s32 %s26, 1
      %s32 = ssub.s32 %s26, 2
      %s39 = sadd.s32 1, %s34
      %p40 = scmp.ge.s32.totalorder %s39, 3
      %s41 = scalar_select %p40, 0, %s39
      %s42 = sadd.s32 1, %s33
      %s43 = scalar_select %p40, %s42, %s33
      %p44 = scmp.ge.s32.totalorder %s43, 4
      %s45 = scalar_select %p44, 0, %s43
      %p46 = scmp.eq.s32.totalorder %s33, 0
      %p47 = scmp.eq.s32.totalorder %s33, 3
      %p48 = por %p46, %p47
      %s49 = scalar_select %p48, %s34, 0
      %p50 = scmp.eq.s32.totalorder %s45, 0
      %p51 = scmp.eq.s32.totalorder %s45, 3
      %p52 = por %p50, %p51
      %s53 = scalar_select %p52, %s41, 0
      %s54 = ssub.s32 %s49, %s53
      %p55 = scmp.eq.s32.totalorder %s54, 0
      %s57 = sadd.s32 %s56, 1
      %s58 = scalar_select %p55, %s56, %s57
      %p61 = pneg %p55
      %p62 = scmp.eq.s32.totalorder %s26, 11
      %p63 = por %p61, %p62
      %p64 = scmp.ne.s32.totalorder %s56, %s59
      %p65 = scmp.eq.s32.totalorder %s26, 0
      %p66 = por %p64, %p65
      %p67 = scmp.ne.s32.totalorder %s56, %s59
      %p68 = scmp.eq.s32.totalorder %s31, 11
      %p69 = por %p67, %p68
      %p70 = scmp.ne.s32.totalorder %s59, %s60
      %p71 = scmp.eq.s32.totalorder %s31, 0
      %p72 = por %p70, %p71
      %p73 = scmp.ne.s32.totalorder %s59, %s60
      %p74 = scmp.eq.s32.totalorder %s32, 11
      %p75 = por %p73, %p74
      %p77 = scmp.ne.s32.totalorder %s60, %s76
      %p78 = scmp.eq.s32.totalorder %s32, 0
      %p79 = por %p77, %p78
      %p80 = scmp.eq.s32.totalorder %s33, 0
      %s81 = scalar_select %p80, %s34, 0
      %p82 = scmp.eq.s32.totalorder %s45, 0
      %s83 = scalar_select %p82, %s41, 0
      %s84 = ssub.s32 %s81, %s83
      %p85 = scmp.eq.s32.totalorder %s84, 0
      %s87 = sadd.s32 %s86, 1
      %s88 = scalar_select %p85, %s86, %s87
      %p91 = pneg %p85
      %p92 = scmp.eq.s32.totalorder %s26, 11
      %p93 = por %p91, %p92
      %p94 = scmp.ne.s32.totalorder %s86, %s89
      %p95 = scmp.eq.s32.totalorder %s26, 0
      %p96 = por %p94, %p95
      %p97 = scmp.ne.s32.totalorder %s86, %s89
      %p98 = scmp.eq.s32.totalorder %s31, 11
      %p99 = por %p97, %p98
      %p100 = scmp.ne.s32.totalorder %s89, %s90
      %p101 = scmp.eq.s32.totalorder %s31, 0
      %p102 = por %p100, %p101
      %p103 = scmp.ne.s32.totalorder %s89, %s90
      %p104 = scmp.eq.s32.totalorder %s32, 11
      %p105 = por %p103, %p104
      %p107 = scmp.ne.s32.totalorder %s90, %s106
      %p108 = scmp.eq.s32.totalorder %s32, 0
      %p109 = por %p107, %p108
      %p110 = scmp.eq.s32.totalorder %s33, 0
      %s111 = scalar_select %p110, %s34, 0
      %p112 = scmp.eq.s32.totalorder %s45, 0
      %s113 = scalar_select %p112, %s41, 0
      %s114 = ssub.s32 %s111, %s113
      %p115 = scmp.eq.s32.totalorder %s114, 0
      %s117 = sadd.s32 %s116, 1
      %s118 = scalar_select %p115, %s116, %s117
      %p121 = pneg %p115
      %p122 = scmp.eq.s32.totalorder %s26, 11
      %p123 = por %p121, %p122
      %p124 = scmp.ne.s32.totalorder %s116, %s119
      %p125 = scmp.eq.s32.totalorder %s26, 0
      %p126 = por %p124, %p125
      %p127 = scmp.ne.s32.totalorder %s116, %s119
      %p128 = scmp.eq.s32.totalorder %s31, 11
      %p129 = por %p127, %p128
      %p130 = scmp.ne.s32.totalorder %s119, %s120
      %p131 = scmp.eq.s32.totalorder %s31, 0
      %p132 = por %p130, %p131
      %p133 = scmp.ne.s32.totalorder %s119, %s120
      %p134 = scmp.eq.s32.totalorder %s32, 11
      %p135 = por %p133, %p134
      %p137 = scmp.ne.s32.totalorder %s120, %s136
      %p138 = scmp.eq.s32.totalorder %s32, 0
      %p139 = por %p137, %p138
      %s141 = sadd.s32 %s140, 1
      %p144 = scmp.eq.s32.totalorder %s26, 11
      %p145 = scmp.ne.s32.totalorder %s140, %s142
      %p146 = scmp.eq.s32.totalorder %s26, 0
      %p147 = por %p145, %p146
      %p148 = scmp.ne.s32.totalorder %s140, %s142
      %p149 = scmp.eq.s32.totalorder %s31, 11
      %p150 = por %p148, %p149
      %p151 = scmp.ne.s32.totalorder %s142, %s143
      %p152 = scmp.eq.s32.totalorder %s31, 0
      %p153 = por %p151, %p152
      %p154 = scmp.ne.s32.totalorder %s142, %s143
      %p155 = scmp.eq.s32.totalorder %s32, 11
      %p156 = por %p154, %p155
      %p158 = scmp.ne.s32.totalorder %s143, %s157
      %p159 = scmp.eq.s32.totalorder %s32, 0
      %p160 = por %p158, %p159
      %s162 = sadd.s32 %s161, 1
      %p165 = scmp.eq.s32.totalorder %s26, 11
      %p166 = scmp.ne.s32.totalorder %s161, %s163
      %p167 = scmp.eq.s32.totalorder %s26, 0
      %p168 = por %p166, %p167
      %p169 = scmp.ne.s32.totalorder %s161, %s163
      %p170 = scmp.eq.s32.totalorder %s31, 11
      %p171 = por %p169, %p170
      %p172 = scmp.ne.s32.totalorder %s163, %s164
      %p173 = scmp.eq.s32.totalorder %s31, 0
      %p174 = por %p172, %p173
      %p175 = scmp.ne.s32.totalorder %s163, %s164
      %p176 = scmp.eq.s32.totalorder %s32, 11
      %p177 = por %p175, %p176
      %p179 = scmp.ne.s32.totalorder %s164, %s178
      %p180 = scmp.eq.s32.totalorder %s32, 0
      %p181 = por %p179, %p180
      %s183 = sadd.s32 %s182, 1
      %p186 = scmp.eq.s32.totalorder %s26, 11
      %p187 = scmp.ne.s32.totalorder %s182, %s184
      %p188 = scmp.eq.s32.totalorder %s26, 0
      %p189 = por %p187, %p188
      %p190 = scmp.ne.s32.totalorder %s182, %s184
      %p191 = scmp.eq.s32.totalorder %s31, 11
      %p192 = por %p190, %p191
      %p193 = scmp.ne.s32.totalorder %s184, %s185
      %p194 = scmp.eq.s32.totalorder %s31, 0
      %p195 = por %p193, %p194
      %p196 = scmp.ne.s32.totalorder %s184, %s185
      %p197 = scmp.eq.s32.totalorder %s32, 11
      %p198 = por %p196, %p197
      %p200 = scmp.ne.s32.totalorder %s185, %s199
      %p201 = scmp.eq.s32.totalorder %s32, 0
      %p202 = por %p200, %p201
      %s204 = sadd.s32 %s203, 1
      %p207 = scmp.eq.s32.totalorder %s26, 11
      %p208 = scmp.ne.s32.totalorder %s203, %s205
      %p209 = scmp.eq.s32.totalorder %s26, 0
      %p210 = por %p208, %p209
      %p211 = scmp.ne.s32.totalorder %s203, %s205
      %p212 = scmp.eq.s32.totalorder %s31, 11
      %p213 = por %p211, %p212
      %p214 = scmp.ne.s32.totalorder %s205, %s206
      %p215 = scmp.eq.s32.totalorder %s31, 0
      %p216 = por %p214, %p215
      %p217 = scmp.ne.s32.totalorder %s205, %s206
      %p218 = scmp.eq.s32.totalorder %s32, 11
      %p219 = por %p217, %p218
      %p221 = scmp.ne.s32.totalorder %s206, %s220
      %p222 = scmp.eq.s32.totalorder %s32, 0
      %p223 = por %p221, %p222
      %s225 = sadd.s32 %s224, 1
      %p228 = scmp.eq.s32.totalorder %s26, 11
      %p229 = scmp.ne.s32.totalorder %s224, %s226
      %p230 = scmp.eq.s32.totalorder %s26, 0
      %p231 = por %p229, %p230
      %p232 = scmp.ne.s32.totalorder %s224, %s226
      %p233 = scmp.eq.s32.totalorder %s31, 11
      %p234 = por %p232, %p233
      %p235 = scmp.ne.s32.totalorder %s226, %s227
      %p236 = scmp.eq.s32.totalorder %s31, 0
      %p237 = por %p235, %p236
      %p238 = scmp.ne.s32.totalorder %s226, %s227
      %p239 = scmp.eq.s32.totalorder %s32, 11
      %p240 = por %p238, %p239
      %p242 = scmp.ne.s32.totalorder %s227, %s241
      %p243 = scmp.eq.s32.totalorder %s32, 0
      %p244 = por %p242, %p243
      %s246 = sadd.s32 %s245, 1
      %p249 = scmp.eq.s32.totalorder %s26, 11
      %p250 = scmp.ne.s32.totalorder %s245, %s247
      %p251 = scmp.eq.s32.totalorder %s26, 0
      %p252 = por %p250, %p251
      %p253 = scmp.ne.s32.totalorder %s245, %s247
      %p254 = scmp.eq.s32.totalorder %s31, 11
      %p255 = por %p253, %p254
      %p256 = scmp.ne.s32.totalorder %s247, %s248
      %p257 = scmp.eq.s32.totalorder %s31, 0
      %p258 = por %p256, %p257
      %p259 = scmp.ne.s32.totalorder %s247, %s248
      %p260 = scmp.eq.s32.totalorder %s32, 11
      %p261 = por %p259, %p260
      %p263 = scmp.ne.s32.totalorder %s248, %s262
      %p264 = scmp.eq.s32.totalorder %s32, 0
      %p265 = por %p263, %p264
      %s267 = sadd.s32 %s266, 1
      %p270 = scmp.eq.s32.totalorder %s26, 11
      %p271 = scmp.ne.s32.totalorder %s266, %s268
      %p272 = scmp.eq.s32.totalorder %s26, 0
      %p273 = por %p271, %p272
      %p274 = scmp.ne.s32.totalorder %s266, %s268
      %p275 = scmp.eq.s32.totalorder %s31, 11
      %p276 = por %p274, %p275
      %p277 = scmp.ne.s32.totalorder %s268, %s269
      %p278 = scmp.eq.s32.totalorder %s31, 0
      %p279 = por %p277, %p278
      %p280 = scmp.ne.s32.totalorder %s268, %s269
      %p281 = scmp.eq.s32.totalorder %s32, 11
      %p282 = por %p280, %p281
      %p284 = scmp.ne.s32.totalorder %s269, %s283
      %p285 = scmp.eq.s32.totalorder %s32, 0
      %p286 = por %p284, %p285
      %s288 = sadd.s32 %s287, 1
      %p291 = scmp.eq.s32.totalorder %s26, 11
      %p292 = scmp.ne.s32.totalorder %s287, %s289
      %p293 = scmp.eq.s32.totalorder %s26, 0
      %p294 = por %p292, %p293
      %p295 = scmp.ne.s32.totalorder %s287, %s289
      %p296 = scmp.eq.s32.totalorder %s31, 11
      %p297 = por %p295, %p296
      %p298 = scmp.ne.s32.totalorder %s289, %s290
      %p299 = scmp.eq.s32.totalorder %s31, 0
      %p300 = por %p298, %p299
      %p301 = scmp.ne.s32.totalorder %s289, %s290
      %p302 = scmp.eq.s32.totalorder %s32, 11
      %p303 = por %p301, %p302
      %p305 = scmp.ne.s32.totalorder %s290, %s304
      %p306 = scmp.eq.s32.totalorder %s32, 0
      %p307 = por %p305, %p306
      %s309 = sadd.s32 %s308, 1
      %p312 = scmp.eq.s32.totalorder %s26, 11
      %p313 = scmp.ne.s32.totalorder %s308, %s310
      %p314 = scmp.eq.s32.totalorder %s26, 0
      %p315 = por %p313, %p314
      %p316 = scmp.ne.s32.totalorder %s308, %s310
      %p317 = scmp.eq.s32.totalorder %s31, 11
      %p318 = por %p316, %p317
      %p319 = scmp.ne.s32.totalorder %s310, %s311
      %p320 = scmp.eq.s32.totalorder %s31, 0
      %p321 = por %p319, %p320
      %p322 = scmp.ne.s32.totalorder %s310, %s311
      %p323 = scmp.eq.s32.totalorder %s32, 11
      %p324 = por %p322, %p323
      %p326 = scmp.ne.s32.totalorder %s311, %s325
      %p327 = scmp.eq.s32.totalorder %s32, 0
      %p328 = por %p326, %p327
      %s330 = sadd.s32 %s329, 1
      %p333 = scmp.eq.s32.totalorder %s26, 11
      %p334 = scmp.ne.s32.totalorder %s329, %s331
      %p335 = scmp.eq.s32.totalorder %s26, 0
      %p336 = por %p334, %p335
      %p337 = scmp.ne.s32.totalorder %s329, %s331
      %p338 = scmp.eq.s32.totalorder %s31, 11
      %p339 = por %p337, %p338
      %p340 = scmp.ne.s32.totalorder %s331, %s332
      %p341 = scmp.eq.s32.totalorder %s31, 0
      %p342 = por %p340, %p341
      %p343 = scmp.ne.s32.totalorder %s331, %s332
      %p344 = scmp.eq.s32.totalorder %s32, 11
      %p345 = por %p343, %p344
      %p347 = scmp.ne.s32.totalorder %s332, %s346
      %p348 = scmp.eq.s32.totalorder %s32, 0
      %p349 = por %p347, %p348
      %p350 = scmp.eq.s32.totalorder %s33, 3
      %s351 = scalar_select %p350, %s34, 0
      %p352 = scmp.eq.s32.totalorder %s45, 3
      %s353 = scalar_select %p352, %s41, 0
      %s354 = ssub.s32 %s351, %s353
      %p355 = scmp.eq.s32.totalorder %s354, 0
      %s357 = sadd.s32 %s356, 1
      %s358 = scalar_select %p355, %s356, %s357
      %p361 = pneg %p355
      %p362 = scmp.eq.s32.totalorder %s26, 11
      %p363 = por %p361, %p362
      %p364 = scmp.ne.s32.totalorder %s356, %s359
      %p365 = scmp.eq.s32.totalorder %s26, 0
      %p366 = por %p364, %p365
      %p367 = scmp.ne.s32.totalorder %s356, %s359
      %p368 = scmp.eq.s32.totalorder %s31, 11
      %p369 = por %p367, %p368
      %p370 = scmp.ne.s32.totalorder %s359, %s360
      %p371 = scmp.eq.s32.totalorder %s31, 0
      %p372 = por %p370, %p371
      %p373 = scmp.ne.s32.totalorder %s359, %s360
      %p374 = scmp.eq.s32.totalorder %s32, 11
      %p375 = por %p373, %p374
      %p377 = scmp.ne.s32.totalorder %s360, %s376
      %p378 = scmp.eq.s32.totalorder %s32, 0
      %p379 = por %p377, %p378
      %p380 = scmp.le.s32.totalorder 1, %s26
      %p381 = scmp.lt.s32.totalorder %s26, 13
      %p382 = pnand %p380, %p381
      %p383 = pneg %p382
      // Predicated region
      $region9: #{tpu_custom_call.1} parent=5 // pred_check
        _
      $region10: #{tpu_custom_call.1} parent=5 // pred_check_branch
        %385 = sbr.rel (%p382) target = $region12
      $region11: #{tpu_custom_call.1} parent=5 // pred_region
        %s386 = ssub.s32 %s26, 1
        // Predicated region
        $region13: #{tpu_custom_call.1} parent=11 // pred_check
          %p387 = pneg %p153
        $region14: #{tpu_custom_call.1} parent=11 // pred_check_branch
          %389 = sbr.rel (%p387) target = $region16
        $region15: #{tpu_custom_call.1} parent=11 // pred_region
          _
        $region16: #{tpu_custom_call.1} parent=11 // pred_fallthru
          _
        // Predicated region
        $region17: #{tpu_custom_call.1} parent=11 // pred_check
          %p390 = pneg %p174
        $region18: #{tpu_custom_call.1} parent=11 // pred_check_branch
          %392 = sbr.rel (%p390) target = $region20
        $region19: #{tpu_custom_call.1} parent=11 // pred_region
          %s394 = ssub.s32 128, 128
          %395 = vsyncadd [#allocation12], %s394
          %s397 = sshll.u32 [#allocation11], 4
          %s398 = int_to_ptr.vmem [resolvable:$true] %s397
          %400 = dma.hbm_to_vmem [thread:$0]  %s4, 128, %s398, [#allocation12]
        $region20: #{tpu_custom_call.1} parent=11 // pred_fallthru
          _
        // Predicated region
        $region21: #{tpu_custom_call.1} parent=11 // pred_check
          %p401 = pneg %p195
        $region22: #{tpu_custom_call.1} parent=11 // pred_check_branch
          %403 = sbr.rel (%p401) target = $region24
        $region23: #{tpu_custom_call.1} parent=11 // pred_region
          _
        $region24: #{tpu_custom_call.1} parent=11 // pred_fallthru
          _
        // Predicated region
        $region25: #{tpu_custom_call.1} parent=11 // pred_check
          %p404 = pneg %p216
        $region26: #{tpu_custom_call.1} parent=11 // pred_check_branch
          %406 = sbr.rel (%p404) target = $region28
        $region27: #{tpu_custom_call.1} parent=11 // pred_region
          %s408 = ssub.s32 4096, 4096
          %409 = vsyncadd [#allocation12], %s408
          %s410 = sshll.u32 [#allocation13], 4
          %s411 = int_to_ptr.vmem [resolvable:$true] %s410
          %416 = dma.hbm_to_vmem [thread:$0]  %s6, 4096, %s411, [#allocation12], 256, 256, 16
        $region28: #{tpu_custom_call.1} parent=11 // pred_fallthru
          _
        // Predicated region
        $region29: #{tpu_custom_call.1} parent=11 // pred_check
          %p417 = pneg %p237
        $region30: #{tpu_custom_call.1} parent=11 // pred_check_branch
          %419 = sbr.rel (%p417) target = $region32
        $region31: #{tpu_custom_call.1} parent=11 // pred_region
          _
        $region32: #{tpu_custom_call.1} parent=11 // pred_fallthru
          _
        // Predicated region
        $region33: #{tpu_custom_call.1} parent=11 // pred_check
          %p420 = pneg %p258
        $region34: #{tpu_custom_call.1} parent=11 // pred_check_branch
          %422 = sbr.rel (%p420) target = $region36
        $region35: #{tpu_custom_call.1} parent=11 // pred_region
          _
        $region36: #{tpu_custom_call.1} parent=11 // pred_fallthru
          _
        // Predicated region
        $region37: #{tpu_custom_call.1} parent=11 // pred_check
          %p423 = pneg %p279
        $region38: #{tpu_custom_call.1} parent=11 // pred_check_branch
          %425 = sbr.rel (%p423) target = $region40
        $region39: #{tpu_custom_call.1} parent=11 // pred_region
          _
        $region40: #{tpu_custom_call.1} parent=11 // pred_fallthru
          _
        // Predicated region
        $region41: #{tpu_custom_call.1} parent=11 // pred_check
          %p426 = pneg %p300
        $region42: #{tpu_custom_call.1} parent=11 // pred_check_branch
          %428 = sbr.rel (%p426) target = $region44
        $region43: #{tpu_custom_call.1} parent=11 // pred_region
          _
        $region44: #{tpu_custom_call.1} parent=11 // pred_fallthru
          _
        // Predicated region
        $region45: #{tpu_custom_call.1} parent=11 // pred_check
          %p429 = pneg %p321
        $region46: #{tpu_custom_call.1} parent=11 // pred_check_branch
          %431 = sbr.rel (%p429) target = $region48
        $region47: #{tpu_custom_call.1} parent=11 // pred_region
          _
        $region48: #{tpu_custom_call.1} parent=11 // pred_fallthru
          _
        // Predicated region
        $region49: #{tpu_custom_call.1} parent=11 // pred_check
          %p432 = pneg %p342
        $region50: #{tpu_custom_call.1} parent=11 // pred_check_branch
          %434 = sbr.rel (%p432) target = $region52
        $region51: #{tpu_custom_call.1} parent=11 // pred_region
          _
        $region52: #{tpu_custom_call.1} parent=11 // pred_fallthru
          _
      $region12: #{tpu_custom_call.1} parent=5 // pred_fallthru
        _
      %p435 = scmp.lt.s32.totalorder %s26, 12
      // Predicated region
      $region53: #{tpu_custom_call.1} parent=5 // pred_check
        %p436 = pneg %p435
      $region54: #{tpu_custom_call.1} parent=5 // pred_check_branch
        %438 = sbr.rel (%p436) target = $region56
      $region55: #{tpu_custom_call.1} parent=5 // pred_region
        // Predicated region
        $region57: #{tpu_custom_call.1} parent=55 // pred_check
          %p439 = pneg %p66
        $region58: #{tpu_custom_call.1} parent=55 // pred_check_branch
          %441 = sbr.rel (%p439) target = $region60
        $region59: #{tpu_custom_call.1} parent=55 // pred_region
          %p442 = scmp.eq.s32.totalorder %s33, 0
          %p443 = scmp.eq.s32.totalorder %s33, 3
          %p444 = por %p442, %p443
          %s445 = scalar_select %p444, %s34, 0
          %p446 = scmp.lt.s32.totalorder %s445, 2
          %s447 = scalar_select %p446, %s445, 2
          %s448 = smul.addr %s447, 8
          %s449 = scalar_lea.vmem %s0, %s448
          %p450 = scmp.eq.s32.totalorder %s33, 0
          %p451 = scmp.eq.s32.totalorder %s33, 3
          %p452 = por %p450, %p451
          %s453 = scalar_select %p452, %s34, 0
        $region60: #{tpu_custom_call.1} parent=55 // pred_fallthru
          _
        // Predicated region
        $region61: #{tpu_custom_call.1} parent=55 // pred_check
          %p454 = pneg %p96
        $region62: #{tpu_custom_call.1} parent=55 // pred_check_branch
          %456 = sbr.rel (%p454) target = $region64
        $region63: #{tpu_custom_call.1} parent=55 // pred_region
          %s457 = sand.u32 %s86, 1
          %s458 = scalar_lea.sflag [#allocation9], %s457
          %s459 = sand.u32 %s86, 1
          %s460 = smul.addr %s459, 64
          %s461 = scalar_lea.vmem [#allocation8], %s460
          %p462 = scmp.eq.s32.totalorder %s33, 0
          %s463 = scalar_select %p462, %s34, 0
          %s464 = smul.u32 8, %s463
          %s466 = ssub.s32 1024, 1024
          %467 = vsyncadd %s458, %s466
          %s468 = smul.addr %s464, 128
          %s469 = scalar_lea.hbm %s1, %s468
          %s470 = sshll.u32 %s461, 4
          %s471 = int_to_ptr.vmem [resolvable:$true] %s470
          %476 = dma.hbm_to_vmem [thread:$0]  %s469, 1024, %s471, %s458, 128, 128, 8
        $region64: #{tpu_custom_call.1} parent=55 // pred_fallthru
          _
        // Predicated region
        $region65: #{tpu_custom_call.1} parent=55 // pred_check
          %p477 = pneg %p126
        $region66: #{tpu_custom_call.1} parent=55 // pred_check_branch
          %479 = sbr.rel (%p477) target = $region68
        $region67: #{tpu_custom_call.1} parent=55 // pred_region
          %p480 = scmp.eq.s32.totalorder %s33, 0
          %s481 = scalar_select %p480, %s34, 0
          %s482 = smul.u32 8, %s481
          %p483 = scmp.lt.s32.totalorder %s482, 23
          %s484 = scalar_select %p483, %s482, 23
          %s485 = smul.addr %s484, 8
          %s486 = scalar_lea.vmem %s2, %s485
          %p487 = scmp.eq.s32.totalorder %s33, 0
          %s488 = scalar_select %p487, %s34, 0
          %s489 = smul.u32 8, %s488
        $region68: #{tpu_custom_call.1} parent=55 // pred_fallthru
          _
      $region56: #{tpu_custom_call.1} parent=5 // pred_fallthru
        _
      %p490 = scmp.le.s32.totalorder 1, %s26
      %p491 = scmp.lt.s32.totalorder %s26, 13
      %p492 = pnand %p490, %p491
      %p493 = pneg %p492
      // Predicated region
      $region69: #{tpu_custom_call.1} parent=5 // pred_check
        _
      $region70: #{tpu_custom_call.1} parent=5 // pred_check_branch
        %495 = sbr.rel (%p492) target = $region72
      $region71: #{tpu_custom_call.1} parent=5 // pred_region
        %s496 = ssub.s32 %s26, 1
        %s497 = sand.u32 %s89, 1
        %s498 = scalar_lea.sflag [#allocation9], %s497
        %s499 = sand.u32 %s89, 1
        %s500 = smul.addr %s499, 64
        %s501 = scalar_lea.vmem [#allocation8], %s500
        // Predicated region
        $region73: #{tpu_custom_call.1} parent=71 // pred_check
          %p502 = pneg %p102
        $region74: #{tpu_custom_call.1} parent=71 // pred_check_branch
          %504 = sbr.rel (%p502) target = $region76
        $region75: #{tpu_custom_call.1} parent=71 // pred_region
          %505 = dma.done %s498, 1024
        $region76: #{tpu_custom_call.1} parent=71 // pred_fallthru
          _
        // Predicated region
        $region77: #{tpu_custom_call.1} parent=71 // pred_check
          %p506 = pneg %p174
        $region78: #{tpu_custom_call.1} parent=71 // pred_check_branch
          %508 = sbr.rel (%p506) target = $region80
        $region79: #{tpu_custom_call.1} parent=71 // pred_region
          %509 = dma.done [#allocation12], 128
        $region80: #{tpu_custom_call.1} parent=71 // pred_fallthru
          _
        // Predicated region
        $region81: #{tpu_custom_call.1} parent=71 // pred_check
          %p510 = pneg %p216
        $region82: #{tpu_custom_call.1} parent=71 // pred_check_branch
          %512 = sbr.rel (%p510) target = $region84
        $region83: #{tpu_custom_call.1} parent=71 // pred_region
          %513 = dma.done [#allocation12], 4096
        $region84: #{tpu_custom_call.1} parent=71 // pred_fallthru
          _
        %p514 = scmp.eq.s32.totalorder %s35, 0
        %p515 = scmp.eq.s32.totalorder %s35, 3
        %p516 = por %p514, %p515
        %s517 = scalar_select %p516, %s36, 0
        %p518 = scmp.lt.s32.totalorder %s517, 2
        %s519 = scalar_select %p518, %s517, 2
        %s520 = smul.addr %s519, 8
        %s521 = scalar_lea.vmem %s0, %s520
        %p522 = pneg %p72
        %p523 = pneg %p69
        %s524 = sand.u32 %s89, 1
        %s525 = scalar_lea.sflag [#allocation9], %s524
        %s526 = sand.u32 %s89, 1
        %s527 = smul.addr %s526, 64
        %s528 = scalar_lea.vmem [#allocation8], %s527
        %p529 = pneg %p102
        %p530 = pneg %p99
        %p531 = scmp.eq.s32.totalorder %s35, 0
        %s532 = scalar_select %p531, %s36, 0
        %s533 = smul.u32 8, %s532
        %p534 = scmp.lt.s32.totalorder %s533, 23
        %s535 = scalar_select %p534, %s533, 23
        %s536 = smul.addr %s535, 8
        %s537 = scalar_lea.vmem %s2, %s536
        %p538 = pneg %p132
        %p539 = pneg %p129
        %p540 = pneg %p153
        %p541 = pneg %p150
        %p542 = pneg %p174
        %p543 = pneg %p171
        %p544 = pneg %p195
        %p545 = pneg %p192
        %p546 = pneg %p216
        %p547 = pneg %p213
        %p548 = pneg %p237
        %p549 = pneg %p234
        %p550 = pneg %p258
        %p551 = pneg %p255
        %p552 = pneg %p279
        %p553 = pneg %p276
        %p554 = pneg %p300
        %p555 = pneg %p297
        %p556 = pneg %p321
        %p557 = pneg %p318
        %p558 = pneg %p342
        %p559 = pneg %p339
        %p560 = pneg %p372
        %p561 = pneg %p369
        %s562 = sand.u32 %s359, 1
        %s563 = scalar_lea.sflag [#allocation10], %s562
        %s564 = sand.u32 %s359, 1
        %s565 = smul.addr %s564, 8
        %s566 = scalar_lea.vmem [#allocation14], %s565
        %p567 = scmp.eq.s32.totalorder %s35, 0
        %p568 = scmp.eq.s32.totalorder %s35, 3
        %p569 = por %p567, %p568
        %s570 = scalar_select %p569, %s36, 0
        %p571 = scmp.lt.s32.totalorder %s570, 2
        %s572 = scalar_select %p571, %s570, 2
        %s573 = smul.addr %s572, 8
        %s574 = scalar_lea.vmem %s0, %s573
        %p575 = scmp.eq.s32.totalorder %s35, 0
        %p576 = scmp.eq.s32.totalorder %s35, 3
        %p577 = por %p575, %p576
        %s578 = scalar_select %p577, %s36, 0
        %p579 = scmp.eq.s32.totalorder %s35, 0
        %s580 = scalar_select %p579, %s36, 0
        %s581 = smul.u32 8, %s580
        %p582 = scmp.eq.s32.totalorder %s35, 0
        %s583 = scalar_select %p582, %s36, 0
        %s584 = smul.u32 8, %s583
        %p585 = scmp.lt.s32.totalorder %s584, 23
        %s586 = scalar_select %p585, %s584, 23
        %s587 = smul.addr %s586, 8
        %s588 = scalar_lea.vmem %s2, %s587
        %p589 = scmp.eq.s32.totalorder %s35, 0
        %s590 = scalar_select %p589, %s36, 0
        %s591 = smul.u32 8, %s590
        %p592 = scmp.eq.s32.totalorder %s35, 3
        %s593 = scalar_select %p592, %s36, 0
        %s594 = smul.u32 %s36, 64
        %s595 = smul.u32 %s36, 8
        %p596 = scmp.eq.s32.totalorder %s35, 0
        %p597 = scmp.eq.s32.totalorder %s36, 0
        %p598 = pnand %p596, %p597
        %p599 = pneg %p598
        // Predicated region
        $region85: #{tpu_custom_call.1} parent=71 // pred_check
          _
        $region86: #{tpu_custom_call.1} parent=71 // pred_check_branch
          %601 = sbr.rel (%p598) target = $region88
        $region87: #{tpu_custom_call.1} parent=71 // pred_region
          %v602 = vlaneseq
          %vm603 = vcmp.ge.s32.totalorder %v602, 0
          %vm604 = vcmp.lt.s32.totalorder %v602, 256
          %vm605 = vmand %vm603, %vm604
          %606 = vst.msk [vmem:[#allocation4] sm:$0x3] %vm605, 0.0
          %607 = vst.msk [vmem:[#allocation5] sm:$0x3] %vm605, 0.0
          %608 = vst [vmem:[#allocation6] sm:$0x1] 0.0
          %609 = vst [vmem:[#allocation7] sm:$0x1] 0.0
        $region88: #{tpu_custom_call.1} parent=71 // pred_fallthru
          _
        // Predicated region
        $region89: #{tpu_custom_call.1} parent=71 // pred_check
          %p610 = pneg %p596
        $region90: #{tpu_custom_call.1} parent=71 // pred_check_branch
          %612 = sbr.rel (%p610) target = $region92
        $region91: #{tpu_custom_call.1} parent=71 // pred_region
          %v613 = vld [vmem:[%s574] sm:$0xff]
          %v614 = vld [vmem:[%s5] sm:$0xff]
          %v615 = vld [vmem:[%s5 + $0x8] sm:$0xff]
          %v616 = vld [vmem:[%s5 + $0x10] sm:$0xff]
          %v617 = vld [vmem:[%s5 + $0x18] sm:$0xff]
          %v618 = vld [vmem:[%s5 + $0x20] sm:$0xff]
          %v619 = vld [vmem:[%s5 + $0x28] sm:$0xff]
          %v620 = vld [vmem:[%s5 + $0x30] sm:$0xff]
          %v621 = vld [vmem:[%s5 + $0x38] sm:$0xff]
          %v622 = vld [vmem:[%s5 + $0x40] sm:$0xff]
          %v623 = vld [vmem:[%s5 + $0x48] sm:$0xff]
          %v624 = vld [vmem:[%s5 + $0x50] sm:$0xff]
          %v625 = vld [vmem:[%s5 + $0x58] sm:$0xff]
          %v626 = vld [vmem:[%s5 + $0x60] sm:$0xff]
          %v627 = vld [vmem:[%s5 + $0x68] sm:$0xff]
          %v628 = vld [vmem:[%s5 + $0x70] sm:$0xff]
          %v629 = vld [vmem:[%s5 + $0x78] sm:$0xff]
          %v630 = vld [vmem:[%s5 + $0x80] sm:$0xff]
          %v631 = vld [vmem:[%s5 + $0x88] sm:$0xff]
          %v632 = vld [vmem:[%s5 + $0x90] sm:$0xff]
          %v633 = vld [vmem:[%s5 + $0x98] sm:$0xff]
          %v634 = vld [vmem:[%s5 + $0xa0] sm:$0xff]
          %v635 = vld [vmem:[%s5 + $0xa8] sm:$0xff]
          %v636 = vld [vmem:[%s5 + $0xb0] sm:$0xff]
          %v637 = vld [vmem:[%s5 + $0xb8] sm:$0xff]
          %v638 = vld [vmem:[%s5 + $0xc0] sm:$0xff]
          %v639 = vld [vmem:[%s5 + $0xc8] sm:$0xff]
          %v640 = vld [vmem:[%s5 + $0xd0] sm:$0xff]
          %v641 = vld [vmem:[%s5 + $0xd8] sm:$0xff]
          %v642 = vld [vmem:[%s5 + $0xe0] sm:$0xff]
          %v643 = vld [vmem:[%s5 + $0xe8] sm:$0xff]
          %v644 = vld [vmem:[%s5 + $0xf0] sm:$0xff]
          %v645 = vld [vmem:[%s5 + $0xf8] sm:$0xff]
          %646 = vmatprep.subr.mxu0 %v615
          %647 = vmatpush1.msra.mxu0 %v614
          %648 = vmatprep.subr.mxu0 %v617
          %649 = vmatpush1.msra.mxu0 %v616
          %650 = vmatprep.subr.mxu0 %v619
          %651 = vmatpush1.msra.mxu0 %v618
          %652 = vmatprep.subr.mxu0 %v621
          %653 = vmatpush1.msra.mxu0 %v620
          %654 = vmatprep.subr.mxu0 %v623
          %655 = vmatpush1.msra.mxu0 %v622
          %656 = vmatprep.subr.mxu0 %v625
          %657 = vmatpush1.msra.mxu0 %v624
          %658 = vmatprep.subr.mxu0 %v627
          %659 = vmatpush1.msra.mxu0 %v626
          %660 = vmatprep.subr.mxu0 %v629
          %661 = vmatpush1.msra.mxu0 %v628
          %662 = vmatprep.subr.mxu0 %v631
          %663 = vmatpush1.msra.mxu0 %v630
          %664 = vmatprep.subr.mxu0 %v633
          %665 = vmatpush1.msra.mxu0 %v632
          %666 = vmatprep.subr.mxu0 %v635
          %667 = vmatpush1.msra.mxu0 %v634
          %668 = vmatprep.subr.mxu0 %v637
          %669 = vmatpush1.msra.mxu0 %v636
          %670 = vmatprep.subr.mxu0 %v639
          %671 = vmatpush1.msra.mxu0 %v638
          %672 = vmatprep.subr.mxu0 %v641
          %673 = vmatpush1.msra.mxu0 %v640
          %674 = vmatprep.subr.mxu0 %v643
          %675 = vmatpush1.msra.mxu0 %v642
          %676 = vmatprep.subr.mxu0 %v645
          %677 = vmatpush1.msra.mxu0 %v644
          %678 = vmatprep.subr.mxu0 0.0
          %679 = vmatpush1.msra.mxu0 0.0
          %680 = vmatprep.subr.mxu0 0.0
          %681 = vmatpush1.msra.mxu0 0.0
          %682 = vmatprep.subr.mxu0 0.0
          %683 = vmatpush1.msra.mxu0 0.0
          %684 = vmatprep.subr.mxu0 0.0
          %685 = vmatpush1.msra.mxu0 0.0
          %686 = vmatprep.subr.mxu0 0.0
          %687 = vmatpush1.msra.mxu0 0.0
          %688 = vmatprep.subr.mxu0 0.0
          %689 = vmatpush1.msra.mxu0 0.0
          %690 = vmatprep.subr.mxu0 0.0
          %691 = vmatpush1.msra.mxu0 0.0
          %692 = vmatprep.subr.mxu0 0.0
          %693 = vmatpush1.msra.mxu0 0.0
          %694 = vmatprep.subr.mxu0 0.0
          %695 = vmatpush1.msra.mxu0 0.0
          %696 = vmatprep.subr.mxu0 0.0
          %697 = vmatpush1.msra.mxu0 0.0
          %698 = vmatprep.subr.mxu0 0.0
          %699 = vmatpush1.msra.mxu0 0.0
          %700 = vmatprep.subr.mxu0 0.0
          %701 = vmatpush1.msra.mxu0 0.0
          %702 = vmatprep.subr.mxu0 0.0
          %703 = vmatpush1.msra.mxu0 0.0
          %704 = vmatprep.subr.mxu0 0.0
          %705 = vmatpush1.msra.mxu0 0.0
          %706 = vmatprep.subr.mxu0 0.0
          %707 = vmatpush1.msra.mxu0 0.0
          %708 = vmatprep.subr.mxu0 0.0
          %709 = vmatpush1.msra.mxu0 0.0
          %710 = vmatprep.mubr.f32.mxu0 0.0
          %711 = vmatmul.mubr.f32.gmra.mrb[0].mxu0 %v613
          %v712 = vpop.f32.mrb[0].mxu0
          %v713 = vadd.f32 0.0, %v712
          %v714 = vpop.f32.mrb[0].mxu0
          %v715 = vadd.f32 0.0, %v714
          %716 = vdwg.mxu0
          %v717 = vld [vmem:[%s3] sm:$0xff]
          %v718 = vld [vmem:[%s3 + $0x8] sm:$0xff]
          %v719 = vld [vmem:[%s3 + $0x10] sm:$0xff]
          %v720 = vld [vmem:[%s3 + $0x18] sm:$0xff]
          %v721 = vld [vmem:[%s3 + $0x20] sm:$0xff]
          %v722 = vld [vmem:[%s3 + $0x28] sm:$0xff]
          %v723 = vld [vmem:[%s3 + $0x30] sm:$0xff]
          %v724 = vld [vmem:[%s3 + $0x38] sm:$0xff]
          %v725 = vld [vmem:[%s501] sm:$0xff]
          %v726 = vld [vmem:[%s501 + $0x8] sm:$0xff]
          %v727 = vld [vmem:[%s501 + $0x10] sm:$0xff]
          %v728 = vld [vmem:[%s501 + $0x18] sm:$0xff]
          %v729 = vld [vmem:[%s501 + $0x20] sm:$0xff]
          %v730 = vld [vmem:[%s501 + $0x28] sm:$0xff]
          %v731 = vld [vmem:[%s501 + $0x30] sm:$0xff]
          %v732 = vld [vmem:[%s501 + $0x38] sm:$0xff]
          %v733 = vld [vmem:[#allocation13] sm:$0xff]
          %v734 = vld [vmem:[#allocation13 + $0x8] sm:$0xff]
          %v735 = vld [vmem:[#allocation13 + $0x10] sm:$0xff]
          %v736 = vld [vmem:[#allocation13 + $0x18] sm:$0xff]
          %v737 = vld [vmem:[#allocation13 + $0x20] sm:$0xff]
          %v738 = vld [vmem:[#allocation13 + $0x28] sm:$0xff]
          %v739 = vld [vmem:[#allocation13 + $0x30] sm:$0xff]
          %v740 = vld [vmem:[#allocation13 + $0x38] sm:$0xff]
          %v741 = vld [vmem:[#allocation13 + $0x40] sm:$0xff]
          %v742 = vld [vmem:[#allocation13 + $0x48] sm:$0xff]
          %v743 = vld [vmem:[#allocation13 + $0x50] sm:$0xff]
          %v744 = vld [vmem:[#allocation13 + $0x58] sm:$0xff]
          %v745 = vld [vmem:[#allocation13 + $0x60] sm:$0xff]
          %v746 = vld [vmem:[#allocation13 + $0x68] sm:$0xff]
          %v747 = vld [vmem:[#allocation13 + $0x70] sm:$0xff]
          %v748 = vld [vmem:[#allocation13 + $0x78] sm:$0xff]
          %v749 = vld [vmem:[#allocation13 + $0x80] sm:$0xff]
          %v750 = vld [vmem:[#allocation13 + $0x88] sm:$0xff]
          %v751 = vld [vmem:[#allocation13 + $0x90] sm:$0xff]
          %v752 = vld [vmem:[#allocation13 + $0x98] sm:$0xff]
          %v753 = vld [vmem:[#allocation13 + $0xa0] sm:$0xff]
          %v754 = vld [vmem:[#allocation13 + $0xa8] sm:$0xff]
          %v755 = vld [vmem:[#allocation13 + $0xb0] sm:$0xff]
          %v756 = vld [vmem:[#allocation13 + $0xb8] sm:$0xff]
          %v757 = vld [vmem:[#allocation13 + $0xc0] sm:$0xff]
          %v758 = vld [vmem:[#allocation13 + $0xc8] sm:$0xff]
          %v759 = vld [vmem:[#allocation13 + $0xd0] sm:$0xff]
          %v760 = vld [vmem:[#allocation13 + $0xd8] sm:$0xff]
          %v761 = vld [vmem:[#allocation13 + $0xe0] sm:$0xff]
          %v762 = vld [vmem:[#allocation13 + $0xe8] sm:$0xff]
          %v763 = vld [vmem:[#allocation13 + $0xf0] sm:$0xff]
          %v764 = vld [vmem:[#allocation13 + $0xf8] sm:$0xff]
          %765 = vmatprep.subr.mxu0 %v734
          %766 = vmatpush1.msra.mxu0 %v733
          %767 = vmatprep.subr.mxu0 %v736
          %768 = vmatpush1.msra.mxu0 %v735
          %769 = vmatprep.subr.mxu0 %v738
          %770 = vmatpush1.msra.mxu0 %v737
          %771 = vmatprep.subr.mxu0 %v740
          %772 = vmatpush1.msra.mxu0 %v739
          %773 = vmatprep.subr.mxu0 %v742
          %774 = vmatpush1.msra.mxu0 %v741
          %775 = vmatprep.subr.mxu0 %v744
          %776 = vmatpush1.msra.mxu0 %v743
          %777 = vmatprep.subr.mxu0 %v746
          %778 = vmatpush1.msra.mxu0 %v745
          %779 = vmatprep.subr.mxu0 %v748
          %780 = vmatpush1.msra.mxu0 %v747
          %781 = vmatprep.subr.mxu0 %v750
          %782 = vmatpush1.msra.mxu0 %v749
          %783 = vmatprep.subr.mxu0 %v752
          %784 = vmatpush1.msra.mxu0 %v751
          %785 = vmatprep.subr.mxu0 %v754
          %786 = vmatpush1.msra.mxu0 %v753
          %787 = vmatprep.subr.mxu0 %v756
          %788 = vmatpush1.msra.mxu0 %v755
          %789 = vmatprep.subr.mxu0 %v758
          %790 = vmatpush1.msra.mxu0 %v757
          %791 = vmatprep.subr.mxu0 %v760
          %792 = vmatpush1.msra.mxu0 %v759
          %793 = vmatprep.subr.mxu0 %v762
          %794 = vmatpush1.msra.mxu0 %v761
          %795 = vmatprep.subr.mxu0 %v764
          %796 = vmatpush1.msra.mxu0 %v763
          %797 = vmatprep.subr.mxu0 0.0
          %798 = vmatpush1.msra.mxu0 0.0
          %799 = vmatprep.subr.mxu0 0.0
          %800 = vmatpush1.msra.mxu0 0.0
          %801 = vmatprep.subr.mxu0 0.0
          %802 = vmatpush1.msra.mxu0 0.0
          %803 = vmatprep.subr.mxu0 0.0
          %804 = vmatpush1.msra.mxu0 0.0
          %805 = vmatprep.subr.mxu0 0.0
          %806 = vmatpush1.msra.mxu0 0.0
          %807 = vmatprep.subr.mxu0 0.0
          %808 = vmatpush1.msra.mxu0 0.0
          %809 = vmatprep.subr.mxu0 0.0
          %810 = vmatpush1.msra.mxu0 0.0
          %811 = vmatprep.subr.mxu0 0.0
          %812 = vmatpush1.msra.mxu0 0.0
          %813 = vmatprep.subr.mxu0 0.0
          %814 = vmatpush1.msra.mxu0 0.0
          %815 = vmatprep.subr.mxu0 0.0
          %816 = vmatpush1.msra.mxu0 0.0
          %817 = vmatprep.subr.mxu0 0.0
          %818 = vmatpush1.msra.mxu0 0.0
          %819 = vmatprep.subr.mxu0 0.0
          %820 = vmatpush1.msra.mxu0 0.0
          %821 = vmatprep.subr.mxu0 0.0
          %822 = vmatpush1.msra.mxu0 0.0
          %823 = vmatprep.subr.mxu0 0.0
          %824 = vmatpush1.msra.mxu0 0.0
          %825 = vmatprep.subr.mxu0 0.0
          %826 = vmatpush1.msra.mxu0 0.0
          %827 = vmatprep.subr.mxu0 0.0
          %828 = vmatpush1.msra.mxu0 0.0
          %829 = vmatprep.mubr.f32.mxu0 0.0
          %830 = vmatmul.mubr.f32.gmra.mrb[0].mxu0 %v725
          %v831 = vpop.f32.mrb[0].mxu0
          %v832 = vadd.f32 0.0, %v831
          %v833 = vpop.f32.mrb[0].mxu0
          %v834 = vadd.f32 0.0, %v833
          %835 = vmatprep.mubr.f32.mxu0 0.0
          %836 = vmatmul.mubr.f32.gmra.mrb[0].mxu0 %v726
          %v837 = vpop.f32.mrb[0].mxu0
          %v838 = vadd.f32 0.0, %v837
          %v839 = vpop.f32.mrb[0].mxu0
          %v840 = vadd.f32 0.0, %v839
          %841 = vmatprep.mubr.f32.mxu0 0.0
          %842 = vmatmul.mubr.f32.gmra.mrb[0].mxu0 %v727
          %v843 = vpop.f32.mrb[0].mxu0
          %v844 = vadd.f32 0.0, %v843
          %v845 = vpop.f32.mrb[0].mxu0
          %v846 = vadd.f32 0.0, %v845
          %847 = vmatprep.mubr.f32.mxu0 0.0
          %848 = vmatmul.mubr.f32.gmra.mrb[0].mxu0 %v728
          %v849 = vpop.f32.mrb[0].mxu0
          %v850 = vadd.f32 0.0, %v849
          %v851 = vpop.f32.mrb[0].mxu0
          %v852 = vadd.f32 0.0, %v851
          %853 = vmatprep.mubr.f32.mxu0 0.0
          %854 = vmatmul.mubr.f32.gmra.mrb[0].mxu0 %v729
          %v855 = vpop.f32.mrb[0].mxu0
          %v856 = vadd.f32 0.0, %v855
          %v857 = vpop.f32.mrb[0].mxu0
          %v858 = vadd.f32 0.0, %v857
          %859 = vmatprep.mubr.f32.mxu0 0.0
          %860 = vmatmul.mubr.f32.gmra.mrb[0].mxu0 %v730
          %v861 = vpop.f32.mrb[0].mxu0
          %v862 = vadd.f32 0.0, %v861
          %v863 = vpop.f32.mrb[0].mxu0
          %v864 = vadd.f32 0.0, %v863
          %865 = vmatprep.mubr.f32.mxu0 0.0
          %866 = vmatmul.mubr.f32.gmra.mrb[0].mxu0 %v731
          %v867 = vpop.f32.mrb[0].mxu0
          %v868 = vadd.f32 0.0, %v867
          %v869 = vpop.f32.mrb[0].mxu0
          %v870 = vadd.f32 0.0, %v869
          %871 = vmatprep.mubr.f32.mxu0 0.0
          %872 = vmatmul.mubr.f32.gmra.mrb[0].mxu0 %v732
          %v873 = vpop.f32.mrb[0].mxu0
          %v874 = vadd.f32 0.0, %v873
          %v875 = vpop.f32.mrb[0].mxu0
          %v876 = vadd.f32 0.0, %v875
          %877 = vdwg.mxu0
          %v878 = vld [vmem:[%s588] sm:$0xff]
          %v879 = vld [vmem:[%s588 + $0x8] sm:$0xff]
          %v880 = vld [vmem:[%s588 + $0x10] sm:$0xff]
          %v881 = vld [vmem:[%s588 + $0x18] sm:$0xff]
          %v882 = vld [vmem:[%s588 + $0x20] sm:$0xff]
          %v883 = vld [vmem:[%s588 + $0x28] sm:$0xff]
          %v884 = vld [vmem:[%s588 + $0x30] sm:$0xff]
          %v885 = vld [vmem:[%s588 + $0x38] sm:$0xff]
          %v886 = vld [vmem:[%s7] sm:$0xff]
          %v887 = vld [vmem:[%s7 + $0x8] sm:$0xff]
          %v888 = vld [vmem:[%s7 + $0x10] sm:$0xff]
          %v889 = vld [vmem:[%s7 + $0x18] sm:$0xff]
          %vm890 = vcmask 130048
          %v892 = vsel %vm890, %v878, 0
          %v895 = vsel %vm890, %v879, 0
          %v898 = vsel %vm890, %v880, 0
          %v901 = vsel %vm890, %v881, 0
          %v904 = vsel %vm890, %v882, 0
          %v907 = vsel %vm890, %v883, 0
          %v910 = vsel %vm890, %v884, 0
          %v913 = vsel %vm890, %v885, 0
          %915 = vmatprep.subr.mxu0 %v887
          %916 = vmatpush1.msra.mxu0 %v886
          %917 = vmatprep.subr.mxu0 %v889
          %918 = vmatpush1.msra.mxu0 %v888
          %919 = vmatprep.subr.mxu0 0.0
          %920 = vmatpush1.msra.mxu0 0.0
          %921 = vmatprep.subr.mxu0 0.0
          %922 = vmatpush1.msra.mxu0 0.0
          %923 = vmatprep.subr.mxu0 0.0
          %924 = vmatpush1.msra.mxu0 0.0
          %925 = vmatprep.subr.mxu0 0.0
          %926 = vmatpush1.msra.mxu0 0.0
          %927 = vmatprep.subr.mxu0 0.0
          %928 = vmatpush1.msra.mxu0 0.0
          %929 = vmatprep.subr.mxu0 0.0
          %930 = vmatpush1.msra.mxu0 0.0
          %931 = vmatprep.subr.mxu0 0.0
          %932 = vmatpush1.msra.mxu0 0.0
          %933 = vmatprep.subr.mxu0 0.0
          %934 = vmatpush1.msra.mxu0 0.0
          %935 = vmatprep.subr.mxu0 0.0
          %936 = vmatpush1.msra.mxu0 0.0
          %937 = vmatprep.subr.mxu0 0.0
          %938 = vmatpush1.msra.mxu0 0.0
          %939 = vmatprep.subr.mxu0 0.0
          %940 = vmatpush1.msra.mxu0 0.0
          %941 = vmatprep.subr.mxu0 0.0
          %942 = vmatpush1.msra.mxu0 0.0
          %943 = vmatprep.subr.mxu0 0.0
          %944 = vmatpush1.msra.mxu0 0.0
          %945 = vmatprep.subr.mxu0 0.0
          %946 = vmatpush1.msra.mxu0 0.0
          %947 = vmatprep.subr.mxu0 0.0
          %948 = vmatpush1.msra.mxu0 0.0
          %949 = vmatprep.subr.mxu0 0.0
          %950 = vmatpush1.msra.mxu0 0.0
          %951 = vmatprep.subr.mxu0 0.0
          %952 = vmatpush1.msra.mxu0 0.0
          %953 = vmatprep.subr.mxu0 0.0
          %954 = vmatpush1.msra.mxu0 0.0
          %955 = vmatprep.subr.mxu0 0.0
          %956 = vmatpush1.msra.mxu0 0.0
          %957 = vmatprep.subr.mxu0 0.0
          %958 = vmatpush1.msra.mxu0 0.0
          %959 = vmatprep.subr.mxu0 0.0
          %960 = vmatpush1.msra.mxu0 0.0
          %961 = vmatprep.subr.mxu0 0.0
          %962 = vmatpush1.msra.mxu0 0.0
          %963 = vmatprep.subr.mxu0 0.0
          %964 = vmatpush1.msra.mxu0 0.0
          %965 = vmatprep.subr.mxu0 0.0
          %966 = vmatpush1.msra.mxu0 0.0
          %967 = vmatprep.subr.mxu0 0.0
          %968 = vmatpush1.msra.mxu0 0.0
          %969 = vmatprep.subr.mxu0 0.0
          %970 = vmatpush1.msra.mxu0 0.0
          %971 = vmatprep.subr.mxu0 0.0
          %972 = vmatpush1.msra.mxu0 0.0
          %973 = vmatprep.subr.mxu0 0.0
          %974 = vmatpush1.msra.mxu0 0.0
          %975 = vmatprep.subr.mxu0 0.0
          %976 = vmatpush1.msra.mxu0 0.0
          %977 = vmatprep.subr.mxu0 0.0
          %978 = vmatpush1.msra.mxu0 0.0
          %979 = vmatprep.mubr.f32.mxu0 0.0
          %980 = vmatmul.mubr.f32.gmra.mrb[0].mxu0 %v892
          %v981 = vpop.f32.mrb[0].mxu0
          %v982 = vadd.f32 0.0, %v981
          %v983 = vpop.f32.mrb[0].mxu0
          %v984 = vadd.f32 0.0, %v983
          %985 = vmatprep.mubr.f32.mxu0 0.0
          %986 = vmatmul.mubr.f32.gmra.mrb[0].mxu0 %v895
          %v987 = vpop.f32.mrb[0].mxu0
          %v988 = vadd.f32 0.0, %v987
          %v989 = vpop.f32.mrb[0].mxu0
          %v990 = vadd.f32 0.0, %v989
          %991 = vmatprep.mubr.f32.mxu0 0.0
          %992 = vmatmul.mubr.f32.gmra.mrb[0].mxu0 %v898
          %v993 = vpop.f32.mrb[0].mxu0
          %v994 = vadd.f32 0.0, %v993
          %v995 = vpop.f32.mrb[0].mxu0
          %v996 = vadd.f32 0.0, %v995
          %997 = vmatprep.mubr.f32.mxu0 0.0
          %998 = vmatmul.mubr.f32.gmra.mrb[0].mxu0 %v901
          %v999 = vpop.f32.mrb[0].mxu0
          %v1000 = vadd.f32 0.0, %v999
          %v1001 = vpop.f32.mrb[0].mxu0
          %v1002 = vadd.f32 0.0, %v1001
          %1003 = vmatprep.mubr.f32.mxu0 0.0
          %1004 = vmatmul.mubr.f32.gmra.mrb[0].mxu0 %v904
          %v1005 = vpop.f32.mrb[0].mxu0
          %v1006 = vadd.f32 0.0, %v1005
          %v1007 = vpop.f32.mrb[0].mxu0
          %v1008 = vadd.f32 0.0, %v1007
          %1009 = vmatprep.mubr.f32.mxu0 0.0
          %1010 = vmatmul.mubr.f32.gmra.mrb[0].mxu0 %v907
          %v1011 = vpop.f32.mrb[0].mxu0
          %v1012 = vadd.f32 0.0, %v1011
          %v1013 = vpop.f32.mrb[0].mxu0
          %v1014 = vadd.f32 0.0, %v1013
          %1015 = vmatprep.mubr.f32.mxu0 0.0
          %1016 = vmatmul.mubr.f32.gmra.mrb[0].mxu0 %v910
          %v1017 = vpop.f32.mrb[0].mxu0
          %v1018 = vadd.f32 0.0, %v1017
          %v1019 = vpop.f32.mrb[0].mxu0
          %v1020 = vadd.f32 0.0, %v1019
          %1021 = vmatprep.mubr.f32.mxu0 0.0
          %1022 = vmatmul.mubr.f32.gmra.mrb[0].mxu0 %v913
          %v1023 = vpop.f32.mrb[0].mxu0
          %v1024 = vadd.f32 0.0, %v1023
          %v1025 = vpop.f32.mrb[0].mxu0
          %v1026 = vadd.f32 0.0, %v1025
          %1027 = vdwg.mxu0
          %vm1028 = vcmask 64512
          %v1030 = vsel %vm1028, %v717, 0
          %v1033 = vsel %vm1028, %v718, 0
          %v1036 = vsel %vm1028, %v719, 0
          %v1039 = vsel %vm1028, %v720, 0
          %v1042 = vsel %vm1028, %v721, 0
          %v1045 = vsel %vm1028, %v722, 0
          %v1048 = vsel %vm1028, %v723, 0
          %v1051 = vsel %vm1028, %v724, 0
          %1053 = vmatprep.subr.mxu0 %v715
          %1054 = vmatpush1.msra.mxu0 %v713
          %1055 = vmatprep.subr.mxu0 0.0
          %1056 = vmatpush1.msra.mxu0 0.0
          %1057 = vmatprep.subr.mxu0 0.0
          %1058 = vmatpush1.msra.mxu0 0.0
          %1059 = vmatprep.subr.mxu0 0.0
          %1060 = vmatpush1.msra.mxu0 0.0
          %1061 = vmatprep.subr.mxu0 0.0
          %1062 = vmatpush1.msra.mxu0 0.0
          %1063 = vmatprep.subr.mxu0 0.0
          %1064 = vmatpush1.msra.mxu0 0.0
          %1065 = vmatprep.subr.mxu0 0.0
          %1066 = vmatpush1.msra.mxu0 0.0
          %1067 = vmatprep.subr.mxu0 0.0
          %1068 = vmatpush1.msra.mxu0 0.0
          %1069 = vmatprep.subr.mxu0 0.0
          %1070 = vmatpush1.msra.mxu0 0.0
          %1071 = vmatprep.subr.mxu0 0.0
          %1072 = vmatpush1.msra.mxu0 0.0
          %1073 = vmatprep.subr.mxu0 0.0
          %1074 = vmatpush1.msra.mxu0 0.0
          %1075 = vmatprep.subr.mxu0 0.0
          %1076 = vmatpush1.msra.mxu0 0.0
          %1077 = vmatprep.subr.mxu0 0.0
          %1078 = vmatpush1.msra.mxu0 0.0
          %1079 = vmatprep.subr.mxu0 0.0
          %1080 = vmatpush1.msra.mxu0 0.0
          %1081 = vmatprep.subr.mxu0 0.0
          %1082 = vmatpush1.msra.mxu0 0.0
          %1083 = vmatprep.subr.mxu0 0.0
          %1084 = vmatpush1.msra.mxu0 0.0
          %1085 = vmatprep.subr.mxu0 0.0
          %1086 = vmatpush1.msra.mxu0 0.0
          %1087 = vmatprep.subr.mxu0 0.0
          %1088 = vmatpush1.msra.mxu0 0.0
          %1089 = vmatprep.subr.mxu0 0.0
          %1090 = vmatpush1.msra.mxu0 0.0
          %1091 = vmatprep.subr.mxu0 0.0
          %1092 = vmatpush1.msra.mxu0 0.0
          %1093 = vmatprep.subr.mxu0 0.0
          %1094 = vmatpush1.msra.mxu0 0.0
          %1095 = vmatprep.subr.mxu0 0.0
          %1096 = vmatpush1.msra.mxu0 0.0
          %1097 = vmatprep.subr.mxu0 0.0
          %1098 = vmatpush1.msra.mxu0 0.0
          %1099 = vmatprep.subr.mxu0 0.0
          %1100 = vmatpush1.msra.mxu0 0.0
          %1101 = vmatprep.subr.mxu0 0.0
          %1102 = vmatpush1.msra.mxu0 0.0
          %1103 = vmatprep.subr.mxu0 0.0
          %1104 = vmatpush1.msra.mxu0 0.0
          %1105 = vmatprep.subr.mxu0 0.0
          %1106 = vmatpush1.msra.mxu0 0.0
          %1107 = vmatprep.subr.mxu0 0.0
          %1108 = vmatpush1.msra.mxu0 0.0
          %1109 = vmatprep.subr.mxu0 0.0
          %1110 = vmatpush1.msra.mxu0 0.0
          %1111 = vmatprep.subr.mxu0 0.0
          %1112 = vmatpush1.msra.mxu0 0.0
          %1113 = vmatprep.subr.mxu0 0.0
          %1114 = vmatpush1.msra.mxu0 0.0
          %1115 = vmatprep.subr.mxu0 0.0
          %1116 = vmatpush1.msra.mxu0 0.0
          %1117 = vmatprep.mubr.f32.mxu0 0.0
          %1118 = vmatmul.mubr.f32.gmra.mrb[0].mxu0 %v1030
          %v1119 = vpop.f32.mrb[0].mxu0
          %v1120 = vadd.f32 %v832, %v1119
          %v1121 = vpop.f32.mrb[0].mxu0
          %v1122 = vadd.f32 %v834, %v1121
          %1123 = vmatprep.mubr.f32.mxu0 0.0
          %1124 = vmatmul.mubr.f32.gmra.mrb[0].mxu0 %v1033
          %v1125 = vpop.f32.mrb[0].mxu0
          %v1126 = vadd.f32 %v838, %v1125
          %v1127 = vpop.f32.mrb[0].mxu0
          %v1128 = vadd.f32 %v840, %v1127
          %1129 = vmatprep.mubr.f32.mxu0 0.0
          %1130 = vmatmul.mubr.f32.gmra.mrb[0].mxu0 %v1036
          %v1131 = vpop.f32.mrb[0].mxu0
          %v1132 = vadd.f32 %v844, %v1131
          %v1133 = vpop.f32.mrb[0].mxu0
          %v1134 = vadd.f32 %v846, %v1133
          %1135 = vmatprep.mubr.f32.mxu0 0.0
          %1136 = vmatmul.mubr.f32.gmra.mrb[0].mxu0 %v1039
          %v1137 = vpop.f32.mrb[0].mxu0
          %v1138 = vadd.f32 %v850, %v1137
          %v1139 = vpop.f32.mrb[0].mxu0
          %v1140 = vadd.f32 %v852, %v1139
          %1141 = vmatprep.mubr.f32.mxu0 0.0
          %1142 = vmatmul.mubr.f32.gmra.mrb[0].mxu0 %v1042
          %v1143 = vpop.f32.mrb[0].mxu0
          %v1144 = vadd.f32 %v856, %v1143
          %v1145 = vpop.f32.mrb[0].mxu0
          %v1146 = vadd.f32 %v858, %v1145
          %1147 = vmatprep.mubr.f32.mxu0 0.0
          %1148 = vmatmul.mubr.f32.gmra.mrb[0].mxu0 %v1045
          %v1149 = vpop.f32.mrb[0].mxu0
          %v1150 = vadd.f32 %v862, %v1149
          %v1151 = vpop.f32.mrb[0].mxu0
          %v1152 = vadd.f32 %v864, %v1151
          %1153 = vmatprep.mubr.f32.mxu0 0.0
          %1154 = vmatmul.mubr.f32.gmra.mrb[0].mxu0 %v1048
          %v1155 = vpop.f32.mrb[0].mxu0
          %v1156 = vadd.f32 %v868, %v1155
          %v1157 = vpop.f32.mrb[0].mxu0
          %v1158 = vadd.f32 %v870, %v1157
          %1159 = vmatprep.mubr.f32.mxu0 0.0
          %1160 = vmatmul.mubr.f32.gmra.mrb[0].mxu0 %v1051
          %v1161 = vpop.f32.mrb[0].mxu0
          %v1162 = vadd.f32 %v874, %v1161
          %v1163 = vpop.f32.mrb[0].mxu0
          %v1164 = vadd.f32 %v876, %v1163
          %1165 = vdwg.mxu0
          %v1166 = vadd.f32 %v1120, %v982
          %v1167 = vadd.f32 %v1122, %v984
          %v1168 = vadd.f32 %v1126, %v988
          %v1169 = vadd.f32 %v1128, %v990
          %v1170 = vadd.f32 %v1132, %v994
          %v1171 = vadd.f32 %v1134, %v996
          %v1172 = vadd.f32 %v1138, %v1000
          %v1173 = vadd.f32 %v1140, %v1002
          %v1174 = vadd.f32 %v1144, %v1006
          %v1175 = vadd.f32 %v1146, %v1008
          %v1176 = vadd.f32 %v1150, %v1012
          %v1177 = vadd.f32 %v1152, %v1014
          %v1178 = vadd.f32 %v1156, %v1018
          %v1179 = vadd.f32 %v1158, %v1020
          %v1180 = vadd.f32 %v1162, %v1024
          %v1181 = vadd.f32 %v1164, %v1026
          %v1182 = vld [vmem:[%s8] sm:$0x3]
          %v1184 = vlaneseq
          %v1185 = vshrl.u32 %v1184, 7
          %v1186 = vsub.s32 0, %v1185
          %v1187 = vrot.slane %v1182, %v1186
          %v1188 = vlaneseq
          %v1189 = vshrl.u32 %v1188, 7
          %v1190 = vsub.s32 1, %v1189
          %v1191 = vrot.slane %v1182, %v1190
          %v1194 = vadd.f32 %v1166, %v1187
          %v1195 = vadd.f32 %v1167, %v1191
          %v1196 = vadd.f32 %v1168, %v1187
          %v1197 = vadd.f32 %v1169, %v1191
          %v1198 = vadd.f32 %v1170, %v1187
          %v1199 = vadd.f32 %v1171, %v1191
          %v1200 = vadd.f32 %v1172, %v1187
          %v1201 = vadd.f32 %v1173, %v1191
          %v1202 = vadd.f32 %v1174, %v1187
          %v1203 = vadd.f32 %v1175, %v1191
          %v1204 = vadd.f32 %v1176, %v1187
          %v1205 = vadd.f32 %v1177, %v1191
          %v1206 = vadd.f32 %v1178, %v1187
          %v1207 = vadd.f32 %v1179, %v1191
          %v1208 = vadd.f32 %v1180, %v1187
          %v1209 = vadd.f32 %v1181, %v1191
          %s1210 = sshra.s32 %s594, 3
          %s1211 = sand.u32 %s594, 7
          %s1212 = smul.u32 %s1210, 2
          %s1213 = smul.addr %s1212, 8
          %s1214 = scalar_lea.vmem [#allocation2], %s1213
          %1215 = vst [vmem:[%s1214] sm:$0xff] %v1194
          %1216 = vst [vmem:[%s1214 + $0x8] sm:$0xff] %v1195
          %1217 = vst [vmem:[%s1214 + $0x10] sm:$0xff] %v1196
          %1218 = vst [vmem:[%s1214 + $0x18] sm:$0xff] %v1197
          %1219 = vst [vmem:[%s1214 + $0x20] sm:$0xff] %v1198
          %1220 = vst [vmem:[%s1214 + $0x28] sm:$0xff] %v1199
          %1221 = vst [vmem:[%s1214 + $0x30] sm:$0xff] %v1200
          %1222 = vst [vmem:[%s1214 + $0x38] sm:$0xff] %v1201
          %1223 = vst [vmem:[%s1214 + $0x40] sm:$0xff] %v1202
          %1224 = vst [vmem:[%s1214 + $0x48] sm:$0xff] %v1203
          %1225 = vst [vmem:[%s1214 + $0x50] sm:$0xff] %v1204
          %1226 = vst [vmem:[%s1214 + $0x58] sm:$0xff] %v1205
          %1227 = vst [vmem:[%s1214 + $0x60] sm:$0xff] %v1206
          %1228 = vst [vmem:[%s1214 + $0x68] sm:$0xff] %v1207
          %1229 = vst [vmem:[%s1214 + $0x70] sm:$0xff] %v1208
          %1230 = vst [vmem:[%s1214 + $0x78] sm:$0xff] %v1209
          %v1231 = vlaneseq
          %v1232 = vshrl.u32 %v1231, 7
          %v1233 = vadd.s32 %v1232, 8
          %v1234 = vadd.s32 %v1232, 16
          %v1235 = vadd.s32 %v1232, 24
          %v1236 = vadd.s32 %v1232, 32
          %v1237 = vadd.s32 %v1232, 40
          %v1238 = vadd.s32 %v1232, 48
          %v1239 = vadd.s32 %v1232, 56
          %v1240 = vstv %s594
          %v1241 = vadd.s32 %v1232, %v1240
          %v1242 = vadd.s32 %v1233, %v1240
          %v1243 = vadd.s32 %v1234, %v1240
          %v1244 = vadd.s32 %v1235, %v1240
          %v1245 = vadd.s32 %v1236, %v1240
          %v1246 = vadd.s32 %v1237, %v1240
          %v1247 = vadd.s32 %v1238, %v1240
          %v1248 = vadd.s32 %v1239, %v1240
          %vm1249 = vcmp.lt.s32.totalorder %v1241, 160
          %vm1250 = vcmp.lt.s32.totalorder %v1242, 160
          %vm1251 = vcmp.lt.s32.totalorder %v1243, 160
          %vm1252 = vcmp.lt.s32.totalorder %v1244, 160
          %vm1253 = vcmp.lt.s32.totalorder %v1245, 160
          %vm1254 = vcmp.lt.s32.totalorder %v1246, 160
          %vm1255 = vcmp.lt.s32.totalorder %v1247, 160
          %vm1256 = vcmp.lt.s32.totalorder %v1248, 160
          %v1257 = vsel %vm1249, 1, 0
          %v1258 = vsel %vm1250, 1, 0
          %v1259 = vsel %vm1251, 1, 0
          %v1260 = vsel %vm1252, 1, 0
          %v1261 = vsel %vm1253, 1, 0
          %v1262 = vsel %vm1254, 1, 0
          %v1263 = vsel %vm1255, 1, 0
          %v1264 = vsel %vm1256, 1, 0
          %vm1265 = vcmp.eq.s32.totalorder %v1257, 1
          %vm1266 = vcmp.eq.s32.totalorder %v1258, 1
          %vm1267 = vcmp.eq.s32.totalorder %v1259, 1
          %vm1268 = vcmp.eq.s32.totalorder %v1260, 1
          %vm1269 = vcmp.eq.s32.totalorder %v1261, 1
          %vm1270 = vcmp.eq.s32.totalorder %v1262, 1
          %vm1271 = vcmp.eq.s32.totalorder %v1263, 1
          %vm1272 = vcmp.eq.s32.totalorder %v1264, 1
          %v1273 = vsel %vm1265, %v1194, 0.0
          %v1274 = vsel %vm1265, %v1195, 0.0
          %v1275 = vsel %vm1266, %v1196, 0.0
          %v1276 = vsel %vm1266, %v1197, 0.0
          %v1277 = vsel %vm1267, %v1198, 0.0
          %v1278 = vsel %vm1267, %v1199, 0.0
          %v1279 = vsel %vm1268, %v1200, 0.0
          %v1280 = vsel %vm1268, %v1201, 0.0
          %v1281 = vsel %vm1269, %v1202, 0.0
          %v1282 = vsel %vm1269, %v1203, 0.0
          %v1283 = vsel %vm1270, %v1204, 0.0
          %v1284 = vsel %vm1270, %v1205, 0.0
          %v1285 = vsel %vm1271, %v1206, 0.0
          %v1286 = vsel %vm1271, %v1207, 0.0
          %v1287 = vsel %vm1272, %v1208, 0.0
          %v1288 = vsel %vm1272, %v1209, 0.0
          %v1289 = vld [vmem:[#allocation4] sm:$0x3]
          %v1290 = vadd.f32 %v1273, %v1275
          %v1291 = vadd.f32 %v1290, %v1277
          %v1292 = vadd.f32 %v1291, %v1279
          %v1293 = vadd.f32 %v1292, %v1281
          %v1294 = vadd.f32 %v1293, %v1283
          %v1295 = vadd.f32 %v1294, %v1285
          %v1296 = vadd.f32 %v1295, %v1287
          %v1297 = vrot.slane %v1296, 4
          %v1298 = vadd.f32 %v1296, %v1297
          %v1299 = vrot.slane %v1298, 2
          %v1300 = vadd.f32 %v1298, %v1299
          %v1301 = vrot.slane %v1300, 1
          %v1302 = vadd.f32 %v1300, %v1301
          %v1303 = vadd.f32 %v1274, %v1276
          %v1304 = vadd.f32 %v1303, %v1278
          %v1305 = vadd.f32 %v1304, %v1280
          %v1306 = vadd.f32 %v1305, %v1282
          %v1307 = vadd.f32 %v1306, %v1284
          %v1308 = vadd.f32 %v1307, %v1286
          %v1309 = vadd.f32 %v1308, %v1288
          %v1310 = vrot.slane %v1309, 4
          %v1311 = vadd.f32 %v1309, %v1310
          %v1312 = vrot.slane %v1311, 2
          %v1313 = vadd.f32 %v1311, %v1312
          %v1314 = vrot.slane %v1313, 1
          %v1315 = vadd.f32 %v1313, %v1314
          %v1318 = vcombine.low %v1302, %v1315
          %v1320 = vunpack.c.l.s4 1966171168
          %v1321 = vunpack.c.0.s8 %v1320
          %v1322 = vlaneseq
          %v1323 = vshrl.u32 %v1322, 7
          %v1324 = vsub.s32 %v1321, %v1323
          %v1325 = vrot.slane %v1318, %v1324
          %v1327 = vunpack.c.l.s4 1966171168
          %v1328 = vunpack.c.0.s8 %v1327
          %v1329 = vlaneseq
          %v1330 = vshrl.u32 %v1329, 7
          %v1331 = vsub.s32 %v1328, %v1330
          %v1332 = vrot.slane %v1325, %v1331
          %v1334 = vadd.f32 %v1289, %v1332
          %v1335 = vlaneseq
          %vm1336 = vcmp.ge.s32.totalorder %v1335, 0
          %vm1337 = vcmp.lt.s32.totalorder %v1335, 256
          %vm1338 = vmand %vm1336, %vm1337
          %1339 = vst.msk [vmem:[#allocation4] sm:$0x3] %vm1338, %v1334
        $region92: #{tpu_custom_call.1} parent=71 // pred_fallthru
          _
        %p1340 = scmp.eq.s32.totalorder %s35, 1
        // Predicated region
        $region93: #{tpu_custom_call.1} parent=71 // pred_check
          %p1341 = pneg %p1340
        $region94: #{tpu_custom_call.1} parent=71 // pred_check_branch
          %1343 = sbr.rel (%p1341) target = $region96
        $region95: #{tpu_custom_call.1} parent=71 // pred_region
          %v1344 = vld [vmem:[#allocation4] sm:$0x3]
          %v1345 = vmul.f32 %v1344, 0.00625
          %v1346 = vlaneseq
          %v1347 = vshrl.u32 %v1346, 7
          %v1348 = vadd.s32 %v1347, 8
          %v1349 = vadd.s32 %v1347, 16
          %v1350 = vadd.s32 %v1347, 24
          %v1351 = vadd.s32 %v1347, 32
          %v1352 = vadd.s32 %v1347, 40
          %v1353 = vadd.s32 %v1347, 48
          %v1354 = vadd.s32 %v1347, 56
          %v1355 = vstv %s594
          %v1356 = vadd.s32 %v1347, %v1355
          %v1357 = vadd.s32 %v1348, %v1355
          %v1358 = vadd.s32 %v1349, %v1355
          %v1359 = vadd.s32 %v1350, %v1355
          %v1360 = vadd.s32 %v1351, %v1355
          %v1361 = vadd.s32 %v1352, %v1355
          %v1362 = vadd.s32 %v1353, %v1355
          %v1363 = vadd.s32 %v1354, %v1355
          %vm1364 = vcmp.lt.s32.totalorder %v1356, 160
          %vm1365 = vcmp.lt.s32.totalorder %v1357, 160
          %vm1366 = vcmp.lt.s32.totalorder %v1358, 160
          %vm1367 = vcmp.lt.s32.totalorder %v1359, 160
          %vm1368 = vcmp.lt.s32.totalorder %v1360, 160
          %vm1369 = vcmp.lt.s32.totalorder %v1361, 160
          %vm1370 = vcmp.lt.s32.totalorder %v1362, 160
          %vm1371 = vcmp.lt.s32.totalorder %v1363, 160
          %s1372 = sshra.s32 %s594, 3
          %s1373 = sand.u32 %s594, 7
          %s1374 = smul.u32 %s1372, 2
          %s1375 = smul.addr %s1374, 8
          %s1376 = scalar_lea.vmem [#allocation2], %s1375
          %v1377 = vld [vmem:[%s1376] sm:$0xff]
          %v1378 = vld [vmem:[%s1376 + $0x8] sm:$0xff]
          %v1379 = vld [vmem:[%s1376 + $0x10] sm:$0xff]
          %v1380 = vld [vmem:[%s1376 + $0x18] sm:$0xff]
          %v1381 = vld [vmem:[%s1376 + $0x20] sm:$0xff]
          %v1382 = vld [vmem:[%s1376 + $0x28] sm:$0xff]
          %v1383 = vld [vmem:[%s1376 + $0x30] sm:$0xff]
          %v1384 = vld [vmem:[%s1376 + $0x38] sm:$0xff]
          %v1385 = vld [vmem:[%s1376 + $0x40] sm:$0xff]
          %v1386 = vld [vmem:[%s1376 + $0x48] sm:$0xff]
          %v1387 = vld [vmem:[%s1376 + $0x50] sm:$0xff]
          %v1388 = vld [vmem:[%s1376 + $0x58] sm:$0xff]
          %v1389 = vld [vmem:[%s1376 + $0x60] sm:$0xff]
          %v1390 = vld [vmem:[%s1376 + $0x68] sm:$0xff]
          %v1391 = vld [vmem:[%s1376 + $0x70] sm:$0xff]
          %v1392 = vld [vmem:[%s1376 + $0x78] sm:$0xff]
          %v1394 = vlaneseq
          %v1395 = vshrl.u32 %v1394, 7
          %v1396 = vsub.s32 0, %v1395
          %v1397 = vrot.slane %v1345, %v1396
          %v1398 = vlaneseq
          %v1399 = vshrl.u32 %v1398, 7
          %v1400 = vsub.s32 1, %v1399
          %v1401 = vrot.slane %v1345, %v1400
          %v1404 = vsub.f32 %v1377, %v1397
          %v1405 = vsub.f32 %v1378, %v1401
          %v1406 = vsub.f32 %v1379, %v1397
          %v1407 = vsub.f32 %v1380, %v1401
          %v1408 = vsub.f32 %v1381, %v1397
          %v1409 = vsub.f32 %v1382, %v1401
          %v1410 = vsub.f32 %v1383, %v1397
          %v1411 = vsub.f32 %v1384, %v1401
          %v1412 = vsub.f32 %v1385, %v1397
          %v1413 = vsub.f32 %v1386, %v1401
          %v1414 = vsub.f32 %v1387, %v1397
          %v1415 = vsub.f32 %v1388, %v1401
          %v1416 = vsub.f32 %v1389, %v1397
          %v1417 = vsub.f32 %v1390, %v1401
          %v1418 = vsub.f32 %v1391, %v1397
          %v1419 = vsub.f32 %v1392, %v1401
          %v1420 = vsel %vm1364, 1, 0
          %v1421 = vsel %vm1365, 1, 0
          %v1422 = vsel %vm1366, 1, 0
          %v1423 = vsel %vm1367, 1, 0
          %v1424 = vsel %vm1368, 1, 0
          %v1425 = vsel %vm1369, 1, 0
          %v1426 = vsel %vm1370, 1, 0
          %v1427 = vsel %vm1371, 1, 0
          %vm1428 = vcmp.eq.s32.totalorder %v1420, 1
          %vm1429 = vcmp.eq.s32.totalorder %v1421, 1
          %vm1430 = vcmp.eq.s32.totalorder %v1422, 1
          %vm1431 = vcmp.eq.s32.totalorder %v1423, 1
          %vm1432 = vcmp.eq.s32.totalorder %v1424, 1
          %vm1433 = vcmp.eq.s32.totalorder %v1425, 1
          %vm1434 = vcmp.eq.s32.totalorder %v1426, 1
          %vm1435 = vcmp.eq.s32.totalorder %v1427, 1
          %v1436 = vsel %vm1428, %v1404, 0.0
          %v1437 = vsel %vm1428, %v1405, 0.0
          %v1438 = vsel %vm1429, %v1406, 0.0
          %v1439 = vsel %vm1429, %v1407, 0.0
          %v1440 = vsel %vm1430, %v1408, 0.0
          %v1441 = vsel %vm1430, %v1409, 0.0
          %v1442 = vsel %vm1431, %v1410, 0.0
          %v1443 = vsel %vm1431, %v1411, 0.0
          %v1444 = vsel %vm1432, %v1412, 0.0
          %v1445 = vsel %vm1432, %v1413, 0.0
          %v1446 = vsel %vm1433, %v1414, 0.0
          %v1447 = vsel %vm1433, %v1415, 0.0
          %v1448 = vsel %vm1434, %v1416, 0.0
          %v1449 = vsel %vm1434, %v1417, 0.0
          %v1450 = vsel %vm1435, %v1418, 0.0
          %v1451 = vsel %vm1435, %v1419, 0.0
          %v1452 = vld [vmem:[#allocation5] sm:$0x3]
          %v1453 = vmul.f32 %v1436, %v1436
          %v1454 = vmul.f32 %v1437, %v1437
          %v1455 = vmul.f32 %v1438, %v1438
          %v1456 = vmul.f32 %v1439, %v1439
          %v1457 = vmul.f32 %v1440, %v1440
          %v1458 = vmul.f32 %v1441, %v1441
          %v1459 = vmul.f32 %v1442, %v1442
          %v1460 = vmul.f32 %v1443, %v1443
          %v1461 = vmul.f32 %v1444, %v1444
          %v1462 = vmul.f32 %v1445, %v1445
          %v1463 = vmul.f32 %v1446, %v1446
          %v1464 = vmul.f32 %v1447, %v1447
          %v1465 = vmul.f32 %v1448, %v1448
          %v1466 = vmul.f32 %v1449, %v1449
          %v1467 = vmul.f32 %v1450, %v1450
          %v1468 = vmul.f32 %v1451, %v1451
          %v1469 = vadd.f32 %v1453, %v1455
          %v1470 = vadd.f32 %v1469, %v1457
          %v1471 = vadd.f32 %v1470, %v1459
          %v1472 = vadd.f32 %v1471, %v1461
          %v1473 = vadd.f32 %v1472, %v1463
          %v1474 = vadd.f32 %v1473, %v1465
          %v1475 = vadd.f32 %v1474, %v1467
          %v1476 = vrot.slane %v1475, 4
          %v1477 = vadd.f32 %v1475, %v1476
          %v1478 = vrot.slane %v1477, 2
          %v1479 = vadd.f32 %v1477, %v1478
          %v1480 = vrot.slane %v1479, 1
          %v1481 = vadd.f32 %v1479, %v1480
          %v1482 = vadd.f32 %v1454, %v1456
          %v1483 = vadd.f32 %v1482, %v1458
          %v1484 = vadd.f32 %v1483, %v1460
          %v1485 = vadd.f32 %v1484, %v1462
          %v1486 = vadd.f32 %v1485, %v1464
          %v1487 = vadd.f32 %v1486, %v1466
          %v1488 = vadd.f32 %v1487, %v1468
          %v1489 = vrot.slane %v1488, 4
          %v1490 = vadd.f32 %v1488, %v1489
          %v1491 = vrot.slane %v1490, 2
          %v1492 = vadd.f32 %v1490, %v1491
          %v1493 = vrot.slane %v1492, 1
          %v1494 = vadd.f32 %v1492, %v1493
          %v1497 = vcombine.low %v1481, %v1494
          %v1499 = vunpack.c.l.s4 1966171168
          %v1500 = vunpack.c.0.s8 %v1499
          %v1501 = vlaneseq
          %v1502 = vshrl.u32 %v1501, 7
          %v1503 = vsub.s32 %v1500, %v1502
          %v1504 = vrot.slane %v1497, %v1503
          %v1506 = vunpack.c.l.s4 1966171168
          %v1507 = vunpack.c.0.s8 %v1506
          %v1508 = vlaneseq
          %v1509 = vshrl.u32 %v1508, 7
          %v1510 = vsub.s32 %v1507, %v1509
          %v1511 = vrot.slane %v1504, %v1510
          %v1513 = vadd.f32 %v1452, %v1511
          %v1514 = vlaneseq
          %vm1515 = vcmp.ge.s32.totalorder %v1514, 0
          %vm1516 = vcmp.lt.s32.totalorder %v1514, 256
          %vm1517 = vmand %vm1515, %vm1516
          %1518 = vst.msk [vmem:[#allocation5] sm:$0x3] %vm1517, %v1513
        $region96: #{tpu_custom_call.1} parent=71 // pred_fallthru
          _
        %p1519 = scmp.eq.s32.totalorder %s35, 2
        // Predicated region
        $region97: #{tpu_custom_call.1} parent=71 // pred_check
          %p1520 = pneg %p1519
        $region98: #{tpu_custom_call.1} parent=71 // pred_check_branch
          %1522 = sbr.rel (%p1520) target = $region100
        $region99: #{tpu_custom_call.1} parent=71 // pred_region
          %v1523 = vld [vmem:[#allocation4] sm:$0x3]
          %v1524 = vmul.f32 %v1523, 0.00625
          %v1525 = vld [vmem:[#allocation5] sm:$0x3]
          %v1526 = vmul.f32 %v1525, 0.00625
          %v1527 = vadd.f32 %v1526, 1e-05
          %v1528 = vrsqrt.pop %v1527
          %s1529 = sshra.s32 %s594, 3
          %s1530 = sand.u32 %s594, 7
          %s1531 = smul.u32 %s1529, 2
          %s1532 = smul.addr %s1531, 8
          %s1533 = scalar_lea.vmem [#allocation2], %s1532
          %v1534 = vld [vmem:[%s1533] sm:$0xff]
          %v1535 = vld [vmem:[%s1533 + $0x8] sm:$0xff]
          %v1536 = vld [vmem:[%s1533 + $0x10] sm:$0xff]
          %v1537 = vld [vmem:[%s1533 + $0x18] sm:$0xff]
          %v1538 = vld [vmem:[%s1533 + $0x20] sm:$0xff]
          %v1539 = vld [vmem:[%s1533 + $0x28] sm:$0xff]
          %v1540 = vld [vmem:[%s1533 + $0x30] sm:$0xff]
          %v1541 = vld [vmem:[%s1533 + $0x38] sm:$0xff]
          %v1542 = vld [vmem:[%s1533 + $0x40] sm:$0xff]
          %v1543 = vld [vmem:[%s1533 + $0x48] sm:$0xff]
          %v1544 = vld [vmem:[%s1533 + $0x50] sm:$0xff]
          %v1545 = vld [vmem:[%s1533 + $0x58] sm:$0xff]
          %v1546 = vld [vmem:[%s1533 + $0x60] sm:$0xff]
          %v1547 = vld [vmem:[%s1533 + $0x68] sm:$0xff]
          %v1548 = vld [vmem:[%s1533 + $0x70] sm:$0xff]
          %v1549 = vld [vmem:[%s1533 + $0x78] sm:$0xff]
          %v1551 = vlaneseq
          %v1552 = vshrl.u32 %v1551, 7
          %v1553 = vsub.s32 0, %v1552
          %v1554 = vrot.slane %v1524, %v1553
          %v1555 = vlaneseq
          %v1556 = vshrl.u32 %v1555, 7
          %v1557 = vsub.s32 1, %v1556
          %v1558 = vrot.slane %v1524, %v1557
          %v1561 = vsub.f32 %v1534, %v1554
          %v1562 = vsub.f32 %v1535, %v1558
          %v1563 = vsub.f32 %v1536, %v1554
          %v1564 = vsub.f32 %v1537, %v1558
          %v1565 = vsub.f32 %v1538, %v1554
          %v1566 = vsub.f32 %v1539, %v1558
          %v1567 = vsub.f32 %v1540, %v1554
          %v1568 = vsub.f32 %v1541, %v1558
          %v1569 = vsub.f32 %v1542, %v1554
          %v1570 = vsub.f32 %v1543, %v1558
          %v1571 = vsub.f32 %v1544, %v1554
          %v1572 = vsub.f32 %v1545, %v1558
          %v1573 = vsub.f32 %v1546, %v1554
          %v1574 = vsub.f32 %v1547, %v1558
          %v1575 = vsub.f32 %v1548, %v1554
          %v1576 = vsub.f32 %v1549, %v1558
          %v1578 = vlaneseq
          %v1579 = vshrl.u32 %v1578, 7
          %v1580 = vsub.s32 0, %v1579
          %v1581 = vrot.slane %v1528, %v1580
          %v1582 = vlaneseq
          %v1583 = vshrl.u32 %v1582, 7
          %v1584 = vsub.s32 1, %v1583
          %v1585 = vrot.slane %v1528, %v1584
          %v1588 = vmul.f32 %v1561, %v1581
          %v1589 = vmul.f32 %v1562, %v1585
          %v1590 = vmul.f32 %v1563, %v1581
          %v1591 = vmul.f32 %v1564, %v1585
          %v1592 = vmul.f32 %v1565, %v1581
          %v1593 = vmul.f32 %v1566, %v1585
          %v1594 = vmul.f32 %v1567, %v1581
          %v1595 = vmul.f32 %v1568, %v1585
          %v1596 = vmul.f32 %v1569, %v1581
          %v1597 = vmul.f32 %v1570, %v1585
          %v1598 = vmul.f32 %v1571, %v1581
          %v1599 = vmul.f32 %v1572, %v1585
          %v1600 = vmul.f32 %v1573, %v1581
          %v1601 = vmul.f32 %v1574, %v1585
          %v1602 = vmul.f32 %v1575, %v1581
          %v1603 = vmul.f32 %v1576, %v1585
          %v1604 = vld [vmem:[%s9] sm:$0x3]
          %v1606 = vlaneseq
          %v1607 = vshrl.u32 %v1606, 7
          %v1608 = vsub.s32 0, %v1607
          %v1609 = vrot.slane %v1604, %v1608
          %v1610 = vlaneseq
          %v1611 = vshrl.u32 %v1610, 7
          %v1612 = vsub.s32 1, %v1611
          %v1613 = vrot.slane %v1604, %v1612
          %v1616 = vmul.f32 %v1588, %v1609
          %v1617 = vmul.f32 %v1589, %v1613
          %v1618 = vmul.f32 %v1590, %v1609
          %v1619 = vmul.f32 %v1591, %v1613
          %v1620 = vmul.f32 %v1592, %v1609
          %v1621 = vmul.f32 %v1593, %v1613
          %v1622 = vmul.f32 %v1594, %v1609
          %v1623 = vmul.f32 %v1595, %v1613
          %v1624 = vmul.f32 %v1596, %v1609
          %v1625 = vmul.f32 %v1597, %v1613
          %v1626 = vmul.f32 %v1598, %v1609
          %v1627 = vmul.f32 %v1599, %v1613
          %v1628 = vmul.f32 %v1600, %v1609
          %v1629 = vmul.f32 %v1601, %v1613
          %v1630 = vmul.f32 %v1602, %v1609
          %v1631 = vmul.f32 %v1603, %v1613
          %v1632 = vld [vmem:[%s10] sm:$0x3]
          %v1634 = vlaneseq
          %v1635 = vshrl.u32 %v1634, 7
          %v1636 = vsub.s32 0, %v1635
          %v1637 = vrot.slane %v1632, %v1636
          %v1638 = vlaneseq
          %v1639 = vshrl.u32 %v1638, 7
          %v1640 = vsub.s32 1, %v1639
          %v1641 = vrot.slane %v1632, %v1640
          %v1644 = vadd.f32 %v1616, %v1637
          %v1645 = vadd.f32 %v1617, %v1641
          %v1646 = vadd.f32 %v1618, %v1637
          %v1647 = vadd.f32 %v1619, %v1641
          %v1648 = vadd.f32 %v1620, %v1637
          %v1649 = vadd.f32 %v1621, %v1641
          %v1650 = vadd.f32 %v1622, %v1637
          %v1651 = vadd.f32 %v1623, %v1641
          %v1652 = vadd.f32 %v1624, %v1637
          %v1653 = vadd.f32 %v1625, %v1641
          %v1654 = vadd.f32 %v1626, %v1637
          %v1655 = vadd.f32 %v1627, %v1641
          %v1656 = vadd.f32 %v1628, %v1637
          %v1657 = vadd.f32 %v1629, %v1641
          %v1658 = vadd.f32 %v1630, %v1637
          %v1659 = vadd.f32 %v1631, %v1641
          %v1660 = vxor.u32 %v1644, 2147483648
          %v1661 = vxor.u32 %v1646, 2147483648
          %v1662 = vxor.u32 %v1648, 2147483648
          %v1663 = vxor.u32 %v1650, 2147483648
          %v1664 = vxor.u32 %v1652, 2147483648
          %v1665 = vxor.u32 %v1654, 2147483648
          %v1666 = vxor.u32 %v1656, 2147483648
          %v1667 = vxor.u32 %v1658, 2147483648
          %v1668 = vmul.f32 %v1660, 1.442695
          %v1669 = vpow.pop %v1668
          %v1670 = vmul.f32 %v1661, 1.442695
          %v1671 = vpow.pop %v1670
          %v1672 = vmul.f32 %v1662, 1.442695
          %v1673 = vpow.pop %v1672
          %v1674 = vmul.f32 %v1663, 1.442695
          %v1675 = vpow.pop %v1674
          %v1676 = vmul.f32 %v1664, 1.442695
          %v1677 = vpow.pop %v1676
          %v1678 = vmul.f32 %v1665, 1.442695
          %v1679 = vpow.pop %v1678
          %v1680 = vmul.f32 %v1666, 1.442695
          %v1681 = vpow.pop %v1680
          %v1682 = vmul.f32 %v1667, 1.442695
          %v1683 = vpow.pop %v1682
          %v1684 = vadd.f32 %v1669, 1.0
          %v1685 = vadd.f32 %v1671, 1.0
          %v1686 = vadd.f32 %v1673, 1.0
          %v1687 = vadd.f32 %v1675, 1.0
          %v1688 = vadd.f32 %v1677, 1.0
          %v1689 = vadd.f32 %v1679, 1.0
          %v1690 = vadd.f32 %v1681, 1.0
          %v1691 = vadd.f32 %v1683, 1.0
          %v1692 = vrcp.pop %v1684
          %v1693 = vmul.f32 1.0, %v1692
          %v1694 = vrcp.pop %v1685
          %v1695 = vmul.f32 1.0, %v1694
          %v1696 = vrcp.pop %v1686
          %v1697 = vmul.f32 1.0, %v1696
          %v1698 = vrcp.pop %v1687
          %v1699 = vmul.f32 1.0, %v1698
          %v1700 = vrcp.pop %v1688
          %v1701 = vmul.f32 1.0, %v1700
          %v1702 = vrcp.pop %v1689
          %v1703 = vmul.f32 1.0, %v1702
          %v1704 = vrcp.pop %v1690
          %v1705 = vmul.f32 1.0, %v1704
          %v1706 = vrcp.pop %v1691
          %v1707 = vmul.f32 1.0, %v1706
          %vm1708 = vcmp.gt.f32.partialorder %v1645, 20.0
          %vm1709 = vcmp.gt.f32.partialorder %v1647, 20.0
          %vm1710 = vcmp.gt.f32.partialorder %v1649, 20.0
          %vm1711 = vcmp.gt.f32.partialorder %v1651, 20.0
          %vm1712 = vcmp.gt.f32.partialorder %v1653, 20.0
          %vm1713 = vcmp.gt.f32.partialorder %v1655, 20.0
          %vm1714 = vcmp.gt.f32.partialorder %v1657, 20.0
          %vm1715 = vcmp.gt.f32.partialorder %v1659, 20.0
          %v1716 = vmin.f32 %v1645, 20.0
          %v1717 = vmin.f32 %v1647, 20.0
          %v1718 = vmin.f32 %v1649, 20.0
          %v1719 = vmin.f32 %v1651, 20.0
          %v1720 = vmin.f32 %v1653, 20.0
          %v1721 = vmin.f32 %v1655, 20.0
          %v1722 = vmin.f32 %v1657, 20.0
          %v1723 = vmin.f32 %v1659, 20.0
          %v1724 = vmul.f32 %v1716, 1.442695
          %v1725 = vpow.pop %v1724
          %v1726 = vmul.f32 %v1717, 1.442695
          %v1727 = vpow.pop %v1726
          %v1728 = vmul.f32 %v1718, 1.442695
          %v1729 = vpow.pop %v1728
          %v1730 = vmul.f32 %v1719, 1.442695
          %v1731 = vpow.pop %v1730
          %v1732 = vmul.f32 %v1720, 1.442695
          %v1733 = vpow.pop %v1732
          %v1734 = vmul.f32 %v1721, 1.442695
          %v1735 = vpow.pop %v1734
          %v1736 = vmul.f32 %v1722, 1.442695
          %v1737 = vpow.pop %v1736
          %v1738 = vmul.f32 %v1723, 1.442695
          %v1739 = vpow.pop %v1738
          %v1740 = vadd.f32 %v1725, 1.0
          %v1741 = vlog2.pop %v1740
          %v1742 = vmul.f32 %v1741, 0.6931472
          %v1743 = vmul.f32 -0.5, %v1725
          %v1744 = vadd.f32 %v1743, 1.0
          %v1745 = vmul.f32 %v1744, %v1725
          %v1746 = vand.u32 2147483647, %v1725
          %vm1747 = vcmp.lt.f32.partialorder %v1746, 0.0004427343
          %v1748 = vsel %vm1747, %v1745, %v1742
          %v1749 = vadd.f32 %v1727, 1.0
          %v1750 = vlog2.pop %v1749
          %v1751 = vmul.f32 %v1750, 0.6931472
          %v1752 = vmul.f32 -0.5, %v1727
          %v1753 = vadd.f32 %v1752, 1.0
          %v1754 = vmul.f32 %v1753, %v1727
          %v1755 = vand.u32 2147483647, %v1727
          %vm1756 = vcmp.lt.f32.partialorder %v1755, 0.0004427343
          %v1757 = vsel %vm1756, %v1754, %v1751
          %v1758 = vadd.f32 %v1729, 1.0
          %v1759 = vlog2.pop %v1758
          %v1760 = vmul.f32 %v1759, 0.6931472
          %v1761 = vmul.f32 -0.5, %v1729
          %v1762 = vadd.f32 %v1761, 1.0
          %v1763 = vmul.f32 %v1762, %v1729
          %v1764 = vand.u32 2147483647, %v1729
          %vm1765 = vcmp.lt.f32.partialorder %v1764, 0.0004427343
          %v1766 = vsel %vm1765, %v1763, %v1760
          %v1767 = vadd.f32 %v1731, 1.0
          %v1768 = vlog2.pop %v1767
          %v1769 = vmul.f32 %v1768, 0.6931472
          %v1770 = vmul.f32 -0.5, %v1731
          %v1771 = vadd.f32 %v1770, 1.0
          %v1772 = vmul.f32 %v1771, %v1731
          %v1773 = vand.u32 2147483647, %v1731
          %vm1774 = vcmp.lt.f32.partialorder %v1773, 0.0004427343
          %v1775 = vsel %vm1774, %v1772, %v1769
          %v1776 = vadd.f32 %v1733, 1.0
          %v1777 = vlog2.pop %v1776
          %v1778 = vmul.f32 %v1777, 0.6931472
          %v1779 = vmul.f32 -0.5, %v1733
          %v1780 = vadd.f32 %v1779, 1.0
          %v1781 = vmul.f32 %v1780, %v1733
          %v1782 = vand.u32 2147483647, %v1733
          %vm1783 = vcmp.lt.f32.partialorder %v1782, 0.0004427343
          %v1784 = vsel %vm1783, %v1781, %v1778
          %v1785 = vadd.f32 %v1735, 1.0
          %v1786 = vlog2.pop %v1785
          %v1787 = vmul.f32 %v1786, 0.6931472
          %v1788 = vmul.f32 -0.5, %v1735
          %v1789 = vadd.f32 %v1788, 1.0
          %v1790 = vmul.f32 %v1789, %v1735
          %v1791 = vand.u32 2147483647, %v1735
          %vm1792 = vcmp.lt.f32.partialorder %v1791, 0.0004427343
          %v1793 = vsel %vm1792, %v1790, %v1787
          %v1794 = vadd.f32 %v1737, 1.0
          %v1795 = vlog2.pop %v1794
          %v1796 = vmul.f32 %v1795, 0.6931472
          %v1797 = vmul.f32 -0.5, %v1737
          %v1798 = vadd.f32 %v1797, 1.0
          %v1799 = vmul.f32 %v1798, %v1737
          %v1800 = vand.u32 2147483647, %v1737
          %vm1801 = vcmp.lt.f32.partialorder %v1800, 0.0004427343
          %v1802 = vsel %vm1801, %v1799, %v1796
          %v1803 = vadd.f32 %v1739, 1.0
          %v1804 = vlog2.pop %v1803
          %v1805 = vmul.f32 %v1804, 0.6931472
          %v1806 = vmul.f32 -0.5, %v1739
          %v1807 = vadd.f32 %v1806, 1.0
          %v1808 = vmul.f32 %v1807, %v1739
          %v1809 = vand.u32 2147483647, %v1739
          %vm1810 = vcmp.lt.f32.partialorder %v1809, 0.0004427343
          %v1811 = vsel %vm1810, %v1808, %v1805
          %v1812 = vsel %vm1708, %v1645, %v1748
          %v1813 = vsel %vm1709, %v1647, %v1757
          %v1814 = vsel %vm1710, %v1649, %v1766
          %v1815 = vsel %vm1711, %v1651, %v1775
          %v1816 = vsel %vm1712, %v1653, %v1784
          %v1817 = vsel %vm1713, %v1655, %v1793
          %v1818 = vsel %vm1714, %v1657, %v1802
          %v1819 = vsel %vm1715, %v1659, %v1811
          %v1820 = vmul.f32 %v1693, %v1812
          %v1821 = vmul.f32 %v1695, %v1813
          %v1822 = vmul.f32 %v1697, %v1814
          %v1823 = vmul.f32 %v1699, %v1815
          %v1824 = vmul.f32 %v1701, %v1816
          %v1825 = vmul.f32 %v1703, %v1817
          %v1826 = vmul.f32 %v1705, %v1818
          %v1827 = vmul.f32 %v1707, %v1819
          %v1828 = vld [vmem:[#allocation11] sm:$0xff]
          %vm1829 = vcmask 523264
          %v1831 = vsel %vm1829, %v1828, 0
          %1833 = vmatprep.subr.mxu0 0.0
          %1834 = vmatpush1.msra.mxu0 %v1820
          %1835 = vmatprep.subr.mxu0 0.0
          %1836 = vmatpush1.msra.mxu0 %v1821
          %1837 = vmatprep.subr.mxu0 0.0
          %1838 = vmatpush1.msra.mxu0 %v1822
          %1839 = vmatprep.subr.mxu0 0.0
          %1840 = vmatpush1.msra.mxu0 %v1823
          %1841 = vmatprep.subr.mxu0 0.0
          %1842 = vmatpush1.msra.mxu0 %v1824
          %1843 = vmatprep.subr.mxu0 0.0
          %1844 = vmatpush1.msra.mxu0 %v1825
          %1845 = vmatprep.subr.mxu0 0.0
          %1846 = vmatpush1.msra.mxu0 %v1826
          %1847 = vmatprep.subr.mxu0 0.0
          %1848 = vmatpush1.msra.mxu0 %v1827
          %1849 = vmatprep.subr.mxu0 0.0
          %1850 = vmatpush1.msra.mxu0 0.0
          %1851 = vmatprep.subr.mxu0 0.0
          %1852 = vmatpush1.msra.mxu0 0.0
          %1853 = vmatprep.subr.mxu0 0.0
          %1854 = vmatpush1.msra.mxu0 0.0
          %1855 = vmatprep.subr.mxu0 0.0
          %1856 = vmatpush1.msra.mxu0 0.0
          %1857 = vmatprep.subr.mxu0 0.0
          %1858 = vmatpush1.msra.mxu0 0.0
          %1859 = vmatprep.subr.mxu0 0.0
          %1860 = vmatpush1.msra.mxu0 0.0
          %1861 = vmatprep.subr.mxu0 0.0
          %1862 = vmatpush1.msra.mxu0 0.0
          %1863 = vmatprep.subr.mxu0 0.0
          %1864 = vmatpush1.msra.mxu0 0.0
          %1865 = vmatprep.subr.mxu0 0.0
          %1866 = vmatpush1.msra.mxu0 0.0
          %1867 = vmatprep.subr.mxu0 0.0
          %1868 = vmatpush1.msra.mxu0 0.0
          %1869 = vmatprep.subr.mxu0 0.0
          %1870 = vmatpush1.msra.mxu0 0.0
          %1871 = vmatprep.subr.mxu0 0.0
          %1872 = vmatpush1.msra.mxu0 0.0
          %1873 = vmatprep.subr.mxu0 0.0
          %1874 = vmatpush1.msra.mxu0 0.0
          %1875 = vmatprep.subr.mxu0 0.0
          %1876 = vmatpush1.msra.mxu0 0.0
          %1877 = vmatprep.subr.mxu0 0.0
          %1878 = vmatpush1.msra.mxu0 0.0
          %1879 = vmatprep.subr.mxu0 0.0
          %1880 = vmatpush1.msra.mxu0 0.0
          %1881 = vmatprep.subr.mxu0 0.0
          %1882 = vmatpush1.msra.mxu0 0.0
          %1883 = vmatprep.subr.mxu0 0.0
          %1884 = vmatpush1.msra.mxu0 0.0
          %1885 = vmatprep.subr.mxu0 0.0
          %1886 = vmatpush1.msra.mxu0 0.0
          %1887 = vmatprep.subr.mxu0 0.0
          %1888 = vmatpush1.msra.mxu0 0.0
          %1889 = vmatprep.subr.mxu0 0.0
          %1890 = vmatpush1.msra.mxu0 0.0
          %1891 = vmatprep.subr.mxu0 0.0
          %1892 = vmatpush1.msra.mxu0 0.0
          %1893 = vmatprep.subr.mxu0 0.0
          %1894 = vmatpush1.msra.mxu0 0.0
          %1895 = vmatprep.subr.mxu0 0.0
          %1896 = vmatpush1.msra.mxu0 0.0
          %1897 = vmatprep.mubr.f32.mxu0 0.0
          %1898 = vmatmul.mubr.f32.gmra.mrb[0].mxu0 %v1831
          %v1899 = vpop.f32.mrb[0].mxu0
          %v1900 = vadd.f32 0.0, %v1899
          %v1901 = vpop.f32.mrb[0].mxu0
          %1902 = vdwg.mxu0
          %v1903 = vlaneseq
          %v1904 = vand.u32 %v1903, 127
          %vm1905 = vcmp.lt.s32.totalorder %v1904, 32
          %v1906 = vsel %vm1905, %v1900, 0.0
          %s1907 = scalar_lea.vmem [#allocation3], %s595
          %1908 = vst [vmem:[%s1907] sm:$0xff] %v1906
          %v1909 = vlaneseq
          %v1910 = vshrl.u32 %v1909, 7
          %v1911 = vstv %s595
          %v1912 = vadd.s32 %v1910, %v1911
          %vm1913 = vcmp.lt.s32.totalorder %v1912, 20
          %v1914 = vsel %vm1913, 1, 0
          %vm1915 = vcmp.eq.s32.totalorder %v1914, 1
          %v1916 = vsel %vm1915, %v1906, 0.0
          %v1917 = vld [vmem:[#allocation6] sm:$0x1]
          %v1918 = vrot.slane %v1916, 4
          %v1919 = vadd.f32 %v1916, %v1918
          %v1920 = vrot.slane %v1919, 2
          %v1921 = vadd.f32 %v1919, %v1920
          %v1922 = vrot.slane %v1921, 1
          %v1923 = vadd.f32 %v1921, %v1922
          %v1924 = vadd.f32 %v1917, %v1923
          %1925 = vst [vmem:[#allocation6] sm:$0x1] %v1924
          %v1926 = vld [vmem:[#allocation7] sm:$0x1]
          %v1927 = vmul.f32 %v1916, %v1916
          %v1928 = vrot.slane %v1927, 4
          %v1929 = vadd.f32 %v1927, %v1928
          %v1930 = vrot.slane %v1929, 2
          %v1931 = vadd.f32 %v1929, %v1930
          %v1932 = vrot.slane %v1931, 1
          %v1933 = vadd.f32 %v1931, %v1932
          %v1934 = vadd.f32 %v1926, %v1933
          %1935 = vst [vmem:[#allocation7] sm:$0x1] %v1934
        $region100: #{tpu_custom_call.1} parent=71 // pred_fallthru
          _
        %p1936 = scmp.eq.s32.totalorder %s35, 3
        // Predicated region
        $region101: #{tpu_custom_call.1} parent=71 // pred_check
          %p1937 = pneg %p1936
        $region102: #{tpu_custom_call.1} parent=71 // pred_check_branch
          %1939 = sbr.rel (%p1937) target = $region104
        $region103: #{tpu_custom_call.1} parent=71 // pred_region
          %v1940 = vld [vmem:[#allocation6] sm:$0x1]
          %v1941 = vmul.f32 %v1940, 0.05
          %v1942 = vld [vmem:[#allocation7] sm:$0x1]
          %v1943 = vmul.f32 %v1942, 0.05
          %v1944 = vmul.f32 %v1941, %v1941
          %v1945 = vsub.f32 %v1943, %v1944
          %v1946 = vmax.f32 %v1945, 0.0
          %v1947 = vadd.f32 %v1946, 1e-05
          %v1948 = vrsqrt.pop %v1947
          %s1949 = scalar_lea.vmem [#allocation3], %s595
          %v1950 = vld [vmem:[%s1949] sm:$0xff]
          %v1952 = vlaneseq
          %v1953 = vshrl.u32 %v1952, 7
          %v1954 = vsub.s32 0, %v1953
          %v1955 = vrot.slane %v1941, %v1954
          %v1957 = vsub.f32 %v1950, %v1955
          %v1959 = vlaneseq
          %v1960 = vshrl.u32 %v1959, 7
          %v1961 = vsub.s32 0, %v1960
          %v1962 = vrot.slane %v1948, %v1961
          %v1964 = vmul.f32 %v1957, %v1962
          %v1965 = vld [vmem:[%s11] sm:$0x1]
          %v1967 = vlaneseq
          %v1968 = vshrl.u32 %v1967, 7
          %v1969 = vsub.s32 0, %v1968
          %v1970 = vrot.slane %v1965, %v1969
          %v1972 = vmul.f32 %v1964, %v1970
          %v1973 = vld [vmem:[%s12] sm:$0x1]
          %v1975 = vlaneseq
          %v1976 = vshrl.u32 %v1975, 7
          %v1977 = vsub.s32 0, %v1976
          %v1978 = vrot.slane %v1973, %v1977
          %v1980 = vadd.f32 %v1972, %v1978
          %v1981 = vld [vmem:[%s574] sm:$0xff]
          %v1982 = vadd.f32 %v1981, %v1980
          %vm1983 = vcmp.gt.f32.partialorder %v1982, 20.0
          %v1984 = vmin.f32 %v1982, 20.0
          %v1985 = vmul.f32 %v1984, 1.442695
          %v1986 = vpow.pop %v1985
          %v1987 = vadd.f32 %v1986, 1.0
          %v1988 = vlog2.pop %v1987
          %v1989 = vmul.f32 %v1988, 0.6931472
          %v1990 = vmul.f32 -0.5, %v1986
          %v1991 = vadd.f32 %v1990, 1.0
          %v1992 = vmul.f32 %v1991, %v1986
          %v1993 = vand.u32 2147483647, %v1986
          %vm1994 = vcmp.lt.f32.partialorder %v1993, 0.0004427343
          %v1995 = vsel %vm1994, %v1992, %v1989
          %v1996 = vsel %vm1983, %v1982, %v1995
          %1997 = vst [vmem:[%s566] sm:$0xff] %v1996
        $region104: #{tpu_custom_call.1} parent=71 // pred_fallthru
          _
        %s1998 = sand.u32 %s359, 1
        %s1999 = scalar_lea.sflag [#allocation10], %s1998
        %s2000 = sand.u32 %s359, 1
        %s2001 = smul.addr %s2000, 8
        %s2002 = scalar_lea.vmem [#allocation14], %s2001
        // Predicated region
        $region105: #{tpu_custom_call.1} parent=71 // pred_check
          %p2003 = pneg %p369
        $region106: #{tpu_custom_call.1} parent=71 // pred_check_branch
          %2005 = sbr.rel (%p2003) target = $region108
        $region107: #{tpu_custom_call.1} parent=71 // pred_region
          %p2006 = scmp.eq.s32.totalorder %s35, 3
          %s2007 = scalar_select %p2006, %s36, 0
          %s2009 = ssub.s32 128, 128
          %2010 = vsyncadd %s1999, %s2009
          %s2011 = smul.addr %s2007, 128
          %s2012 = scalar_lea.hbm %s13, %s2011
          %s2014 = sshll.u32 %s2002, 4
          %s2015 = int_to_ptr.vmem [resolvable:$true] %s2014
          %2017 = dma.vmem_to_hbm [thread:$0]  %s2015, 128, %s2012, %s1999
        $region108: #{tpu_custom_call.1} parent=71 // pred_fallthru
          _
      $region72: #{tpu_custom_call.1} parent=5 // pred_fallthru
        _
      %p2018 = scmp.le.s32.totalorder 2, %s26
      // Predicated region
      $region109: #{tpu_custom_call.1} parent=5 // pred_check
        %p2019 = pneg %p2018
      $region110: #{tpu_custom_call.1} parent=5 // pred_check_branch
        %2021 = sbr.rel (%p2019) target = $region112
      $region111: #{tpu_custom_call.1} parent=5 // pred_region
        %s2022 = ssub.s32 %s26, 2
        // Predicated region
        $region113: #{tpu_custom_call.1} parent=111 // pred_check
          %p2023 = pneg %p375
        $region114: #{tpu_custom_call.1} parent=111 // pred_check_branch
          %2025 = sbr.rel (%p2023) target = $region116
        $region115: #{tpu_custom_call.1} parent=111 // pred_region
          %s2026 = sand.u32 %s360, 1
          %s2027 = scalar_lea.sflag [#allocation10], %s2026
          %s2028 = sand.u32 %s360, 1
          %s2029 = smul.addr %s2028, 8
          %s2030 = scalar_lea.vmem [#allocation14], %s2029
          %2031 = dma.done %s2027, 128
        $region116: #{tpu_custom_call.1} parent=111 // pred_fallthru
          _
      $region112: #{tpu_custom_call.1} parent=5 // pred_fallthru
        _
    $region6: #{tpu_custom_call.1} parent=1 // loop_footer
      %s30 = sadd.s32 1, %s26
    $region7: #{tpu_custom_call.1} parent=1 // loop_footer_branch
      %25 = sbr.rel target = $region3
    $region8: #{tpu_custom_call.1} parent=1 // loop_exit
      _
    %2032 = vsyncpa [#allocation9], 1
    %s2033 = scalar_lea.sflag [#allocation9], 1
    %2034 = vsyncpa %s2033, 1
    %2035 = vsyncpa [#allocation12], 1
    %2036 = vsyncpa [#allocation10], 1
    %s2037 = scalar_lea.sflag [#allocation10], 1
    %2038 = vsyncpa %s2037, 1

// kernel: tpu_custom_call.1
$region0: #{tpu_custom_call.1}
  #allocation0 [shape = 'u32[]', space=smem, size = 0x4, offset = 0x4, fixed_abs, tag = 'smem constant byte address 0x4 - core index']
  #allocation1 [shape = 'u32[144,128]{1,0:T(1,128)}', space=vmem, size = 0x12000, scoped, tag = 'internal scratch']
  #allocation2 [shape = 'f32[192,256]{1,0:T(8,128)}', space=vmem, size = 0x30000, scoped, tag = 'scratch operand']
  #allocation3 [shape = 'f32[24,128]{1,0:T(8,128)}', space=vmem, size = 0x3000, scoped, tag = 'scratch operand']
  #allocation4 [shape = 'f32[1,256]{1,0:T(1,128)}', space=vmem, size = 0x400, scoped, tag = 'scratch operand']
  #allocation5 [shape = 'f32[1,256]{1,0:T(1,128)}', space=vmem, size = 0x400, scoped, tag = 'scratch operand']
  #allocation6 [shape = 'f32[1,128]{1,0:T(1,128)}', space=vmem, size = 0x200, scoped, tag = 'scratch operand']
  #allocation7 [shape = 'f32[1,128]{1,0:T(1,128)}', space=vmem, size = 0x200, scoped, tag = 'scratch operand']
  %s0 = inlined_call_operand.vmem [shape: f32[24,128], index: 0, kind: input, shape index: {}]
  %s1 = inlined_call_operand.hbm [shape: f32[192,128], index: 1, kind: input, shape index: {}]
  %s2 = inlined_call_operand.vmem [shape: f32[192,16], index: 2, kind: input, shape index: {}]
  %s3 = inlined_call_operand.vmem [shape: f32[64,8], index: 3, kind: input, shape index: {}]
  %s4 = inlined_call_operand.hbm [shape: f32[8,64], index: 4, kind: input, shape index: {}]
  %s5 = inlined_call_operand.vmem [shape: f32[128,256], index: 5, kind: input, shape index: {}]
  %s6 = inlined_call_operand.hbm [shape: f32[128,256], index: 6, kind: input, shape index: {}]
  %s7 = inlined_call_operand.vmem [shape: f32[16,256], index: 7, kind: input, shape index: {}]
  %s8 = inlined_call_operand.vmem [shape: f32[1,256], index: 8, kind: input, shape index: {}]
  %s9 = inlined_call_operand.vmem [shape: f32[1,256], index: 9, kind: input, shape index: {}]
  %s10 = inlined_call_operand.vmem [shape: f32[1,256], index: 10, kind: input, shape index: {}]
  %s11 = inlined_call_operand.vmem [shape: f32[1,128], index: 11, kind: input, shape index: {}]
  %s12 = inlined_call_operand.vmem [shape: f32[1,128], index: 12, kind: input, shape index: {}]
  %s13 = inlined_call_operand.hbm [shape: f32[24,128], index: 13, kind: output, shape index: {}]
  %s14 = sld [smem:[#allocation0]]
  $region117: #{tpu_custom_call.1} parent=0
    _
  %s16 = ssub.s32 1, %s14
  %s17 = scalar_select 0, %s16, %s14
  $region1: #{tpu_custom_call.1} parent=0
    #allocation8 [shape = 'u8[65536]{0}', space=vmem, size = 0x10000, scoped, tag = 'input window, operand 1']
    #allocation9 [shape = 's32[2]{0}', space=sflag, size = 0x8, scoped, tag = 'scoped memory for tpu_custom_call.1']
    #allocation10 [shape = 's32[2]{0}', space=sflag, size = 0x8, scoped, tag = 'scoped memory for tpu_custom_call.1']
    #allocation11 [shape = 'u8[4096]{0}', space=vmem, size = 0x1000, scoped, tag = 'input window, operand 4, single buffered']
    #allocation12 [shape = 's32[1]{0}', space=sflag, size = 0x4, scoped, tag = 'scoped memory for tpu_custom_call.1']
    #allocation13 [shape = 'u8[131072]{0}', space=vmem, size = 0x20000, scoped, tag = 'input window, operand 6, single buffered']
    #allocation14 [shape = 'u8[8192]{0}', space=vmem, size = 0x2000, scoped, tag = 'output window, operand 0']
    %18 = vsyncpa [#allocation9], 0
    %s19 = scalar_lea.sflag [#allocation9], 1
    %20 = vsyncpa %s19, 0
    %21 = vsyncpa [#allocation12], 0
    %22 = vsyncpa [#allocation10], 0
    %s23 = scalar_lea.sflag [#allocation10], 1
    %24 = vsyncpa %s23, 0
    loop: start=0, step=1, limit=14
    $region2: #{tpu_custom_call.1} parent=1 // loop_pre_header
      _
    $region3: #{tpu_custom_call.1} parent=1 // loop_header
      %s26 = sphi 0, %s30
      %p27 = scmp.ge.s32.totalorder %s26, 14
      %s33 = sphi 0, %s45
      %s34 = sphi 0, %s41
      %s35 = sphi 0, %s33
      %s36 = sphi 0, %s34
      %s37 = sphi 0, %s35
      %s38 = sphi 0, %s36
      %s56 = sphi 0, %s58
      %s59 = sphi 0, %s56
      %s60 = sphi 0, %s59
      %s76 = sphi 0, %s60
      %s86 = sphi 0, %s88
      %s89 = sphi 0, %s86
      %s90 = sphi 0, %s89
      %s106 = sphi 0, %s90
      %s116 = sphi 0, %s118
      %s119 = sphi 0, %s116
      %s120 = sphi 0, %s119
      %s136 = sphi 0, %s120
      %s140 = sphi 0, %s140
      %s142 = sphi 0, %s140
      %s143 = sphi 0, %s142
      %s157 = sphi 0, %s143
      %s161 = sphi 0, %s161
      %s163 = sphi 0, %s161
      %s164 = sphi 0, %s163
      %s178 = sphi 0, %s164
      %s182 = sphi 0, %s182
      %s184 = sphi 0, %s182
      %s185 = sphi 0, %s184
      %s199 = sphi 0, %s185
      %s203 = sphi 0, %s203
      %s205 = sphi 0, %s203
      %s206 = sphi 0, %s205
      %s220 = sphi 0, %s206
      %s224 = sphi 0, %s224
      %s226 = sphi 0, %s224
      %s227 = sphi 0, %s226
      %s241 = sphi 0, %s227
      %s245 = sphi 0, %s245
      %s247 = sphi 0, %s245
      %s248 = sphi 0, %s247
      %s262 = sphi 0, %s248
      %s266 = sphi 0, %s266
      %s268 = sphi 0, %s266
      %s269 = sphi 0, %s268
      %s283 = sphi 0, %s269
      %s287 = sphi 0, %s287
      %s289 = sphi 0, %s287
      %s290 = sphi 0, %s289
      %s304 = sphi 0, %s290
      %s308 = sphi 0, %s308
      %s310 = sphi 0, %s308
      %s311 = sphi 0, %s310
      %s325 = sphi 0, %s311
      %s329 = sphi 0, %s329
      %s331 = sphi 0, %s329
      %s332 = sphi 0, %s331
      %s346 = sphi 0, %s332
      %s356 = sphi 0, %s358
      %s359 = sphi 0, %s356
      %s360 = sphi 0, %s359
      %s376 = sphi 0, %s360
    $region4: #{tpu_custom_call.1} parent=1 // loop_header_branch
      %29 = sbr.rel (%p27) target = $region8
    $region5: #{tpu_custom_call.1} parent=1 // loop_body
      %s31 = ssub.s32 %s26, 1
      %s32 = ssub.s32 %s26, 2
      %s39 = sadd.s32 1, %s34
      %p40 = scmp.ge.s32.totalorder %s39, 3
      %s41 = scalar_select %p40, 0, %s39
      %s42 = sadd.s32 1, %s33
      %s43 = scalar_select %p40, %s42, %s33
      %p44 = scmp.ge.s32.totalorder %s43, 4
      %s45 = scalar_select %p44, 0, %s43
      %p46 = scmp.eq.s32.totalorder %s33, 0
      %p47 = scmp.eq.s32.totalorder %s33, 3
      %p48 = por %p46, %p47
      %s49 = scalar_select %p48, %s34, 0
      %p50 = scmp.eq.s32.totalorder %s45, 0
      %p51 = scmp.eq.s32.totalorder %s45, 3
      %p52 = por %p50, %p51
      %s53 = scalar_select %p52, %s41, 0
      %s54 = ssub.s32 %s49, %s53
      %p55 = scmp.eq.s32.totalorder %s54, 0
      %s57 = sadd.s32 %s56, 1
      %s58 = scalar_select %p55, %s56, %s57
      %p61 = pneg %p55
      %p62 = scmp.eq.s32.totalorder %s26, 11
      %p63 = por %p61, %p62
      %p64 = scmp.ne.s32.totalorder %s56, %s59
      %p65 = scmp.eq.s32.totalorder %s26, 0
      %p66 = por %p64, %p65
      %p67 = scmp.ne.s32.totalorder %s56, %s59
      %p68 = scmp.eq.s32.totalorder %s31, 11
      %p69 = por %p67, %p68
      %p70 = scmp.ne.s32.totalorder %s59, %s60
      %p71 = scmp.eq.s32.totalorder %s31, 0
      %p72 = por %p70, %p71
      %p73 = scmp.ne.s32.totalorder %s59, %s60
      %p74 = scmp.eq.s32.totalorder %s32, 11
      %p75 = por %p73, %p74
      %p77 = scmp.ne.s32.totalorder %s60, %s76
      %p78 = scmp.eq.s32.totalorder %s32, 0
      %p79 = por %p77, %p78
      %p80 = scmp.eq.s32.totalorder %s33, 0
      %s81 = scalar_select %p80, %s34, 0
      %p82 = scmp.eq.s32.totalorder %s45, 0
      %s83 = scalar_select %p82, %s41, 0
      %s84 = ssub.s32 %s81, %s83
      %p85 = scmp.eq.s32.totalorder %s84, 0
      %s87 = sadd.s32 %s86, 1
      %s88 = scalar_select %p85, %s86, %s87
      %p91 = pneg %p85
      %p92 = scmp.eq.s32.totalorder %s26, 11
      %p93 = por %p91, %p92
      %p94 = scmp.ne.s32.totalorder %s86, %s89
      %p95 = scmp.eq.s32.totalorder %s26, 0
      %p96 = por %p94, %p95
      %p97 = scmp.ne.s32.totalorder %s86, %s89
      %p98 = scmp.eq.s32.totalorder %s31, 11
      %p99 = por %p97, %p98
      %p100 = scmp.ne.s32.totalorder %s89, %s90
      %p101 = scmp.eq.s32.totalorder %s31, 0
      %p102 = por %p100, %p101
      %p103 = scmp.ne.s32.totalorder %s89, %s90
      %p104 = scmp.eq.s32.totalorder %s32, 11
      %p105 = por %p103, %p104
      %p107 = scmp.ne.s32.totalorder %s90, %s106
      %p108 = scmp.eq.s32.totalorder %s32, 0
      %p109 = por %p107, %p108
      %p110 = scmp.eq.s32.totalorder %s33, 0
      %s111 = scalar_select %p110, %s34, 0
      %p112 = scmp.eq.s32.totalorder %s45, 0
      %s113 = scalar_select %p112, %s41, 0
      %s114 = ssub.s32 %s111, %s113
      %p115 = scmp.eq.s32.totalorder %s114, 0
      %s117 = sadd.s32 %s116, 1
      %s118 = scalar_select %p115, %s116, %s117
      %p121 = pneg %p115
      %p122 = scmp.eq.s32.totalorder %s26, 11
      %p123 = por %p121, %p122
      %p124 = scmp.ne.s32.totalorder %s116, %s119
      %p125 = scmp.eq.s32.totalorder %s26, 0
      %p126 = por %p124, %p125
      %p127 = scmp.ne.s32.totalorder %s116, %s119
      %p128 = scmp.eq.s32.totalorder %s31, 11
      %p129 = por %p127, %p128
      %p130 = scmp.ne.s32.totalorder %s119, %s120
      %p131 = scmp.eq.s32.totalorder %s31, 0
      %p132 = por %p130, %p131
      %p133 = scmp.ne.s32.totalorder %s119, %s120
      %p134 = scmp.eq.s32.totalorder %s32, 11
      %p135 = por %p133, %p134
      %p137 = scmp.ne.s32.totalorder %s120, %s136
      %p138 = scmp.eq.s32.totalorder %s32, 0
      %p139 = por %p137, %p138
      %s141 = sadd.s32 %s140, 1
      %p144 = scmp.eq.s32.totalorder %s26, 11
      %p145 = scmp.ne.s32.totalorder %s140, %s142
      %p146 = scmp.eq.s32.totalorder %s26, 0
      %p147 = por %p145, %p146
      %p148 = scmp.ne.s32.totalorder %s140, %s142
      %p149 = scmp.eq.s32.totalorder %s31, 11
      %p150 = por %p148, %p149
      %p151 = scmp.ne.s32.totalorder %s142, %s143
      %p152 = scmp.eq.s32.totalorder %s31, 0
      %p153 = por %p151, %p152
      %p154 = scmp.ne.s32.totalorder %s142, %s143
      %p155 = scmp.eq.s32.totalorder %s32, 11
      %p156 = por %p154, %p155
      %p158 = scmp.ne.s32.totalorder %s143, %s157
      %p159 = scmp.eq.s32.totalorder %s32, 0
      %p160 = por %p158, %p159
      %s162 = sadd.s32 %s161, 1
      %p165 = scmp.eq.s32.totalorder %s26, 11
      %p166 = scmp.ne.s32.totalorder %s161, %s163
      %p167 = scmp.eq.s32.totalorder %s26, 0
      %p168 = por %p166, %p167
      %p169 = scmp.ne.s32.totalorder %s161, %s163
      %p170 = scmp.eq.s32.totalorder %s31, 11
      %p171 = por %p169, %p170
      %p172 = scmp.ne.s32.totalorder %s163, %s164
      %p173 = scmp.eq.s32.totalorder %s31, 0
      %p174 = por %p172, %p173
      %p175 = scmp.ne.s32.totalorder %s163, %s164
      %p176 = scmp.eq.s32.totalorder %s32, 11
      %p177 = por %p175, %p176
      %p179 = scmp.ne.s32.totalorder %s164, %s178
      %p180 = scmp.eq.s32.totalorder %s32, 0
      %p181 = por %p179, %p180
      %s183 = sadd.s32 %s182, 1
      %p186 = scmp.eq.s32.totalorder %s26, 11
      %p187 = scmp.ne.s32.totalorder %s182, %s184
      %p188 = scmp.eq.s32.totalorder %s26, 0
      %p189 = por %p187, %p188
      %p190 = scmp.ne.s32.totalorder %s182, %s184
      %p191 = scmp.eq.s32.totalorder %s31, 11
      %p192 = por %p190, %p191
      %p193 = scmp.ne.s32.totalorder %s184, %s185
      %p194 = scmp.eq.s32.totalorder %s31, 0
      %p195 = por %p193, %p194
      %p196 = scmp.ne.s32.totalorder %s184, %s185
      %p197 = scmp.eq.s32.totalorder %s32, 11
      %p198 = por %p196, %p197
      %p200 = scmp.ne.s32.totalorder %s185, %s199
      %p201 = scmp.eq.s32.totalorder %s32, 0
      %p202 = por %p200, %p201
      %s204 = sadd.s32 %s203, 1
      %p207 = scmp.eq.s32.totalorder %s26, 11
      %p208 = scmp.ne.s32.totalorder %s203, %s205
      %p209 = scmp.eq.s32.totalorder %s26, 0
      %p210 = por %p208, %p209
      %p211 = scmp.ne.s32.totalorder %s203, %s205
      %p212 = scmp.eq.s32.totalorder %s31, 11
      %p213 = por %p211, %p212
      %p214 = scmp.ne.s32.totalorder %s205, %s206
      %p215 = scmp.eq.s32.totalorder %s31, 0
      %p216 = por %p214, %p215
      %p217 = scmp.ne.s32.totalorder %s205, %s206
      %p218 = scmp.eq.s32.totalorder %s32, 11
      %p219 = por %p217, %p218
      %p221 = scmp.ne.s32.totalorder %s206, %s220
      %p222 = scmp.eq.s32.totalorder %s32, 0
      %p223 = por %p221, %p222
      %s225 = sadd.s32 %s224, 1
      %p228 = scmp.eq.s32.totalorder %s26, 11
      %p229 = scmp.ne.s32.totalorder %s224, %s226
      %p230 = scmp.eq.s32.totalorder %s26, 0
      %p231 = por %p229, %p230
      %p232 = scmp.ne.s32.totalorder %s224, %s226
      %p233 = scmp.eq.s32.totalorder %s31, 11
      %p234 = por %p232, %p233
      %p235 = scmp.ne.s32.totalorder %s226, %s227
      %p236 = scmp.eq.s32.totalorder %s31, 0
      %p237 = por %p235, %p236
      %p238 = scmp.ne.s32.totalorder %s226, %s227
      %p239 = scmp.eq.s32.totalorder %s32, 11
      %p240 = por %p238, %p239
      %p242 = scmp.ne.s32.totalorder %s227, %s241
      %p243 = scmp.eq.s32.totalorder %s32, 0
      %p244 = por %p242, %p243
      %s246 = sadd.s32 %s245, 1
      %p249 = scmp.eq.s32.totalorder %s26, 11
      %p250 = scmp.ne.s32.totalorder %s245, %s247
      %p251 = scmp.eq.s32.totalorder %s26, 0
      %p252 = por %p250, %p251
      %p253 = scmp.ne.s32.totalorder %s245, %s247
      %p254 = scmp.eq.s32.totalorder %s31, 11
      %p255 = por %p253, %p254
      %p256 = scmp.ne.s32.totalorder %s247, %s248
      %p257 = scmp.eq.s32.totalorder %s31, 0
      %p258 = por %p256, %p257
      %p259 = scmp.ne.s32.totalorder %s247, %s248
      %p260 = scmp.eq.s32.totalorder %s32, 11
      %p261 = por %p259, %p260
      %p263 = scmp.ne.s32.totalorder %s248, %s262
      %p264 = scmp.eq.s32.totalorder %s32, 0
      %p265 = por %p263, %p264
      %s267 = sadd.s32 %s266, 1
      %p270 = scmp.eq.s32.totalorder %s26, 11
      %p271 = scmp.ne.s32.totalorder %s266, %s268
      %p272 = scmp.eq.s32.totalorder %s26, 0
      %p273 = por %p271, %p272
      %p274 = scmp.ne.s32.totalorder %s266, %s268
      %p275 = scmp.eq.s32.totalorder %s31, 11
      %p276 = por %p274, %p275
      %p277 = scmp.ne.s32.totalorder %s268, %s269
      %p278 = scmp.eq.s32.totalorder %s31, 0
      %p279 = por %p277, %p278
      %p280 = scmp.ne.s32.totalorder %s268, %s269
      %p281 = scmp.eq.s32.totalorder %s32, 11
      %p282 = por %p280, %p281
      %p284 = scmp.ne.s32.totalorder %s269, %s283
      %p285 = scmp.eq.s32.totalorder %s32, 0
      %p286 = por %p284, %p285
      %s288 = sadd.s32 %s287, 1
      %p291 = scmp.eq.s32.totalorder %s26, 11
      %p292 = scmp.ne.s32.totalorder %s287, %s289
      %p293 = scmp.eq.s32.totalorder %s26, 0
      %p294 = por %p292, %p293
      %p295 = scmp.ne.s32.totalorder %s287, %s289
      %p296 = scmp.eq.s32.totalorder %s31, 11
      %p297 = por %p295, %p296
      %p298 = scmp.ne.s32.totalorder %s289, %s290
      %p299 = scmp.eq.s32.totalorder %s31, 0
      %p300 = por %p298, %p299
      %p301 = scmp.ne.s32.totalorder %s289, %s290
      %p302 = scmp.eq.s32.totalorder %s32, 11
      %p303 = por %p301, %p302
      %p305 = scmp.ne.s32.totalorder %s290, %s304
      %p306 = scmp.eq.s32.totalorder %s32, 0
      %p307 = por %p305, %p306
      %s309 = sadd.s32 %s308, 1
      %p312 = scmp.eq.s32.totalorder %s26, 11
      %p313 = scmp.ne.s32.totalorder %s308, %s310
      %p314 = scmp.eq.s32.totalorder %s26, 0
      %p315 = por %p313, %p314
      %p316 = scmp.ne.s32.totalorder %s308, %s310
      %p317 = scmp.eq.s32.totalorder %s31, 11
      %p318 = por %p316, %p317
      %p319 = scmp.ne.s32.totalorder %s310, %s311
      %p320 = scmp.eq.s32.totalorder %s31, 0
      %p321 = por %p319, %p320
      %p322 = scmp.ne.s32.totalorder %s310, %s311
      %p323 = scmp.eq.s32.totalorder %s32, 11
      %p324 = por %p322, %p323
      %p326 = scmp.ne.s32.totalorder %s311, %s325
      %p327 = scmp.eq.s32.totalorder %s32, 0
      %p328 = por %p326, %p327
      %s330 = sadd.s32 %s329, 1
      %p333 = scmp.eq.s32.totalorder %s26, 11
      %p334 = scmp.ne.s32.totalorder %s329, %s331
      %p335 = scmp.eq.s32.totalorder %s26, 0
      %p336 = por %p334, %p335
      %p337 = scmp.ne.s32.totalorder %s329, %s331
      %p338 = scmp.eq.s32.totalorder %s31, 11
      %p339 = por %p337, %p338
      %p340 = scmp.ne.s32.totalorder %s331, %s332
      %p341 = scmp.eq.s32.totalorder %s31, 0
      %p342 = por %p340, %p341
      %p343 = scmp.ne.s32.totalorder %s331, %s332
      %p344 = scmp.eq.s32.totalorder %s32, 11
      %p345 = por %p343, %p344
      %p347 = scmp.ne.s32.totalorder %s332, %s346
      %p348 = scmp.eq.s32.totalorder %s32, 0
      %p349 = por %p347, %p348
      %p350 = scmp.eq.s32.totalorder %s33, 3
      %s351 = scalar_select %p350, %s34, 0
      %p352 = scmp.eq.s32.totalorder %s45, 3
      %s353 = scalar_select %p352, %s41, 0
      %s354 = ssub.s32 %s351, %s353
      %p355 = scmp.eq.s32.totalorder %s354, 0
      %s357 = sadd.s32 %s356, 1
      %s358 = scalar_select %p355, %s356, %s357
      %p361 = pneg %p355
      %p362 = scmp.eq.s32.totalorder %s26, 11
      %p363 = por %p361, %p362
      %p364 = scmp.ne.s32.totalorder %s356, %s359
      %p365 = scmp.eq.s32.totalorder %s26, 0
      %p366 = por %p364, %p365
      %p367 = scmp.ne.s32.totalorder %s356, %s359
      %p368 = scmp.eq.s32.totalorder %s31, 11
      %p369 = por %p367, %p368
      %p370 = scmp.ne.s32.totalorder %s359, %s360
      %p371 = scmp.eq.s32.totalorder %s31, 0
      %p372 = por %p370, %p371
      %p373 = scmp.ne.s32.totalorder %s359, %s360
      %p374 = scmp.eq.s32.totalorder %s32, 11
      %p375 = por %p373, %p374
      %p377 = scmp.ne.s32.totalorder %s360, %s376
      %p378 = scmp.eq.s32.totalorder %s32, 0
      %p379 = por %p377, %p378
      %p380 = scmp.le.s32.totalorder 1, %s26
      %p381 = scmp.lt.s32.totalorder %s26, 13
      %p382 = pnand %p380, %p381
      %p383 = pneg %p382
      // Predicated region
      $region9: #{tpu_custom_call.1} parent=5 // pred_check
        _
      $region10: #{tpu_custom_call.1} parent=5 // pred_check_branch
        %385 = sbr.rel (%p382) target = $region12
      $region11: #{tpu_custom_call.1} parent=5 // pred_region
        %s386 = ssub.s32 %s26, 1
        // Predicated region
        $region13: #{tpu_custom_call.1} parent=11 // pred_check
          %p387 = pneg %p153
        $region14: #{tpu_custom_call.1} parent=11 // pred_check_branch
          %389 = sbr.rel (%p387) target = $region16
        $region15: #{tpu_custom_call.1} parent=11 // pred_region
          _
        $region16: #{tpu_custom_call.1} parent=11 // pred_fallthru
          _
        // Predicated region
        $region17: #{tpu_custom_call.1} parent=11 // pred_check
          %p390 = pneg %p174
        $region18: #{tpu_custom_call.1} parent=11 // pred_check_branch
          %392 = sbr.rel (%p390) target = $region20
        $region19: #{tpu_custom_call.1} parent=11 // pred_region
          %s394 = ssub.s32 128, 128
          %395 = vsyncadd [#allocation12], %s394
          %s397 = sshll.u32 [#allocation11], 4
          %s398 = int_to_ptr.vmem [resolvable:$true] %s397
          %400 = dma.hbm_to_vmem [thread:$0]  %s4, 128, %s398, [#allocation12]
        $region20: #{tpu_custom_call.1} parent=11 // pred_fallthru
          _
        // Predicated region
        $region21: #{tpu_custom_call.1} parent=11 // pred_check
          %p401 = pneg %p195
        $region22: #{tpu_custom_call.1} parent=11 // pred_check_branch
          %403 = sbr.rel (%p401) target = $region24
        $region23: #{tpu_custom_call.1} parent=11 // pred_region
          _
        $region24: #{tpu_custom_call.1} parent=11 // pred_fallthru
          _
        // Predicated region
        $region25: #{tpu_custom_call.1} parent=11 // pred_check
          %p404 = pneg %p216
        $region26: #{tpu_custom_call.1} parent=11 // pred_check_branch
          %406 = sbr.rel (%p404) target = $region28
        $region27: #{tpu_custom_call.1} parent=11 // pred_region
          %s408 = ssub.s32 4096, 4096
          %409 = vsyncadd [#allocation12], %s408
          %s410 = sshll.u32 [#allocation13], 4
          %s411 = int_to_ptr.vmem [resolvable:$true] %s410
          %416 = dma.hbm_to_vmem [thread:$0]  %s6, 4096, %s411, [#allocation12], 256, 256, 16
        $region28: #{tpu_custom_call.1} parent=11 // pred_fallthru
          _
        // Predicated region
        $region29: #{tpu_custom_call.1} parent=11 // pred_check
          %p417 = pneg %p237
        $region30: #{tpu_custom_call.1} parent=11 // pred_check_branch
          %419 = sbr.rel (%p417) target = $region32
        $region31: #{tpu_custom_call.1} parent=11 // pred_region
          _
        $region32: #{tpu_custom_call.1} parent=11 // pred_fallthru
          _
        // Predicated region
        $region33: #{tpu_custom_call.1} parent=11 // pred_check
          %p420 = pneg %p258
        $region34: #{tpu_custom_call.1} parent=11 // pred_check_branch
          %422 = sbr.rel (%p420) target = $region36
        $region35: #{tpu_custom_call.1} parent=11 // pred_region
          _
        $region36: #{tpu_custom_call.1} parent=11 // pred_fallthru
          _
        // Predicated region
        $region37: #{tpu_custom_call.1} parent=11 // pred_check
          %p423 = pneg %p279
        $region38: #{tpu_custom_call.1} parent=11 // pred_check_branch
          %425 = sbr.rel (%p423) target = $region40
        $region39: #{tpu_custom_call.1} parent=11 // pred_region
          _
        $region40: #{tpu_custom_call.1} parent=11 // pred_fallthru
          _
        // Predicated region
        $region41: #{tpu_custom_call.1} parent=11 // pred_check
          %p426 = pneg %p300
        $region42: #{tpu_custom_call.1} parent=11 // pred_check_branch
          %428 = sbr.rel (%p426) target = $region44
        $region43: #{tpu_custom_call.1} parent=11 // pred_region
          _
        $region44: #{tpu_custom_call.1} parent=11 // pred_fallthru
          _
        // Predicated region
        $region45: #{tpu_custom_call.1} parent=11 // pred_check
          %p429 = pneg %p321
        $region46: #{tpu_custom_call.1} parent=11 // pred_check_branch
          %431 = sbr.rel (%p429) target = $region48
        $region47: #{tpu_custom_call.1} parent=11 // pred_region
          _
        $region48: #{tpu_custom_call.1} parent=11 // pred_fallthru
          _
        // Predicated region
        $region49: #{tpu_custom_call.1} parent=11 // pred_check
          %p432 = pneg %p342
        $region50: #{tpu_custom_call.1} parent=11 // pred_check_branch
          %434 = sbr.rel (%p432) target = $region52
        $region51: #{tpu_custom_call.1} parent=11 // pred_region
          _
        $region52: #{tpu_custom_call.1} parent=11 // pred_fallthru
          _
      $region12: #{tpu_custom_call.1} parent=5 // pred_fallthru
        _
      %p435 = scmp.lt.s32.totalorder %s26, 12
      // Predicated region
      $region53: #{tpu_custom_call.1} parent=5 // pred_check
        %p436 = pneg %p435
      $region54: #{tpu_custom_call.1} parent=5 // pred_check_branch
        %438 = sbr.rel (%p436) target = $region56
      $region55: #{tpu_custom_call.1} parent=5 // pred_region
        // Predicated region
        $region57: #{tpu_custom_call.1} parent=55 // pred_check
          %p439 = pneg %p66
        $region58: #{tpu_custom_call.1} parent=55 // pred_check_branch
          %441 = sbr.rel (%p439) target = $region60
        $region59: #{tpu_custom_call.1} parent=55 // pred_region
          %p442 = scmp.eq.s32.totalorder %s33, 0
          %p443 = scmp.eq.s32.totalorder %s33, 3
          %p444 = por %p442, %p443
          %s445 = scalar_select %p444, %s34, 0
          %p446 = scmp.lt.s32.totalorder %s445, 2
          %s447 = scalar_select %p446, %s445, 2
          %s448 = smul.addr %s447, 8
          %s449 = scalar_lea.vmem %s0, %s448
          %p450 = scmp.eq.s32.totalorder %s33, 0
          %p451 = scmp.eq.s32.totalorder %s33, 3
          %p452 = por %p450, %p451
          %s453 = scalar_select %p452, %s34, 0
        $region60: #{tpu_custom_call.1} parent=55 // pred_fallthru
          _
        // Predicated region
        $region61: #{tpu_custom_call.1} parent=55 // pred_check
          %p454 = pneg %p96
        $region62: #{tpu_custom_call.1} parent=55 // pred_check_branch
          %456 = sbr.rel (%p454) target = $region64
        $region63: #{tpu_custom_call.1} parent=55 // pred_region
          %s457 = sand.u32 %s86, 1
          %s458 = scalar_lea.sflag [#allocation9], %s457
          %s459 = sand.u32 %s86, 1
          %s460 = smul.addr %s459, 64
          %s461 = scalar_lea.vmem [#allocation8], %s460
          %p462 = scmp.eq.s32.totalorder %s33, 0
          %s463 = scalar_select %p462, %s34, 0
          %s464 = smul.u32 8, %s463
          %s466 = ssub.s32 1024, 1024
          %467 = vsyncadd %s458, %s466
          %s468 = smul.addr %s464, 128
          %s469 = scalar_lea.hbm %s1, %s468
          %s470 = sshll.u32 %s461, 4
          %s471 = int_to_ptr.vmem [resolvable:$true] %s470
          %476 = dma.hbm_to_vmem [thread:$0]  %s469, 1024, %s471, %s458, 128, 128, 8
        $region64: #{tpu_custom_call.1} parent=55 // pred_fallthru
          _
        // Predicated region
        $region65: #{tpu_custom_call.1} parent=55 // pred_check
          %p477 = pneg %p126
        $region66: #{tpu_custom_call.1} parent=55 // pred_check_branch
          %479 = sbr.rel (%p477) target = $region68
        $region67: #{tpu_custom_call.1} parent=55 // pred_region
          %p480 = scmp.eq.s32.totalorder %s33, 0
          %s481 = scalar_select %p480, %s34, 0
          %s482 = smul.u32 8, %s481
          %p483 = scmp.lt.s32.totalorder %s482, 23
          %s484 = scalar_select %p483, %s482, 23
          %s485 = smul.addr %s484, 8
          %s486 = scalar_lea.vmem %s2, %s485
          %p487 = scmp.eq.s32.totalorder %s33, 0
          %s488 = scalar_select %p487, %s34, 0
          %s489 = smul.u32 8, %s488
        $region68: #{tpu_custom_call.1} parent=55 // pred_fallthru
          _
      $region56: #{tpu_custom_call.1} parent=5 // pred_fallthru
        _
      %p490 = scmp.le.s32.totalorder 1, %s26
      %p491 = scmp.lt.s32.totalorder %s26, 13
      %p492 = pnand %p490, %p491
      %p493 = pneg %p492
      // Predicated region
      $region69: #{tpu_custom_call.1} parent=5 // pred_check
        _
      $region70: #{tpu_custom_call.1} parent=5 // pred_check_branch
        %495 = sbr.rel (%p492) target = $region72
      $region71: #{tpu_custom_call.1} parent=5 // pred_region
        %s496 = ssub.s32 %s26, 1
        %s497 = sand.u32 %s89, 1
        %s498 = scalar_lea.sflag [#allocation9], %s497
        %s499 = sand.u32 %s89, 1
        %s500 = smul.addr %s499, 64
        %s501 = scalar_lea.vmem [#allocation8], %s500
        // Predicated region
        $region73: #{tpu_custom_call.1} parent=71 // pred_check
          %p502 = pneg %p102
        $region74: #{tpu_custom_call.1} parent=71 // pred_check_branch
          %504 = sbr.rel (%p502) target = $region76
        $region75: #{tpu_custom_call.1} parent=71 // pred_region
          %505 = dma.done %s498, 1024
        $region76: #{tpu_custom_call.1} parent=71 // pred_fallthru
          _
        // Predicated region
        $region77: #{tpu_custom_call.1} parent=71 // pred_check
          %p506 = pneg %p174
        $region78: #{tpu_custom_call.1} parent=71 // pred_check_branch
          %508 = sbr.rel (%p506) target = $region80
        $region79: #{tpu_custom_call.1} parent=71 // pred_region
          %509 = dma.done [#allocation12], 128
        $region80: #{tpu_custom_call.1} parent=71 // pred_fallthru
          _
        // Predicated region
        $region81: #{tpu_custom_call.1} parent=71 // pred_check
          %p510 = pneg %p216
        $region82: #{tpu_custom_call.1} parent=71 // pred_check_branch
          %512 = sbr.rel (%p510) target = $region84
        $region83: #{tpu_custom_call.1} parent=71 // pred_region
          %513 = dma.done [#allocation12], 4096
        $region84: #{tpu_custom_call.1} parent=71 // pred_fallthru
          _
        %p514 = scmp.eq.s32.totalorder %s35, 0
        %p515 = scmp.eq.s32.totalorder %s35, 3
        %p516 = por %p514, %p515
        %s517 = scalar_select %p516, %s36, 0
        %p518 = scmp.lt.s32.totalorder %s517, 2
        %s519 = scalar_select %p518, %s517, 2
        %s520 = smul.addr %s519, 8
        %s521 = scalar_lea.vmem %s0, %s520
        %p522 = pneg %p72
        %p523 = pneg %p69
        %s524 = sand.u32 %s89, 1
        %s525 = scalar_lea.sflag [#allocation9], %s524
        %s526 = sand.u32 %s89, 1
        %s527 = smul.addr %s526, 64
        %s528 = scalar_lea.vmem [#allocation8], %s527
        %p529 = pneg %p102
        %p530 = pneg %p99
        %p531 = scmp.eq.s32.totalorder %s35, 0
        %s532 = scalar_select %p531, %s36, 0
        %s533 = smul.u32 8, %s532
        %p534 = scmp.lt.s32.totalorder %s533, 23
        %s535 = scalar_select %p534, %s533, 23
        %s536 = smul.addr %s535, 8
        %s537 = scalar_lea.vmem %s2, %s536
        %p538 = pneg %p132
        %p539 = pneg %p129
        %p540 = pneg %p153
        %p541 = pneg %p150
        %p542 = pneg %p174
        %p543 = pneg %p171
        %p544 = pneg %p195
        %p545 = pneg %p192
        %p546 = pneg %p216
        %p547 = pneg %p213
        %p548 = pneg %p237
        %p549 = pneg %p234
        %p550 = pneg %p258
        %p551 = pneg %p255
        %p552 = pneg %p279
        %p553 = pneg %p276
        %p554 = pneg %p300
        %p555 = pneg %p297
        %p556 = pneg %p321
        %p557 = pneg %p318
        %p558 = pneg %p342
        %p559 = pneg %p339
        %p560 = pneg %p372
        %p561 = pneg %p369
        %s562 = sand.u32 %s359, 1
        %s563 = scalar_lea.sflag [#allocation10], %s562
        %s564 = sand.u32 %s359, 1
        %s565 = smul.addr %s564, 8
        %s566 = scalar_lea.vmem [#allocation14], %s565
        %p567 = scmp.eq.s32.totalorder %s35, 0
        %p568 = scmp.eq.s32.totalorder %s35, 3
        %p569 = por %p567, %p568
        %s570 = scalar_select %p569, %s36, 0
        %p571 = scmp.lt.s32.totalorder %s570, 2
        %s572 = scalar_select %p571, %s570, 2
        %s573 = smul.addr %s572, 8
        %s574 = scalar_lea.vmem %s0, %s573
        %p575 = scmp.eq.s32.totalorder %s35, 0
        %p576 = scmp.eq.s32.totalorder %s35, 3
        %p577 = por %p575, %p576
        %s578 = scalar_select %p577, %s36, 0
        %p579 = scmp.eq.s32.totalorder %s35, 0
        %s580 = scalar_select %p579, %s36, 0
        %s581 = smul.u32 8, %s580
        %p582 = scmp.eq.s32.totalorder %s35, 0
        %s583 = scalar_select %p582, %s36, 0
        %s584 = smul.u32 8, %s583
        %p585 = scmp.lt.s32.totalorder %s584, 23
        %s586 = scalar_select %p585, %s584, 23
        %s587 = smul.addr %s586, 8
        %s588 = scalar_lea.vmem %s2, %s587
        %p589 = scmp.eq.s32.totalorder %s35, 0
        %s590 = scalar_select %p589, %s36, 0
        %s591 = smul.u32 8, %s590
        %p592 = scmp.eq.s32.totalorder %s35, 3
        %s593 = scalar_select %p592, %s36, 0
        %s594 = smul.u32 %s36, 64
        %s595 = smul.u32 %s36, 8
        %p596 = scmp.eq.s32.totalorder %s35, 0
        %p597 = scmp.eq.s32.totalorder %s36, 0
        %p598 = pnand %p596, %p597
        %p599 = pneg %p598
        // Predicated region
        $region85: #{tpu_custom_call.1} parent=71 // pred_check
          _
        $region86: #{tpu_custom_call.1} parent=71 // pred_check_branch
          %601 = sbr.rel (%p598) target = $region88
        $region87: #{tpu_custom_call.1} parent=71 // pred_region
          %v602 = vlaneseq
          %vm603 = vcmp.ge.s32.totalorder %v602, 0
          %vm604 = vcmp.lt.s32.totalorder %v602, 256
          %vm605 = vmand %vm603, %vm604
          %606 = vst.msk [vmem:[#allocation4] sm:$0x3] %vm605, 0.0
          %607 = vst.msk [vmem:[#allocation5] sm:$0x3] %vm605, 0.0
          %608 = vst [vmem:[#allocation6] sm:$0x1] 0.0
          %609 = vst [vmem:[#allocation7] sm:$0x1] 0.0
        $region88: #{tpu_custom_call.1} parent=71 // pred_fallthru
          _
        // Predicated region
        $region89: #{tpu_custom_call.1} parent=71 // pred_check
          %p610 = pneg %p596
        $region90: #{tpu_custom_call.1} parent=71 // pred_check_branch
          %612 = sbr.rel (%p610) target = $region92
        $region91: #{tpu_custom_call.1} parent=71 // pred_region
          %v613 = vld [vmem:[%s574] sm:$0xff]
          %v614 = vld [vmem:[%s5] sm:$0xff]
          %v615 = vld [vmem:[%s5 + $0x8] sm:$0xff]
          %v616 = vld [vmem:[%s5 + $0x10] sm:$0xff]
          %v617 = vld [vmem:[%s5 + $0x18] sm:$0xff]
          %v618 = vld [vmem:[%s5 + $0x20] sm:$0xff]
          %v619 = vld [vmem:[%s5 + $0x28] sm:$0xff]
          %v620 = vld [vmem:[%s5 + $0x30] sm:$0xff]
          %v621 = vld [vmem:[%s5 + $0x38] sm:$0xff]
          %v622 = vld [vmem:[%s5 + $0x40] sm:$0xff]
          %v623 = vld [vmem:[%s5 + $0x48] sm:$0xff]
          %v624 = vld [vmem:[%s5 + $0x50] sm:$0xff]
          %v625 = vld [vmem:[%s5 + $0x58] sm:$0xff]
          %v626 = vld [vmem:[%s5 + $0x60] sm:$0xff]
          %v627 = vld [vmem:[%s5 + $0x68] sm:$0xff]
          %v628 = vld [vmem:[%s5 + $0x70] sm:$0xff]
          %v629 = vld [vmem:[%s5 + $0x78] sm:$0xff]
          %v630 = vld [vmem:[%s5 + $0x80] sm:$0xff]
          %v631 = vld [vmem:[%s5 + $0x88] sm:$0xff]
          %v632 = vld [vmem:[%s5 + $0x90] sm:$0xff]
          %v633 = vld [vmem:[%s5 + $0x98] sm:$0xff]
          %v634 = vld [vmem:[%s5 + $0xa0] sm:$0xff]
          %v635 = vld [vmem:[%s5 + $0xa8] sm:$0xff]
          %v636 = vld [vmem:[%s5 + $0xb0] sm:$0xff]
          %v637 = vld [vmem:[%s5 + $0xb8] sm:$0xff]
          %v638 = vld [vmem:[%s5 + $0xc0] sm:$0xff]
          %v639 = vld [vmem:[%s5 + $0xc8] sm:$0xff]
          %v640 = vld [vmem:[%s5 + $0xd0] sm:$0xff]
          %v641 = vld [vmem:[%s5 + $0xd8] sm:$0xff]
          %v642 = vld [vmem:[%s5 + $0xe0] sm:$0xff]
          %v643 = vld [vmem:[%s5 + $0xe8] sm:$0xff]
          %v644 = vld [vmem:[%s5 + $0xf0] sm:$0xff]
          %v645 = vld [vmem:[%s5 + $0xf8] sm:$0xff]
          %646 = vmatprep.subr.mxu0 %v615
          %647 = vmatpush1.msra.mxu0 %v614
          %648 = vmatprep.subr.mxu0 %v617
          %649 = vmatpush1.msra.mxu0 %v616
          %650 = vmatprep.subr.mxu0 %v619
          %651 = vmatpush1.msra.mxu0 %v618
          %652 = vmatprep.subr.mxu0 %v621
          %653 = vmatpush1.msra.mxu0 %v620
          %654 = vmatprep.subr.mxu0 %v623
          %655 = vmatpush1.msra.mxu0 %v622
          %656 = vmatprep.subr.mxu0 %v625
          %657 = vmatpush1.msra.mxu0 %v624
          %658 = vmatprep.subr.mxu0 %v627
          %659 = vmatpush1.msra.mxu0 %v626
          %660 = vmatprep.subr.mxu0 %v629
          %661 = vmatpush1.msra.mxu0 %v628
          %662 = vmatprep.subr.mxu0 %v631
          %663 = vmatpush1.msra.mxu0 %v630
          %664 = vmatprep.subr.mxu0 %v633
          %665 = vmatpush1.msra.mxu0 %v632
          %666 = vmatprep.subr.mxu0 %v635
          %667 = vmatpush1.msra.mxu0 %v634
          %668 = vmatprep.subr.mxu0 %v637
          %669 = vmatpush1.msra.mxu0 %v636
          %670 = vmatprep.subr.mxu0 %v639
          %671 = vmatpush1.msra.mxu0 %v638
          %672 = vmatprep.subr.mxu0 %v641
          %673 = vmatpush1.msra.mxu0 %v640
          %674 = vmatprep.subr.mxu0 %v643
          %675 = vmatpush1.msra.mxu0 %v642
          %676 = vmatprep.subr.mxu0 %v645
          %677 = vmatpush1.msra.mxu0 %v644
          %678 = vmatprep.subr.mxu0 0.0
          %679 = vmatpush1.msra.mxu0 0.0
          %680 = vmatprep.subr.mxu0 0.0
          %681 = vmatpush1.msra.mxu0 0.0
          %682 = vmatprep.subr.mxu0 0.0
          %683 = vmatpush1.msra.mxu0 0.0
          %684 = vmatprep.subr.mxu0 0.0
          %685 = vmatpush1.msra.mxu0 0.0
          %686 = vmatprep.subr.mxu0 0.0
          %687 = vmatpush1.msra.mxu0 0.0
          %688 = vmatprep.subr.mxu0 0.0
          %689 = vmatpush1.msra.mxu0 0.0
          %690 = vmatprep.subr.mxu0 0.0
          %691 = vmatpush1.msra.mxu0 0.0
          %692 = vmatprep.subr.mxu0 0.0
          %693 = vmatpush1.msra.mxu0 0.0
          %694 = vmatprep.subr.mxu0 0.0
          %695 = vmatpush1.msra.mxu0 0.0
          %696 = vmatprep.subr.mxu0 0.0
          %697 = vmatpush1.msra.mxu0 0.0
          %698 = vmatprep.subr.mxu0 0.0
          %699 = vmatpush1.msra.mxu0 0.0
          %700 = vmatprep.subr.mxu0 0.0
          %701 = vmatpush1.msra.mxu0 0.0
          %702 = vmatprep.subr.mxu0 0.0
          %703 = vmatpush1.msra.mxu0 0.0
          %704 = vmatprep.subr.mxu0 0.0
          %705 = vmatpush1.msra.mxu0 0.0
          %706 = vmatprep.subr.mxu0 0.0
          %707 = vmatpush1.msra.mxu0 0.0
          %708 = vmatprep.subr.mxu0 0.0
          %709 = vmatpush1.msra.mxu0 0.0
          %710 = vmatprep.mubr.f32.mxu0 0.0
          %711 = vmatmul.mubr.f32.gmra.mrb[0].mxu0 %v613
          %v712 = vpop.f32.mrb[0].mxu0
          %v713 = vadd.f32 0.0, %v712
          %v714 = vpop.f32.mrb[0].mxu0
          %v715 = vadd.f32 0.0, %v714
          %716 = vdwg.mxu0
          %v717 = vld [vmem:[%s3] sm:$0xff]
          %v718 = vld [vmem:[%s3 + $0x8] sm:$0xff]
          %v719 = vld [vmem:[%s3 + $0x10] sm:$0xff]
          %v720 = vld [vmem:[%s3 + $0x18] sm:$0xff]
          %v721 = vld [vmem:[%s3 + $0x20] sm:$0xff]
          %v722 = vld [vmem:[%s3 + $0x28] sm:$0xff]
          %v723 = vld [vmem:[%s3 + $0x30] sm:$0xff]
          %v724 = vld [vmem:[%s3 + $0x38] sm:$0xff]
          %v725 = vld [vmem:[%s501] sm:$0xff]
          %v726 = vld [vmem:[%s501 + $0x8] sm:$0xff]
          %v727 = vld [vmem:[%s501 + $0x10] sm:$0xff]
          %v728 = vld [vmem:[%s501 + $0x18] sm:$0xff]
          %v729 = vld [vmem:[%s501 + $0x20] sm:$0xff]
          %v730 = vld [vmem:[%s501 + $0x28] sm:$0xff]
          %v731 = vld [vmem:[%s501 + $0x30] sm:$0xff]
          %v732 = vld [vmem:[%s501 + $0x38] sm:$0xff]
          %v733 = vld [vmem:[#allocation13] sm:$0xff]
          %v734 = vld [vmem:[#allocation13 + $0x8] sm:$0xff]
          %v735 = vld [vmem:[#allocation13 + $0x10] sm:$0xff]
          %v736 = vld [vmem:[#allocation13 + $0x18] sm:$0xff]
          %v737 = vld [vmem:[#allocation13 + $0x20] sm:$0xff]
          %v738 = vld [vmem:[#allocation13 + $0x28] sm:$0xff]
          %v739 = vld [vmem:[#allocation13 + $0x30] sm:$0xff]
          %v740 = vld [vmem:[#allocation13 + $0x38] sm:$0xff]
          %v741 = vld [vmem:[#allocation13 + $0x40] sm:$0xff]
          %v742 = vld [vmem:[#allocation13 + $0x48] sm:$0xff]
          %v743 = vld [vmem:[#allocation13 + $0x50] sm:$0xff]
          %v744 = vld [vmem:[#allocation13 + $0x58] sm:$0xff]
          %v745 = vld [vmem:[#allocation13 + $0x60] sm:$0xff]
          %v746 = vld [vmem:[#allocation13 + $0x68] sm:$0xff]
          %v747 = vld [vmem:[#allocation13 + $0x70] sm:$0xff]
          %v748 = vld [vmem:[#allocation13 + $0x78] sm:$0xff]
          %v749 = vld [vmem:[#allocation13 + $0x80] sm:$0xff]
          %v750 = vld [vmem:[#allocation13 + $0x88] sm:$0xff]
          %v751 = vld [vmem:[#allocation13 + $0x90] sm:$0xff]
          %v752 = vld [vmem:[#allocation13 + $0x98] sm:$0xff]
          %v753 = vld [vmem:[#allocation13 + $0xa0] sm:$0xff]
          %v754 = vld [vmem:[#allocation13 + $0xa8] sm:$0xff]
          %v755 = vld [vmem:[#allocation13 + $0xb0] sm:$0xff]
          %v756 = vld [vmem:[#allocation13 + $0xb8] sm:$0xff]
          %v757 = vld [vmem:[#allocation13 + $0xc0] sm:$0xff]
          %v758 = vld [vmem:[#allocation13 + $0xc8] sm:$0xff]
          %v759 = vld [vmem:[#allocation13 + $0xd0] sm:$0xff]
          %v760 = vld [vmem:[#allocation13 + $0xd8] sm:$0xff]
          %v761 = vld [vmem:[#allocation13 + $0xe0] sm:$0xff]
          %v762 = vld [vmem:[#allocation13 + $0xe8] sm:$0xff]
          %v763 = vld [vmem:[#allocation13 + $0xf0] sm:$0xff]
          %v764 = vld [vmem:[#allocation13 + $0xf8] sm:$0xff]
          %765 = vmatprep.subr.mxu0 %v734
          %766 = vmatpush1.msra.mxu0 %v733
          %767 = vmatprep.subr.mxu0 %v736
          %768 = vmatpush1.msra.mxu0 %v735
          %769 = vmatprep.subr.mxu0 %v738
          %770 = vmatpush1.msra.mxu0 %v737
          %771 = vmatprep.subr.mxu0 %v740
          %772 = vmatpush1.msra.mxu0 %v739
          %773 = vmatprep.subr.mxu0 %v742
          %774 = vmatpush1.msra.mxu0 %v741
          %775 = vmatprep.subr.mxu0 %v744
          %776 = vmatpush1.msra.mxu0 %v743
          %777 = vmatprep.subr.mxu0 %v746
          %778 = vmatpush1.msra.mxu0 %v745
          %779 = vmatprep.subr.mxu0 %v748
          %780 = vmatpush1.msra.mxu0 %v747
          %781 = vmatprep.subr.mxu0 %v750
          %782 = vmatpush1.msra.mxu0 %v749
          %783 = vmatprep.subr.mxu0 %v752
          %784 = vmatpush1.msra.mxu0 %v751
          %785 = vmatprep.subr.mxu0 %v754
          %786 = vmatpush1.msra.mxu0 %v753
          %787 = vmatprep.subr.mxu0 %v756
          %788 = vmatpush1.msra.mxu0 %v755
          %789 = vmatprep.subr.mxu0 %v758
          %790 = vmatpush1.msra.mxu0 %v757
          %791 = vmatprep.subr.mxu0 %v760
          %792 = vmatpush1.msra.mxu0 %v759
          %793 = vmatprep.subr.mxu0 %v762
          %794 = vmatpush1.msra.mxu0 %v761
          %795 = vmatprep.subr.mxu0 %v764
          %796 = vmatpush1.msra.mxu0 %v763
          %797 = vmatprep.subr.mxu0 0.0
          %798 = vmatpush1.msra.mxu0 0.0
          %799 = vmatprep.subr.mxu0 0.0
          %800 = vmatpush1.msra.mxu0 0.0
          %801 = vmatprep.subr.mxu0 0.0
          %802 = vmatpush1.msra.mxu0 0.0
          %803 = vmatprep.subr.mxu0 0.0
          %804 = vmatpush1.msra.mxu0 0.0
          %805 = vmatprep.subr.mxu0 0.0
          %806 = vmatpush1.msra.mxu0 0.0
          %807 = vmatprep.subr.mxu0 0.0
          %808 = vmatpush1.msra.mxu0 0.0
          %809 = vmatprep.subr.mxu0 0.0
          %810 = vmatpush1.msra.mxu0 0.0
          %811 = vmatprep.subr.mxu0 0.0
          %812 = vmatpush1.msra.mxu0 0.0
          %813 = vmatprep.subr.mxu0 0.0
          %814 = vmatpush1.msra.mxu0 0.0
          %815 = vmatprep.subr.mxu0 0.0
          %816 = vmatpush1.msra.mxu0 0.0
          %817 = vmatprep.subr.mxu0 0.0
          %818 = vmatpush1.msra.mxu0 0.0
          %819 = vmatprep.subr.mxu0 0.0
          %820 = vmatpush1.msra.mxu0 0.0
          %821 = vmatprep.subr.mxu0 0.0
          %822 = vmatpush1.msra.mxu0 0.0
          %823 = vmatprep.subr.mxu0 0.0
          %824 = vmatpush1.msra.mxu0 0.0
          %825 = vmatprep.subr.mxu0 0.0
          %826 = vmatpush1.msra.mxu0 0.0
          %827 = vmatprep.subr.mxu0 0.0
          %828 = vmatpush1.msra.mxu0 0.0
          %829 = vmatprep.mubr.f32.mxu0 0.0
          %830 = vmatmul.mubr.f32.gmra.mrb[0].mxu0 %v725
          %v831 = vpop.f32.mrb[0].mxu0
          %v832 = vadd.f32 0.0, %v831
          %v833 = vpop.f32.mrb[0].mxu0
          %v834 = vadd.f32 0.0, %v833
          %835 = vmatprep.mubr.f32.mxu0 0.0
          %836 = vmatmul.mubr.f32.gmra.mrb[0].mxu0 %v726
          %v837 = vpop.f32.mrb[0].mxu0
          %v838 = vadd.f32 0.0, %v837
          %v839 = vpop.f32.mrb[0].mxu0
          %v840 = vadd.f32 0.0, %v839
          %841 = vmatprep.mubr.f32.mxu0 0.0
          %842 = vmatmul.mubr.f32.gmra.mrb[0].mxu0 %v727
          %v843 = vpop.f32.mrb[0].mxu0
          %v844 = vadd.f32 0.0, %v843
          %v845 = vpop.f32.mrb[0].mxu0
          %v846 = vadd.f32 0.0, %v845
          %847 = vmatprep.mubr.f32.mxu0 0.0
          %848 = vmatmul.mubr.f32.gmra.mrb[0].mxu0 %v728
          %v849 = vpop.f32.mrb[0].mxu0
          %v850 = vadd.f32 0.0, %v849
          %v851 = vpop.f32.mrb[0].mxu0
          %v852 = vadd.f32 0.0, %v851
          %853 = vmatprep.mubr.f32.mxu0 0.0
          %854 = vmatmul.mubr.f32.gmra.mrb[0].mxu0 %v729
          %v855 = vpop.f32.mrb[0].mxu0
          %v856 = vadd.f32 0.0, %v855
          %v857 = vpop.f32.mrb[0].mxu0
          %v858 = vadd.f32 0.0, %v857
          %859 = vmatprep.mubr.f32.mxu0 0.0
          %860 = vmatmul.mubr.f32.gmra.mrb[0].mxu0 %v730
          %v861 = vpop.f32.mrb[0].mxu0
          %v862 = vadd.f32 0.0, %v861
          %v863 = vpop.f32.mrb[0].mxu0
          %v864 = vadd.f32 0.0, %v863
          %865 = vmatprep.mubr.f32.mxu0 0.0
          %866 = vmatmul.mubr.f32.gmra.mrb[0].mxu0 %v731
          %v867 = vpop.f32.mrb[0].mxu0
          %v868 = vadd.f32 0.0, %v867
          %v869 = vpop.f32.mrb[0].mxu0
          %v870 = vadd.f32 0.0, %v869
          %871 = vmatprep.mubr.f32.mxu0 0.0
          %872 = vmatmul.mubr.f32.gmra.mrb[0].mxu0 %v732
          %v873 = vpop.f32.mrb[0].mxu0
          %v874 = vadd.f32 0.0, %v873
          %v875 = vpop.f32.mrb[0].mxu0
          %v876 = vadd.f32 0.0, %v875
          %877 = vdwg.mxu0
          %v878 = vld [vmem:[%s588] sm:$0xff]
          %v879 = vld [vmem:[%s588 + $0x8] sm:$0xff]
          %v880 = vld [vmem:[%s588 + $0x10] sm:$0xff]
          %v881 = vld [vmem:[%s588 + $0x18] sm:$0xff]
          %v882 = vld [vmem:[%s588 + $0x20] sm:$0xff]
          %v883 = vld [vmem:[%s588 + $0x28] sm:$0xff]
          %v884 = vld [vmem:[%s588 + $0x30] sm:$0xff]
          %v885 = vld [vmem:[%s588 + $0x38] sm:$0xff]
          %v886 = vld [vmem:[%s7] sm:$0xff]
          %v887 = vld [vmem:[%s7 + $0x8] sm:$0xff]
          %v888 = vld [vmem:[%s7 + $0x10] sm:$0xff]
          %v889 = vld [vmem:[%s7 + $0x18] sm:$0xff]
          %vm890 = vcmask 130048
          %v892 = vsel %vm890, %v878, 0
          %v895 = vsel %vm890, %v879, 0
          %v898 = vsel %vm890, %v880, 0
          %v901 = vsel %vm890, %v881, 0
          %v904 = vsel %vm890, %v882, 0
          %v907 = vsel %vm890, %v883, 0
          %v910 = vsel %vm890, %v884, 0
          %v913 = vsel %vm890, %v885, 0
          %915 = vmatprep.subr.mxu0 %v887
          %916 = vmatpush1.msra.mxu0 %v886
          %917 = vmatprep.subr.mxu0 %v889
          %918 = vmatpush1.msra.mxu0 %v888
          %919 = vmatprep.subr.mxu0 0.0
          %920 = vmatpush1.msra.mxu0 0.0
          %921 = vmatprep.subr.mxu0 0.0
          %922 = vmatpush1.msra.mxu0 0.0
          %923 = vmatprep.subr.mxu0 0.0
          %924 = vmatpush1.msra.mxu0 0.0
          %925 = vmatprep.subr.mxu0 0.0
          %926 = vmatpush1.msra.mxu0 0.0
          %927 = vmatprep.subr.mxu0 0.0
          %928 = vmatpush1.msra.mxu0 0.0
          %929 = vmatprep.subr.mxu0 0.0
          %930 = vmatpush1.msra.mxu0 0.0
          %931 = vmatprep.subr.mxu0 0.0
          %932 = vmatpush1.msra.mxu0 0.0
          %933 = vmatprep.subr.mxu0 0.0
          %934 = vmatpush1.msra.mxu0 0.0
          %935 = vmatprep.subr.mxu0 0.0
          %936 = vmatpush1.msra.mxu0 0.0
          %937 = vmatprep.subr.mxu0 0.0
          %938 = vmatpush1.msra.mxu0 0.0
          %939 = vmatprep.subr.mxu0 0.0
          %940 = vmatpush1.msra.mxu0 0.0
          %941 = vmatprep.subr.mxu0 0.0
          %942 = vmatpush1.msra.mxu0 0.0
          %943 = vmatprep.subr.mxu0 0.0
          %944 = vmatpush1.msra.mxu0 0.0
          %945 = vmatprep.subr.mxu0 0.0
          %946 = vmatpush1.msra.mxu0 0.0
          %947 = vmatprep.subr.mxu0 0.0
          %948 = vmatpush1.msra.mxu0 0.0
          %949 = vmatprep.subr.mxu0 0.0
          %950 = vmatpush1.msra.mxu0 0.0
          %951 = vmatprep.subr.mxu0 0.0
          %952 = vmatpush1.msra.mxu0 0.0
          %953 = vmatprep.subr.mxu0 0.0
          %954 = vmatpush1.msra.mxu0 0.0
          %955 = vmatprep.subr.mxu0 0.0
          %956 = vmatpush1.msra.mxu0 0.0
          %957 = vmatprep.subr.mxu0 0.0
          %958 = vmatpush1.msra.mxu0 0.0
          %959 = vmatprep.subr.mxu0 0.0
          %960 = vmatpush1.msra.mxu0 0.0
          %961 = vmatprep.subr.mxu0 0.0
          %962 = vmatpush1.msra.mxu0 0.0
          %963 = vmatprep.subr.mxu0 0.0
          %964 = vmatpush1.msra.mxu0 0.0
          %965 = vmatprep.subr.mxu0 0.0
          %966 = vmatpush1.msra.mxu0 0.0
          %967 = vmatprep.subr.mxu0 0.0
          %968 = vmatpush1.msra.mxu0 0.0
          %969 = vmatprep.subr.mxu0 0.0
          %970 = vmatpush1.msra.mxu0 0.0
          %971 = vmatprep.subr.mxu0 0.0
          %972 = vmatpush1.msra.mxu0 0.0
          %973 = vmatprep.subr.mxu0 0.0
          %974 = vmatpush1.msra.mxu0 0.0
          %975 = vmatprep.subr.mxu0 0.0
          %976 = vmatpush1.msra.mxu0 0.0
          %977 = vmatprep.subr.mxu0 0.0
          %978 = vmatpush1.msra.mxu0 0.0
          %979 = vmatprep.mubr.f32.mxu0 0.0
          %980 = vmatmul.mubr.f32.gmra.mrb[0].mxu0 %v892
          %v981 = vpop.f32.mrb[0].mxu0
          %v982 = vadd.f32 0.0, %v981
          %v983 = vpop.f32.mrb[0].mxu0
          %v984 = vadd.f32 0.0, %v983
          %985 = vmatprep.mubr.f32.mxu0 0.0
          %986 = vmatmul.mubr.f32.gmra.mrb[0].mxu0 %v895
          %v987 = vpop.f32.mrb[0].mxu0
          %v988 = vadd.f32 0.0, %v987
          %v989 = vpop.f32.mrb[0].mxu0
          %v990 = vadd.f32 0.0, %v989
          %991 = vmatprep.mubr.f32.mxu0 0.0
          %992 = vmatmul.mubr.f32.gmra.mrb[0].mxu0 %v898
          %v993 = vpop.f32.mrb[0].mxu0
          %v994 = vadd.f32 0.0, %v993
          %v995 = vpop.f32.mrb[0].mxu0
          %v996 = vadd.f32 0.0, %v995
          %997 = vmatprep.mubr.f32.mxu0 0.0
          %998 = vmatmul.mubr.f32.gmra.mrb[0].mxu0 %v901
          %v999 = vpop.f32.mrb[0].mxu0
          %v1000 = vadd.f32 0.0, %v999
          %v1001 = vpop.f32.mrb[0].mxu0
          %v1002 = vadd.f32 0.0, %v1001
          %1003 = vmatprep.mubr.f32.mxu0 0.0
          %1004 = vmatmul.mubr.f32.gmra.mrb[0].mxu0 %v904
          %v1005 = vpop.f32.mrb[0].mxu0
          %v1006 = vadd.f32 0.0, %v1005
          %v1007 = vpop.f32.mrb[0].mxu0
          %v1008 = vadd.f32 0.0, %v1007
          %1009 = vmatprep.mubr.f32.mxu0 0.0
          %1010 = vmatmul.mubr.f32.gmra.mrb[0].mxu0 %v907
          %v1011 = vpop.f32.mrb[0].mxu0
          %v1012 = vadd.f32 0.0, %v1011
          %v1013 = vpop.f32.mrb[0].mxu0
          %v1014 = vadd.f32 0.0, %v1013
          %1015 = vmatprep.mubr.f32.mxu0 0.0
          %1016 = vmatmul.mubr.f32.gmra.mrb[0].mxu0 %v910
          %v1017 = vpop.f32.mrb[0].mxu0
          %v1018 = vadd.f32 0.0, %v1017
          %v1019 = vpop.f32.mrb[0].mxu0
          %v1020 = vadd.f32 0.0, %v1019
          %1021 = vmatprep.mubr.f32.mxu0 0.0
          %1022 = vmatmul.mubr.f32.gmra.mrb[0].mxu0 %v913
          %v1023 = vpop.f32.mrb[0].mxu0
          %v1024 = vadd.f32 0.0, %v1023
          %v1025 = vpop.f32.mrb[0].mxu0
          %v1026 = vadd.f32 0.0, %v1025
          %1027 = vdwg.mxu0
          %vm1028 = vcmask 64512
          %v1030 = vsel %vm1028, %v717, 0
          %v1033 = vsel %vm1028, %v718, 0
          %v1036 = vsel %vm1028, %v719, 0
          %v1039 = vsel %vm1028, %v720, 0
          %v1042 = vsel %vm1028, %v721, 0
          %v1045 = vsel %vm1028, %v722, 0
          %v1048 = vsel %vm1028, %v723, 0
          %v1051 = vsel %vm1028, %v724, 0
          %1053 = vmatprep.subr.mxu0 %v715
          %1054 = vmatpush1.msra.mxu0 %v713
          %1055 = vmatprep.subr.mxu0 0.0
          %1056 = vmatpush1.msra.mxu0 0.0
          %1057 = vmatprep.subr.mxu0 0.0
          %1058 = vmatpush1.msra.mxu0 0.0
          %1059 = vmatprep.subr.mxu0 0.0
          %1060 = vmatpush1.msra.mxu0 0.0
          %1061 = vmatprep.subr.mxu0 0.0
          %1062 = vmatpush1.msra.mxu0 0.0
          %1063 = vmatprep.subr.mxu0 0.0
          %1064 = vmatpush1.msra.mxu0 0.0
          %1065 = vmatprep.subr.mxu0 0.0
          %1066 = vmatpush1.msra.mxu0 0.0
          %1067 = vmatprep.subr.mxu0 0.0
          %1068 = vmatpush1.msra.mxu0 0.0
          %1069 = vmatprep.subr.mxu0 0.0
          %1070 = vmatpush1.msra.mxu0 0.0
          %1071 = vmatprep.subr.mxu0 0.0
          %1072 = vmatpush1.msra.mxu0 0.0
          %1073 = vmatprep.subr.mxu0 0.0
          %1074 = vmatpush1.msra.mxu0 0.0
          %1075 = vmatprep.subr.mxu0 0.0
          %1076 = vmatpush1.msra.mxu0 0.0
          %1077 = vmatprep.subr.mxu0 0.0
          %1078 = vmatpush1.msra.mxu0 0.0
          %1079 = vmatprep.subr.mxu0 0.0
          %1080 = vmatpush1.msra.mxu0 0.0
          %1081 = vmatprep.subr.mxu0 0.0
          %1082 = vmatpush1.msra.mxu0 0.0
          %1083 = vmatprep.subr.mxu0 0.0
          %1084 = vmatpush1.msra.mxu0 0.0
          %1085 = vmatprep.subr.mxu0 0.0
          %1086 = vmatpush1.msra.mxu0 0.0
          %1087 = vmatprep.subr.mxu0 0.0
          %1088 = vmatpush1.msra.mxu0 0.0
          %1089 = vmatprep.subr.mxu0 0.0
          %1090 = vmatpush1.msra.mxu0 0.0
          %1091 = vmatprep.subr.mxu0 0.0
          %1092 = vmatpush1.msra.mxu0 0.0
          %1093 = vmatprep.subr.mxu0 0.0
          %1094 = vmatpush1.msra.mxu0 0.0
          %1095 = vmatprep.subr.mxu0 0.0
          %1096 = vmatpush1.msra.mxu0 0.0
          %1097 = vmatprep.subr.mxu0 0.0
          %1098 = vmatpush1.msra.mxu0 0.0
          %1099 = vmatprep.subr.mxu0 0.0
          %1100 = vmatpush1.msra.mxu0 0.0
          %1101 = vmatprep.subr.mxu0 0.0
          %1102 = vmatpush1.msra.mxu0 0.0
          %1103 = vmatprep.subr.mxu0 0.0
          %1104 = vmatpush1.msra.mxu0 0.0
          %1105 = vmatprep.subr.mxu0 0.0
          %1106 = vmatpush1.msra.mxu0 0.0
          %1107 = vmatprep.subr.mxu0 0.0
          %1108 = vmatpush1.msra.mxu0 0.0
          %1109 = vmatprep.subr.mxu0 0.0
          %1110 = vmatpush1.msra.mxu0 0.0
          %1111 = vmatprep.subr.mxu0 0.0
          %1112 = vmatpush1.msra.mxu0 0.0
          %1113 = vmatprep.subr.mxu0 0.0
          %1114 = vmatpush1.msra.mxu0 0.0
          %1115 = vmatprep.subr.mxu0 0.0
          %1116 = vmatpush1.msra.mxu0 0.0
          %1117 = vmatprep.mubr.f32.mxu0 0.0
          %1118 = vmatmul.mubr.f32.gmra.mrb[0].mxu0 %v1030
          %v1119 = vpop.f32.mrb[0].mxu0
          %v1120 = vadd.f32 %v832, %v1119
          %v1121 = vpop.f32.mrb[0].mxu0
          %v1122 = vadd.f32 %v834, %v1121
          %1123 = vmatprep.mubr.f32.mxu0 0.0
          %1124 = vmatmul.mubr.f32.gmra.mrb[0].mxu0 %v1033
          %v1125 = vpop.f32.mrb[0].mxu0
          %v1126 = vadd.f32 %v838, %v1125
          %v1127 = vpop.f32.mrb[0].mxu0
          %v1128 = vadd.f32 %v840, %v1127
          %1129 = vmatprep.mubr.f32.mxu0 0.0
          %1130 = vmatmul.mubr.f32.gmra.mrb[0].mxu0 %v1036
          %v1131 = vpop.f32.mrb[0].mxu0
          %v1132 = vadd.f32 %v844, %v1131
          %v1133 = vpop.f32.mrb[0].mxu0
          %v1134 = vadd.f32 %v846, %v1133
          %1135 = vmatprep.mubr.f32.mxu0 0.0
          %1136 = vmatmul.mubr.f32.gmra.mrb[0].mxu0 %v1039
          %v1137 = vpop.f32.mrb[0].mxu0
          %v1138 = vadd.f32 %v850, %v1137
          %v1139 = vpop.f32.mrb[0].mxu0
          %v1140 = vadd.f32 %v852, %v1139
          %1141 = vmatprep.mubr.f32.mxu0 0.0
          %1142 = vmatmul.mubr.f32.gmra.mrb[0].mxu0 %v1042
          %v1143 = vpop.f32.mrb[0].mxu0
          %v1144 = vadd.f32 %v856, %v1143
          %v1145 = vpop.f32.mrb[0].mxu0
          %v1146 = vadd.f32 %v858, %v1145
          %1147 = vmatprep.mubr.f32.mxu0 0.0
          %1148 = vmatmul.mubr.f32.gmra.mrb[0].mxu0 %v1045
          %v1149 = vpop.f32.mrb[0].mxu0
          %v1150 = vadd.f32 %v862, %v1149
          %v1151 = vpop.f32.mrb[0].mxu0
          %v1152 = vadd.f32 %v864, %v1151
          %1153 = vmatprep.mubr.f32.mxu0 0.0
          %1154 = vmatmul.mubr.f32.gmra.mrb[0].mxu0 %v1048
          %v1155 = vpop.f32.mrb[0].mxu0
          %v1156 = vadd.f32 %v868, %v1155
          %v1157 = vpop.f32.mrb[0].mxu0
          %v1158 = vadd.f32 %v870, %v1157
          %1159 = vmatprep.mubr.f32.mxu0 0.0
          %1160 = vmatmul.mubr.f32.gmra.mrb[0].mxu0 %v1051
          %v1161 = vpop.f32.mrb[0].mxu0
          %v1162 = vadd.f32 %v874, %v1161
          %v1163 = vpop.f32.mrb[0].mxu0
          %v1164 = vadd.f32 %v876, %v1163
          %1165 = vdwg.mxu0
          %v1166 = vadd.f32 %v1120, %v982
          %v1167 = vadd.f32 %v1122, %v984
          %v1168 = vadd.f32 %v1126, %v988
          %v1169 = vadd.f32 %v1128, %v990
          %v1170 = vadd.f32 %v1132, %v994
          %v1171 = vadd.f32 %v1134, %v996
          %v1172 = vadd.f32 %v1138, %v1000
          %v1173 = vadd.f32 %v1140, %v1002
          %v1174 = vadd.f32 %v1144, %v1006
          %v1175 = vadd.f32 %v1146, %v1008
          %v1176 = vadd.f32 %v1150, %v1012
          %v1177 = vadd.f32 %v1152, %v1014
          %v1178 = vadd.f32 %v1156, %v1018
          %v1179 = vadd.f32 %v1158, %v1020
          %v1180 = vadd.f32 %v1162, %v1024
          %v1181 = vadd.f32 %v1164, %v1026
          %v1182 = vld [vmem:[%s8] sm:$0x3]
          %v1184 = vlaneseq
          %v1185 = vshrl.u32 %v1184, 7
          %v1186 = vsub.s32 0, %v1185
          %v1187 = vrot.slane %v1182, %v1186
          %v1188 = vlaneseq
          %v1189 = vshrl.u32 %v1188, 7
          %v1190 = vsub.s32 1, %v1189
          %v1191 = vrot.slane %v1182, %v1190
          %v1194 = vadd.f32 %v1166, %v1187
          %v1195 = vadd.f32 %v1167, %v1191
          %v1196 = vadd.f32 %v1168, %v1187
          %v1197 = vadd.f32 %v1169, %v1191
          %v1198 = vadd.f32 %v1170, %v1187
          %v1199 = vadd.f32 %v1171, %v1191
          %v1200 = vadd.f32 %v1172, %v1187
          %v1201 = vadd.f32 %v1173, %v1191
          %v1202 = vadd.f32 %v1174, %v1187
          %v1203 = vadd.f32 %v1175, %v1191
          %v1204 = vadd.f32 %v1176, %v1187
          %v1205 = vadd.f32 %v1177, %v1191
          %v1206 = vadd.f32 %v1178, %v1187
          %v1207 = vadd.f32 %v1179, %v1191
          %v1208 = vadd.f32 %v1180, %v1187
          %v1209 = vadd.f32 %v1181, %v1191
          %s1210 = sshra.s32 %s594, 3
          %s1211 = sand.u32 %s594, 7
          %s1212 = smul.u32 %s1210, 2
          %s1213 = smul.addr %s1212, 8
          %s1214 = scalar_lea.vmem [#allocation2], %s1213
          %1215 = vst [vmem:[%s1214] sm:$0xff] %v1194
          %1216 = vst [vmem:[%s1214 + $0x8] sm:$0xff] %v1195
          %1217 = vst [vmem:[%s1214 + $0x10] sm:$0xff] %v1196
          %1218 = vst [vmem:[%s1214 + $0x18] sm:$0xff] %v1197
          %1219 = vst [vmem:[%s1214 + $0x20] sm:$0xff] %v1198
          %1220 = vst [vmem:[%s1214 + $0x28] sm:$0xff] %v1199
          %1221 = vst [vmem:[%s1214 + $0x30] sm:$0xff] %v1200
          %1222 = vst [vmem:[%s1214 + $0x38] sm:$0xff] %v1201
          %1223 = vst [vmem:[%s1214 + $0x40] sm:$0xff] %v1202
          %1224 = vst [vmem:[%s1214 + $0x48] sm:$0xff] %v1203
          %1225 = vst [vmem:[%s1214 + $0x50] sm:$0xff] %v1204
          %1226 = vst [vmem:[%s1214 + $0x58] sm:$0xff] %v1205
          %1227 = vst [vmem:[%s1214 + $0x60] sm:$0xff] %v1206
          %1228 = vst [vmem:[%s1214 + $0x68] sm:$0xff] %v1207
          %1229 = vst [vmem:[%s1214 + $0x70] sm:$0xff] %v1208
          %1230 = vst [vmem:[%s1214 + $0x78] sm:$0xff] %v1209
          %v1231 = vlaneseq
          %v1232 = vshrl.u32 %v1231, 7
          %v1233 = vadd.s32 %v1232, 8
          %v1234 = vadd.s32 %v1232, 16
          %v1235 = vadd.s32 %v1232, 24
          %v1236 = vadd.s32 %v1232, 32
          %v1237 = vadd.s32 %v1232, 40
          %v1238 = vadd.s32 %v1232, 48
          %v1239 = vadd.s32 %v1232, 56
          %v1240 = vstv %s594
          %v1241 = vadd.s32 %v1232, %v1240
          %v1242 = vadd.s32 %v1233, %v1240
          %v1243 = vadd.s32 %v1234, %v1240
          %v1244 = vadd.s32 %v1235, %v1240
          %v1245 = vadd.s32 %v1236, %v1240
          %v1246 = vadd.s32 %v1237, %v1240
          %v1247 = vadd.s32 %v1238, %v1240
          %v1248 = vadd.s32 %v1239, %v1240
          %vm1249 = vcmp.lt.s32.totalorder %v1241, 160
          %vm1250 = vcmp.lt.s32.totalorder %v1242, 160
          %vm1251 = vcmp.lt.s32.totalorder %v1243, 160
          %vm1252 = vcmp.lt.s32.totalorder %v1244, 160
          %vm1253 = vcmp.lt.s32.totalorder %v1245, 160
          %vm1254 = vcmp.lt.s32.totalorder %v1246, 160
          %vm1255 = vcmp.lt.s32.totalorder %v1247, 160
          %vm1256 = vcmp.lt.s32.totalorder %v1248, 160
          %v1257 = vsel %vm1249, 1, 0
          %v1258 = vsel %vm1250, 1, 0
          %v1259 = vsel %vm1251, 1, 0
          %v1260 = vsel %vm1252, 1, 0
          %v1261 = vsel %vm1253, 1, 0
          %v1262 = vsel %vm1254, 1, 0
          %v1263 = vsel %vm1255, 1, 0
          %v1264 = vsel %vm1256, 1, 0
          %vm1265 = vcmp.eq.s32.totalorder %v1257, 1
          %vm1266 = vcmp.eq.s32.totalorder %v1258, 1
          %vm1267 = vcmp.eq.s32.totalorder %v1259, 1
          %vm1268 = vcmp.eq.s32.totalorder %v1260, 1
          %vm1269 = vcmp.eq.s32.totalorder %v1261, 1
          %vm1270 = vcmp.eq.s32.totalorder %v1262, 1
          %vm1271 = vcmp.eq.s32.totalorder %v1263, 1
          %vm1272 = vcmp.eq.s32.totalorder %v1264, 1
          %v1273 = vsel %vm1265, %v1194, 0.0
          %v1274 = vsel %vm1265, %v1195, 0.0
          %v1275 = vsel %vm1266, %v1196, 0.0
          %v1276 = vsel %vm1266, %v1197, 0.0
          %v1277 = vsel %vm1267, %v1198, 0.0
          %v1278 = vsel %vm1267, %v1199, 0.0
          %v1279 = vsel %vm1268, %v1200, 0.0
          %v1280 = vsel %vm1268, %v1201, 0.0
          %v1281 = vsel %vm1269, %v1202, 0.0
          %v1282 = vsel %vm1269, %v1203, 0.0
          %v1283 = vsel %vm1270, %v1204, 0.0
          %v1284 = vsel %vm1270, %v1205, 0.0
          %v1285 = vsel %vm1271, %v1206, 0.0
          %v1286 = vsel %vm1271, %v1207, 0.0
          %v1287 = vsel %vm1272, %v1208, 0.0
          %v1288 = vsel %vm1272, %v1209, 0.0
          %v1289 = vld [vmem:[#allocation4] sm:$0x3]
          %v1290 = vadd.f32 %v1273, %v1275
          %v1291 = vadd.f32 %v1290, %v1277
          %v1292 = vadd.f32 %v1291, %v1279
          %v1293 = vadd.f32 %v1292, %v1281
          %v1294 = vadd.f32 %v1293, %v1283
          %v1295 = vadd.f32 %v1294, %v1285
          %v1296 = vadd.f32 %v1295, %v1287
          %v1297 = vrot.slane %v1296, 4
          %v1298 = vadd.f32 %v1296, %v1297
          %v1299 = vrot.slane %v1298, 2
          %v1300 = vadd.f32 %v1298, %v1299
          %v1301 = vrot.slane %v1300, 1
          %v1302 = vadd.f32 %v1300, %v1301
          %v1303 = vadd.f32 %v1274, %v1276
          %v1304 = vadd.f32 %v1303, %v1278
          %v1305 = vadd.f32 %v1304, %v1280
          %v1306 = vadd.f32 %v1305, %v1282
          %v1307 = vadd.f32 %v1306, %v1284
          %v1308 = vadd.f32 %v1307, %v1286
          %v1309 = vadd.f32 %v1308, %v1288
          %v1310 = vrot.slane %v1309, 4
          %v1311 = vadd.f32 %v1309, %v1310
          %v1312 = vrot.slane %v1311, 2
          %v1313 = vadd.f32 %v1311, %v1312
          %v1314 = vrot.slane %v1313, 1
          %v1315 = vadd.f32 %v1313, %v1314
          %v1318 = vcombine.low %v1302, %v1315
          %v1320 = vunpack.c.l.s4 1966171168
          %v1321 = vunpack.c.0.s8 %v1320
          %v1322 = vlaneseq
          %v1323 = vshrl.u32 %v1322, 7
          %v1324 = vsub.s32 %v1321, %v1323
          %v1325 = vrot.slane %v1318, %v1324
          %v1327 = vunpack.c.l.s4 1966171168
          %v1328 = vunpack.c.0.s8 %v1327
          %v1329 = vlaneseq
          %v1330 = vshrl.u32 %v1329, 7
          %v1331 = vsub.s32 %v1328, %v1330
          %v1332 = vrot.slane %v1325, %v1331
          %v1334 = vadd.f32 %v1289, %v1332
          %v1335 = vlaneseq
          %vm1336 = vcmp.ge.s32.totalorder %v1335, 0
          %vm1337 = vcmp.lt.s32.totalorder %v1335, 256
          %vm1338 = vmand %vm1336, %vm1337
          %1339 = vst.msk [vmem:[#allocation4] sm:$0x3] %vm1338, %v1334
        $region92: #{tpu_custom_call.1} parent=71 // pred_fallthru
          _
        %p1340 = scmp.eq.s32.totalorder %s35, 1
        // Predicated region
        $region93: #{tpu_custom_call.1} parent=71 // pred_check
          %p1341 = pneg %p1340
        $region94: #{tpu_custom_call.1} parent=71 // pred_check_branch
          %1343 = sbr.rel (%p1341) target = $region96
        $region95: #{tpu_custom_call.1} parent=71 // pred_region
          %v1344 = vld [vmem:[#allocation4] sm:$0x3]
          %v1345 = vmul.f32 %v1344, 0.00625
          %v1346 = vlaneseq
          %v1347 = vshrl.u32 %v1346, 7
          %v1348 = vadd.s32 %v1347, 8
          %v1349 = vadd.s32 %v1347, 16
          %v1350 = vadd.s32 %v1347, 24
          %v1351 = vadd.s32 %v1347, 32
          %v1352 = vadd.s32 %v1347, 40
          %v1353 = vadd.s32 %v1347, 48
          %v1354 = vadd.s32 %v1347, 56
          %v1355 = vstv %s594
          %v1356 = vadd.s32 %v1347, %v1355
          %v1357 = vadd.s32 %v1348, %v1355
          %v1358 = vadd.s32 %v1349, %v1355
          %v1359 = vadd.s32 %v1350, %v1355
          %v1360 = vadd.s32 %v1351, %v1355
          %v1361 = vadd.s32 %v1352, %v1355
          %v1362 = vadd.s32 %v1353, %v1355
          %v1363 = vadd.s32 %v1354, %v1355
          %vm1364 = vcmp.lt.s32.totalorder %v1356, 160
          %vm1365 = vcmp.lt.s32.totalorder %v1357, 160
          %vm1366 = vcmp.lt.s32.totalorder %v1358, 160
          %vm1367 = vcmp.lt.s32.totalorder %v1359, 160
          %vm1368 = vcmp.lt.s32.totalorder %v1360, 160
          %vm1369 = vcmp.lt.s32.totalorder %v1361, 160
          %vm1370 = vcmp.lt.s32.totalorder %v1362, 160
          %vm1371 = vcmp.lt.s32.totalorder %v1363, 160
          %s1372 = sshra.s32 %s594, 3
          %s1373 = sand.u32 %s594, 7
          %s1374 = smul.u32 %s1372, 2
          %s1375 = smul.addr %s1374, 8
          %s1376 = scalar_lea.vmem [#allocation2], %s1375
          %v1377 = vld [vmem:[%s1376] sm:$0xff]
          %v1378 = vld [vmem:[%s1376 + $0x8] sm:$0xff]
          %v1379 = vld [vmem:[%s1376 + $0x10] sm:$0xff]
          %v1380 = vld [vmem:[%s1376 + $0x18] sm:$0xff]
          %v1381 = vld [vmem:[%s1376 + $0x20] sm:$0xff]
          %v1382 = vld [vmem:[%s1376 + $0x28] sm:$0xff]
          %v1383 = vld [vmem:[%s1376 + $0x30] sm:$0xff]
          %v1384 = vld [vmem:[%s1376 + $0x38] sm:$0xff]
          %v1385 = vld [vmem:[%s1376 + $0x40] sm:$0xff]
          %v1386 = vld [vmem:[%s1376 + $0x48] sm:$0xff]
          %v1387 = vld [vmem:[%s1376 + $0x50] sm:$0xff]
          %v1388 = vld [vmem:[%s1376 + $0x58] sm:$0xff]
          %v1389 = vld [vmem:[%s1376 + $0x60] sm:$0xff]
          %v1390 = vld [vmem:[%s1376 + $0x68] sm:$0xff]
          %v1391 = vld [vmem:[%s1376 + $0x70] sm:$0xff]
          %v1392 = vld [vmem:[%s1376 + $0x78] sm:$0xff]
          %v1394 = vlaneseq
          %v1395 = vshrl.u32 %v1394, 7
          %v1396 = vsub.s32 0, %v1395
          %v1397 = vrot.slane %v1345, %v1396
          %v1398 = vlaneseq
          %v1399 = vshrl.u32 %v1398, 7
          %v1400 = vsub.s32 1, %v1399
          %v1401 = vrot.slane %v1345, %v1400
          %v1404 = vsub.f32 %v1377, %v1397
          %v1405 = vsub.f32 %v1378, %v1401
          %v1406 = vsub.f32 %v1379, %v1397
          %v1407 = vsub.f32 %v1380, %v1401
          %v1408 = vsub.f32 %v1381, %v1397
          %v1409 = vsub.f32 %v1382, %v1401
          %v1410 = vsub.f32 %v1383, %v1397
          %v1411 = vsub.f32 %v1384, %v1401
          %v1412 = vsub.f32 %v1385, %v1397
          %v1413 = vsub.f32 %v1386, %v1401
          %v1414 = vsub.f32 %v1387, %v1397
          %v1415 = vsub.f32 %v1388, %v1401
          %v1416 = vsub.f32 %v1389, %v1397
          %v1417 = vsub.f32 %v1390, %v1401
          %v1418 = vsub.f32 %v1391, %v1397
          %v1419 = vsub.f32 %v1392, %v1401
          %v1420 = vsel %vm1364, 1, 0
          %v1421 = vsel %vm1365, 1, 0
          %v1422 = vsel %vm1366, 1, 0
          %v1423 = vsel %vm1367, 1, 0
          %v1424 = vsel %vm1368, 1, 0
          %v1425 = vsel %vm1369, 1, 0
          %v1426 = vsel %vm1370, 1, 0
          %v1427 = vsel %vm1371, 1, 0
          %vm1428 = vcmp.eq.s32.totalorder %v1420, 1
          %vm1429 = vcmp.eq.s32.totalorder %v1421, 1
          %vm1430 = vcmp.eq.s32.totalorder %v1422, 1
          %vm1431 = vcmp.eq.s32.totalorder %v1423, 1
          %vm1432 = vcmp.eq.s32.totalorder %v1424, 1
          %vm1433 = vcmp.eq.s32.totalorder %v1425, 1
          %vm1434 = vcmp.eq.s32.totalorder %v1426, 1
          %vm1435 = vcmp.eq.s32.totalorder %v1427, 1
          %v1436 = vsel %vm1428, %v1404, 0.0
          %v1437 = vsel %vm1428, %v1405, 0.0
          %v1438 = vsel %vm1429, %v1406, 0.0
          %v1439 = vsel %vm1429, %v1407, 0.0
          %v1440 = vsel %vm1430, %v1408, 0.0
          %v1441 = vsel %vm1430, %v1409, 0.0
          %v1442 = vsel %vm1431, %v1410, 0.0
          %v1443 = vsel %vm1431, %v1411, 0.0
          %v1444 = vsel %vm1432, %v1412, 0.0
          %v1445 = vsel %vm1432, %v1413, 0.0
          %v1446 = vsel %vm1433, %v1414, 0.0
          %v1447 = vsel %vm1433, %v1415, 0.0
          %v1448 = vsel %vm1434, %v1416, 0.0
          %v1449 = vsel %vm1434, %v1417, 0.0
          %v1450 = vsel %vm1435, %v1418, 0.0
          %v1451 = vsel %vm1435, %v1419, 0.0
          %v1452 = vld [vmem:[#allocation5] sm:$0x3]
          %v1453 = vmul.f32 %v1436, %v1436
          %v1454 = vmul.f32 %v1437, %v1437
          %v1455 = vmul.f32 %v1438, %v1438
          %v1456 = vmul.f32 %v1439, %v1439
          %v1457 = vmul.f32 %v1440, %v1440
          %v1458 = vmul.f32 %v1441, %v1441
          %v1459 = vmul.f32 %v1442, %v1442
          %v1460 = vmul.f32 %v1443, %v1443
          %v1461 = vmul.f32 %v1444, %v1444
          %v1462 = vmul.f32 %v1445, %v1445
          %v1463 = vmul.f32 %v1446, %v1446
          %v1464 = vmul.f32 %v1447, %v1447
          %v1465 = vmul.f32 %v1448, %v1448
          %v1466 = vmul.f32 %v1449, %v1449
          %v1467 = vmul.f32 %v1450, %v1450
          %v1468 = vmul.f32 %v1451, %v1451
          %v1469 = vadd.f32 %v1453, %v1455
          %v1470 = vadd.f32 %v1469, %v1457
          %v1471 = vadd.f32 %v1470, %v1459
          %v1472 = vadd.f32 %v1471, %v1461
          %v1473 = vadd.f32 %v1472, %v1463
          %v1474 = vadd.f32 %v1473, %v1465
          %v1475 = vadd.f32 %v1474, %v1467
          %v1476 = vrot.slane %v1475, 4
          %v1477 = vadd.f32 %v1475, %v1476
          %v1478 = vrot.slane %v1477, 2
          %v1479 = vadd.f32 %v1477, %v1478
          %v1480 = vrot.slane %v1479, 1
          %v1481 = vadd.f32 %v1479, %v1480
          %v1482 = vadd.f32 %v1454, %v1456
          %v1483 = vadd.f32 %v1482, %v1458
          %v1484 = vadd.f32 %v1483, %v1460
          %v1485 = vadd.f32 %v1484, %v1462
          %v1486 = vadd.f32 %v1485, %v1464
          %v1487 = vadd.f32 %v1486, %v1466
          %v1488 = vadd.f32 %v1487, %v1468
          %v1489 = vrot.slane %v1488, 4
          %v1490 = vadd.f32 %v1488, %v1489
          %v1491 = vrot.slane %v1490, 2
          %v1492 = vadd.f32 %v1490, %v1491
          %v1493 = vrot.slane %v1492, 1
          %v1494 = vadd.f32 %v1492, %v1493
          %v1497 = vcombine.low %v1481, %v1494
          %v1499 = vunpack.c.l.s4 1966171168
          %v1500 = vunpack.c.0.s8 %v1499
          %v1501 = vlaneseq
          %v1502 = vshrl.u32 %v1501, 7
          %v1503 = vsub.s32 %v1500, %v1502
          %v1504 = vrot.slane %v1497, %v1503
          %v1506 = vunpack.c.l.s4 1966171168
          %v1507 = vunpack.c.0.s8 %v1506
          %v1508 = vlaneseq
          %v1509 = vshrl.u32 %v1508, 7
          %v1510 = vsub.s32 %v1507, %v1509
          %v1511 = vrot.slane %v1504, %v1510
          %v1513 = vadd.f32 %v1452, %v1511
          %v1514 = vlaneseq
          %vm1515 = vcmp.ge.s32.totalorder %v1514, 0
          %vm1516 = vcmp.lt.s32.totalorder %v1514, 256
          %vm1517 = vmand %vm1515, %vm1516
          %1518 = vst.msk [vmem:[#allocation5] sm:$0x3] %vm1517, %v1513
        $region96: #{tpu_custom_call.1} parent=71 // pred_fallthru
          _
        %p1519 = scmp.eq.s32.totalorder %s35, 2
        // Predicated region
        $region97: #{tpu_custom_call.1} parent=71 // pred_check
          %p1520 = pneg %p1519
        $region98: #{tpu_custom_call.1} parent=71 // pred_check_branch
          %1522 = sbr.rel (%p1520) target = $region100
        $region99: #{tpu_custom_call.1} parent=71 // pred_region
          %v1523 = vld [vmem:[#allocation4] sm:$0x3]
          %v1524 = vmul.f32 %v1523, 0.00625
          %v1525 = vld [vmem:[#allocation5] sm:$0x3]
          %v1526 = vmul.f32 %v1525, 0.00625
          %v1527 = vadd.f32 %v1526, 1e-05
          %v1528 = vrsqrt.pop %v1527
          %s1529 = sshra.s32 %s594, 3
          %s1530 = sand.u32 %s594, 7
          %s1531 = smul.u32 %s1529, 2
          %s1532 = smul.addr %s1531, 8
          %s1533 = scalar_lea.vmem [#allocation2], %s1532
          %v1534 = vld [vmem:[%s1533] sm:$0xff]
          %v1535 = vld [vmem:[%s1533 + $0x8] sm:$0xff]
          %v1536 = vld [vmem:[%s1533 + $0x10] sm:$0xff]
          %v1537 = vld [vmem:[%s1533 + $0x18] sm:$0xff]
          %v1538 = vld [vmem:[%s1533 + $0x20] sm:$0xff]
          %v1539 = vld [vmem:[%s1533 + $0x28] sm:$0xff]
          %v1540 = vld [vmem:[%s1533 + $0x30] sm:$0xff]
          %v1541 = vld [vmem:[%s1533 + $0x38] sm:$0xff]
          %v1542 = vld [vmem:[%s1533 + $0x40] sm:$0xff]
          %v1543 = vld [vmem:[%s1533 + $0x48] sm:$0xff]
          %v1544 = vld [vmem:[%s1533 + $0x50] sm:$0xff]
          %v1545 = vld [vmem:[%s1533 + $0x58] sm:$0xff]
          %v1546 = vld [vmem:[%s1533 + $0x60] sm:$0xff]
          %v1547 = vld [vmem:[%s1533 + $0x68] sm:$0xff]
          %v1548 = vld [vmem:[%s1533 + $0x70] sm:$0xff]
          %v1549 = vld [vmem:[%s1533 + $0x78] sm:$0xff]
          %v1551 = vlaneseq
          %v1552 = vshrl.u32 %v1551, 7
          %v1553 = vsub.s32 0, %v1552
          %v1554 = vrot.slane %v1524, %v1553
          %v1555 = vlaneseq
          %v1556 = vshrl.u32 %v1555, 7
          %v1557 = vsub.s32 1, %v1556
          %v1558 = vrot.slane %v1524, %v1557
          %v1561 = vsub.f32 %v1534, %v1554
          %v1562 = vsub.f32 %v1535, %v1558
          %v1563 = vsub.f32 %v1536, %v1554
          %v1564 = vsub.f32 %v1537, %v1558
          %v1565 = vsub.f32 %v1538, %v1554
          %v1566 = vsub.f32 %v1539, %v1558
          %v1567 = vsub.f32 %v1540, %v1554
          %v1568 = vsub.f32 %v1541, %v1558
          %v1569 = vsub.f32 %v1542, %v1554
          %v1570 = vsub.f32 %v1543, %v1558
          %v1571 = vsub.f32 %v1544, %v1554
          %v1572 = vsub.f32 %v1545, %v1558
          %v1573 = vsub.f32 %v1546, %v1554
          %v1574 = vsub.f32 %v1547, %v1558
          %v1575 = vsub.f32 %v1548, %v1554
          %v1576 = vsub.f32 %v1549, %v1558
          %v1578 = vlaneseq
          %v1579 = vshrl.u32 %v1578, 7
          %v1580 = vsub.s32 0, %v1579
          %v1581 = vrot.slane %v1528, %v1580
          %v1582 = vlaneseq
          %v1583 = vshrl.u32 %v1582, 7
          %v1584 = vsub.s32 1, %v1583
          %v1585 = vrot.slane %v1528, %v1584
          %v1588 = vmul.f32 %v1561, %v1581
          %v1589 = vmul.f32 %v1562, %v1585
          %v1590 = vmul.f32 %v1563, %v1581
          %v1591 = vmul.f32 %v1564, %v1585
          %v1592 = vmul.f32 %v1565, %v1581
          %v1593 = vmul.f32 %v1566, %v1585
          %v1594 = vmul.f32 %v1567, %v1581
          %v1595 = vmul.f32 %v1568, %v1585
          %v1596 = vmul.f32 %v1569, %v1581
          %v1597 = vmul.f32 %v1570, %v1585
          %v1598 = vmul.f32 %v1571, %v1581
          %v1599 = vmul.f32 %v1572, %v1585
          %v1600 = vmul.f32 %v1573, %v1581
          %v1601 = vmul.f32 %v1574, %v1585
          %v1602 = vmul.f32 %v1575, %v1581
          %v1603 = vmul.f32 %v1576, %v1585
          %v1604 = vld [vmem:[%s9] sm:$0x3]
          %v1606 = vlaneseq
          %v1607 = vshrl.u32 %v1606, 7
          %v1608 = vsub.s32 0, %v1607
          %v1609 = vrot.slane %v1604, %v1608
          %v1610 = vlaneseq
          %v1611 = vshrl.u32 %v1610, 7
          %v1612 = vsub.s32 1, %v1611
          %v1613 = vrot.slane %v1604, %v1612
          %v1616 = vmul.f32 %v1588, %v1609
          %v1617 = vmul.f32 %v1589, %v1613
          %v1618 = vmul.f32 %v1590, %v1609
          %v1619 = vmul.f32 %v1591, %v1613
          %v1620 = vmul.f32 %v1592, %v1609
          %v1621 = vmul.f32 %v1593, %v1613
          %v1622 = vmul.f32 %v1594, %v1609
          %v1623 = vmul.f32 %v1595, %v1613
          %v1624 = vmul.f32 %v1596, %v1609
          %v1625 = vmul.f32 %v1597, %v1613
          %v1626 = vmul.f32 %v1598, %v1609
          %v1627 = vmul.f32 %v1599, %v1613
          %v1628 = vmul.f32 %v1600, %v1609
          %v1629 = vmul.f32 %v1601, %v1613
          %v1630 = vmul.f32 %v1602, %v1609
          %v1631 = vmul.f32 %v1603, %v1613
          %v1632 = vld [vmem:[%s10] sm:$0x3]
          %v1634 = vlaneseq
          %v1635 = vshrl.u32 %v1634, 7
          %v1636 = vsub.s32 0, %v1635
          %v1637 = vrot.slane %v1632, %v1636
          %v1638 = vlaneseq
          %v1639 = vshrl.u32 %v1638, 7
          %v1640 = vsub.s32 1, %v1639
          %v1641 = vrot.slane %v1632, %v1640
          %v1644 = vadd.f32 %v1616, %v1637
          %v1645 = vadd.f32 %v1617, %v1641
          %v1646 = vadd.f32 %v1618, %v1637
          %v1647 = vadd.f32 %v1619, %v1641
          %v1648 = vadd.f32 %v1620, %v1637
          %v1649 = vadd.f32 %v1621, %v1641
          %v1650 = vadd.f32 %v1622, %v1637
          %v1651 = vadd.f32 %v1623, %v1641
          %v1652 = vadd.f32 %v1624, %v1637
          %v1653 = vadd.f32 %v1625, %v1641
          %v1654 = vadd.f32 %v1626, %v1637
          %v1655 = vadd.f32 %v1627, %v1641
          %v1656 = vadd.f32 %v1628, %v1637
          %v1657 = vadd.f32 %v1629, %v1641
          %v1658 = vadd.f32 %v1630, %v1637
          %v1659 = vadd.f32 %v1631, %v1641
          %v1660 = vxor.u32 %v1644, 2147483648
          %v1661 = vxor.u32 %v1646, 2147483648
          %v1662 = vxor.u32 %v1648, 2147483648
          %v1663 = vxor.u32 %v1650, 2147483648
          %v1664 = vxor.u32 %v1652, 2147483648
          %v1665 = vxor.u32 %v1654, 2147483648
          %v1666 = vxor.u32 %v1656, 2147483648
          %v1667 = vxor.u32 %v1658, 2147483648
          %v1668 = vmul.f32 %v1660, 1.442695
          %v1669 = vpow.pop %v1668
          %v1670 = vmul.f32 %v1661, 1.442695
          %v1671 = vpow.pop %v1670
          %v1672 = vmul.f32 %v1662, 1.442695
          %v1673 = vpow.pop %v1672
          %v1674 = vmul.f32 %v1663, 1.442695
          %v1675 = vpow.pop %v1674
          %v1676 = vmul.f32 %v1664, 1.442695
          %v1677 = vpow.pop %v1676
          %v1678 = vmul.f32 %v1665, 1.442695
          %v1679 = vpow.pop %v1678
          %v1680 = vmul.f32 %v1666, 1.442695
          %v1681 = vpow.pop %v1680
          %v1682 = vmul.f32 %v1667, 1.442695
          %v1683 = vpow.pop %v1682
          %v1684 = vadd.f32 %v1669, 1.0
          %v1685 = vadd.f32 %v1671, 1.0
          %v1686 = vadd.f32 %v1673, 1.0
          %v1687 = vadd.f32 %v1675, 1.0
          %v1688 = vadd.f32 %v1677, 1.0
          %v1689 = vadd.f32 %v1679, 1.0
          %v1690 = vadd.f32 %v1681, 1.0
          %v1691 = vadd.f32 %v1683, 1.0
          %v1692 = vrcp.pop %v1684
          %v1693 = vmul.f32 1.0, %v1692
          %v1694 = vrcp.pop %v1685
          %v1695 = vmul.f32 1.0, %v1694
          %v1696 = vrcp.pop %v1686
          %v1697 = vmul.f32 1.0, %v1696
          %v1698 = vrcp.pop %v1687
          %v1699 = vmul.f32 1.0, %v1698
          %v1700 = vrcp.pop %v1688
          %v1701 = vmul.f32 1.0, %v1700
          %v1702 = vrcp.pop %v1689
          %v1703 = vmul.f32 1.0, %v1702
          %v1704 = vrcp.pop %v1690
          %v1705 = vmul.f32 1.0, %v1704
          %v1706 = vrcp.pop %v1691
          %v1707 = vmul.f32 1.0, %v1706
          %vm1708 = vcmp.gt.f32.partialorder %v1645, 20.0
          %vm1709 = vcmp.gt.f32.partialorder %v1647, 20.0
          %vm1710 = vcmp.gt.f32.partialorder %v1649, 20.0
          %vm1711 = vcmp.gt.f32.partialorder %v1651, 20.0
          %vm1712 = vcmp.gt.f32.partialorder %v1653, 20.0
          %vm1713 = vcmp.gt.f32.partialorder %v1655, 20.0
          %vm1714 = vcmp.gt.f32.partialorder %v1657, 20.0
          %vm1715 = vcmp.gt.f32.partialorder %v1659, 20.0
          %v1716 = vmin.f32 %v1645, 20.0
          %v1717 = vmin.f32 %v1647, 20.0
          %v1718 = vmin.f32 %v1649, 20.0
          %v1719 = vmin.f32 %v1651, 20.0
          %v1720 = vmin.f32 %v1653, 20.0
          %v1721 = vmin.f32 %v1655, 20.0
          %v1722 = vmin.f32 %v1657, 20.0
          %v1723 = vmin.f32 %v1659, 20.0
          %v1724 = vmul.f32 %v1716, 1.442695
          %v1725 = vpow.pop %v1724
          %v1726 = vmul.f32 %v1717, 1.442695
          %v1727 = vpow.pop %v1726
          %v1728 = vmul.f32 %v1718, 1.442695
          %v1729 = vpow.pop %v1728
          %v1730 = vmul.f32 %v1719, 1.442695
          %v1731 = vpow.pop %v1730
          %v1732 = vmul.f32 %v1720, 1.442695
          %v1733 = vpow.pop %v1732
          %v1734 = vmul.f32 %v1721, 1.442695
          %v1735 = vpow.pop %v1734
          %v1736 = vmul.f32 %v1722, 1.442695
          %v1737 = vpow.pop %v1736
          %v1738 = vmul.f32 %v1723, 1.442695
          %v1739 = vpow.pop %v1738
          %v1740 = vadd.f32 %v1725, 1.0
          %v1741 = vlog2.pop %v1740
          %v1742 = vmul.f32 %v1741, 0.6931472
          %v1743 = vmul.f32 -0.5, %v1725
          %v1744 = vadd.f32 %v1743, 1.0
          %v1745 = vmul.f32 %v1744, %v1725
          %v1746 = vand.u32 2147483647, %v1725
          %vm1747 = vcmp.lt.f32.partialorder %v1746, 0.0004427343
          %v1748 = vsel %vm1747, %v1745, %v1742
          %v1749 = vadd.f32 %v1727, 1.0
          %v1750 = vlog2.pop %v1749
          %v1751 = vmul.f32 %v1750, 0.6931472
          %v1752 = vmul.f32 -0.5, %v1727
          %v1753 = vadd.f32 %v1752, 1.0
          %v1754 = vmul.f32 %v1753, %v1727
          %v1755 = vand.u32 2147483647, %v1727
          %vm1756 = vcmp.lt.f32.partialorder %v1755, 0.0004427343
          %v1757 = vsel %vm1756, %v1754, %v1751
          %v1758 = vadd.f32 %v1729, 1.0
          %v1759 = vlog2.pop %v1758
          %v1760 = vmul.f32 %v1759, 0.6931472
          %v1761 = vmul.f32 -0.5, %v1729
          %v1762 = vadd.f32 %v1761, 1.0
          %v1763 = vmul.f32 %v1762, %v1729
          %v1764 = vand.u32 2147483647, %v1729
          %vm1765 = vcmp.lt.f32.partialorder %v1764, 0.0004427343
          %v1766 = vsel %vm1765, %v1763, %v1760
          %v1767 = vadd.f32 %v1731, 1.0
          %v1768 = vlog2.pop %v1767
          %v1769 = vmul.f32 %v1768, 0.6931472
          %v1770 = vmul.f32 -0.5, %v1731
          %v1771 = vadd.f32 %v1770, 1.0
          %v1772 = vmul.f32 %v1771, %v1731
          %v1773 = vand.u32 2147483647, %v1731
          %vm1774 = vcmp.lt.f32.partialorder %v1773, 0.0004427343
          %v1775 = vsel %vm1774, %v1772, %v1769
          %v1776 = vadd.f32 %v1733, 1.0
          %v1777 = vlog2.pop %v1776
          %v1778 = vmul.f32 %v1777, 0.6931472
          %v1779 = vmul.f32 -0.5, %v1733
          %v1780 = vadd.f32 %v1779, 1.0
          %v1781 = vmul.f32 %v1780, %v1733
          %v1782 = vand.u32 2147483647, %v1733
          %vm1783 = vcmp.lt.f32.partialorder %v1782, 0.0004427343
          %v1784 = vsel %vm1783, %v1781, %v1778
          %v1785 = vadd.f32 %v1735, 1.0
          %v1786 = vlog2.pop %v1785
          %v1787 = vmul.f32 %v1786, 0.6931472
          %v1788 = vmul.f32 -0.5, %v1735
          %v1789 = vadd.f32 %v1788, 1.0
          %v1790 = vmul.f32 %v1789, %v1735
          %v1791 = vand.u32 2147483647, %v1735
          %vm1792 = vcmp.lt.f32.partialorder %v1791, 0.0004427343
          %v1793 = vsel %vm1792, %v1790, %v1787
          %v1794 = vadd.f32 %v1737, 1.0
          %v1795 = vlog2.pop %v1794
          %v1796 = vmul.f32 %v1795, 0.6931472
          %v1797 = vmul.f32 -0.5, %v1737
          %v1798 = vadd.f32 %v1797, 1.0
          %v1799 = vmul.f32 %v1798, %v1737
          %v1800 = vand.u32 2147483647, %v1737
          %vm1801 = vcmp.lt.f32.partialorder %v1800, 0.0004427343
          %v1802 = vsel %vm1801, %v1799, %v1796
          %v1803 = vadd.f32 %v1739, 1.0
          %v1804 = vlog2.pop %v1803
          %v1805 = vmul.f32 %v1804, 0.6931472
          %v1806 = vmul.f32 -0.5, %v1739
          %v1807 = vadd.f32 %v1806, 1.0
          %v1808 = vmul.f32 %v1807, %v1739
          %v1809 = vand.u32 2147483647, %v1739
          %vm1810 = vcmp.lt.f32.partialorder %v1809, 0.0004427343
          %v1811 = vsel %vm1810, %v1808, %v1805
          %v1812 = vsel %vm1708, %v1645, %v1748
          %v1813 = vsel %vm1709, %v1647, %v1757
          %v1814 = vsel %vm1710, %v1649, %v1766
          %v1815 = vsel %vm1711, %v1651, %v1775
          %v1816 = vsel %vm1712, %v1653, %v1784
          %v1817 = vsel %vm1713, %v1655, %v1793
          %v1818 = vsel %vm1714, %v1657, %v1802
          %v1819 = vsel %vm1715, %v1659, %v1811
          %v1820 = vmul.f32 %v1693, %v1812
          %v1821 = vmul.f32 %v1695, %v1813
          %v1822 = vmul.f32 %v1697, %v1814
          %v1823 = vmul.f32 %v1699, %v1815
          %v1824 = vmul.f32 %v1701, %v1816
          %v1825 = vmul.f32 %v1703, %v1817
          %v1826 = vmul.f32 %v1705, %v1818
          %v1827 = vmul.f32 %v1707, %v1819
          %v1828 = vld [vmem:[#allocation11] sm:$0xff]
          %vm1829 = vcmask 523264
          %v1831 = vsel %vm1829, %v1828, 0
          %1833 = vmatprep.subr.mxu0 0.0
          %1834 = vmatpush1.msra.mxu0 %v1820
          %1835 = vmatprep.subr.mxu0 0.0
          %1836 = vmatpush1.msra.mxu0 %v1821
          %1837 = vmatprep.subr.mxu0 0.0
          %1838 = vmatpush1.msra.mxu0 %v1822
          %1839 = vmatprep.subr.mxu0 0.0
          %1840 = vmatpush1.msra.mxu0 %v1823
          %1841 = vmatprep.subr.mxu0 0.0
          %1842 = vmatpush1.msra.mxu0 %v1824
          %1843 = vmatprep.subr.mxu0 0.0
          %1844 = vmatpush1.msra.mxu0 %v1825
          %1845 = vmatprep.subr.mxu0 0.0
          %1846 = vmatpush1.msra.mxu0 %v1826
          %1847 = vmatprep.subr.mxu0 0.0
          %1848 = vmatpush1.msra.mxu0 %v1827
          %1849 = vmatprep.subr.mxu0 0.0
          %1850 = vmatpush1.msra.mxu0 0.0
          %1851 = vmatprep.subr.mxu0 0.0
          %1852 = vmatpush1.msra.mxu0 0.0
          %1853 = vmatprep.subr.mxu0 0.0
          %1854 = vmatpush1.msra.mxu0 0.0
          %1855 = vmatprep.subr.mxu0 0.0
          %1856 = vmatpush1.msra.mxu0 0.0
          %1857 = vmatprep.subr.mxu0 0.0
          %1858 = vmatpush1.msra.mxu0 0.0
          %1859 = vmatprep.subr.mxu0 0.0
          %1860 = vmatpush1.msra.mxu0 0.0
          %1861 = vmatprep.subr.mxu0 0.0
          %1862 = vmatpush1.msra.mxu0 0.0
          %1863 = vmatprep.subr.mxu0 0.0
          %1864 = vmatpush1.msra.mxu0 0.0
          %1865 = vmatprep.subr.mxu0 0.0
          %1866 = vmatpush1.msra.mxu0 0.0
          %1867 = vmatprep.subr.mxu0 0.0
          %1868 = vmatpush1.msra.mxu0 0.0
          %1869 = vmatprep.subr.mxu0 0.0
          %1870 = vmatpush1.msra.mxu0 0.0
          %1871 = vmatprep.subr.mxu0 0.0
          %1872 = vmatpush1.msra.mxu0 0.0
          %1873 = vmatprep.subr.mxu0 0.0
          %1874 = vmatpush1.msra.mxu0 0.0
          %1875 = vmatprep.subr.mxu0 0.0
          %1876 = vmatpush1.msra.mxu0 0.0
          %1877 = vmatprep.subr.mxu0 0.0
          %1878 = vmatpush1.msra.mxu0 0.0
          %1879 = vmatprep.subr.mxu0 0.0
          %1880 = vmatpush1.msra.mxu0 0.0
          %1881 = vmatprep.subr.mxu0 0.0
          %1882 = vmatpush1.msra.mxu0 0.0
          %1883 = vmatprep.subr.mxu0 0.0
          %1884 = vmatpush1.msra.mxu0 0.0
          %1885 = vmatprep.subr.mxu0 0.0
          %1886 = vmatpush1.msra.mxu0 0.0
          %1887 = vmatprep.subr.mxu0 0.0
          %1888 = vmatpush1.msra.mxu0 0.0
          %1889 = vmatprep.subr.mxu0 0.0
          %1890 = vmatpush1.msra.mxu0 0.0
          %1891 = vmatprep.subr.mxu0 0.0
          %1892 = vmatpush1.msra.mxu0 0.0
          %1893 = vmatprep.subr.mxu0 0.0
          %1894 = vmatpush1.msra.mxu0 0.0
          %1895 = vmatprep.subr.mxu0 0.0
          %1896 = vmatpush1.msra.mxu0 0.0
          %1897 = vmatprep.mubr.f32.mxu0 0.0
          %1898 = vmatmul.mubr.f32.gmra.mrb[0].mxu0 %v1831
          %v1899 = vpop.f32.mrb[0].mxu0
          %v1900 = vadd.f32 0.0, %v1899
          %v1901 = vpop.f32.mrb[0].mxu0
          %1902 = vdwg.mxu0
          %v1903 = vlaneseq
          %v1904 = vand.u32 %v1903, 127
          %vm1905 = vcmp.lt.s32.totalorder %v1904, 32
          %v1906 = vsel %vm1905, %v1900, 0.0
          %s1907 = scalar_lea.vmem [#allocation3], %s595
          %1908 = vst [vmem:[%s1907] sm:$0xff] %v1906
          %v1909 = vlaneseq
          %v1910 = vshrl.u32 %v1909, 7
          %v1911 = vstv %s595
          %v1912 = vadd.s32 %v1910, %v1911
          %vm1913 = vcmp.lt.s32.totalorder %v1912, 20
          %v1914 = vsel %vm1913, 1, 0
          %vm1915 = vcmp.eq.s32.totalorder %v1914, 1
          %v1916 = vsel %vm1915, %v1906, 0.0
          %v1917 = vld [vmem:[#allocation6] sm:$0x1]
          %v1918 = vrot.slane %v1916, 4
          %v1919 = vadd.f32 %v1916, %v1918
          %v1920 = vrot.slane %v1919, 2
          %v1921 = vadd.f32 %v1919, %v1920
          %v1922 = vrot.slane %v1921, 1
          %v1923 = vadd.f32 %v1921, %v1922
          %v1924 = vadd.f32 %v1917, %v1923
          %1925 = vst [vmem:[#allocation6] sm:$0x1] %v1924
          %v1926 = vld [vmem:[#allocation7] sm:$0x1]
          %v1927 = vmul.f32 %v1916, %v1916
          %v1928 = vrot.slane %v1927, 4
          %v1929 = vadd.f32 %v1927, %v1928
          %v1930 = vrot.slane %v1929, 2
          %v1931 = vadd.f32 %v1929, %v1930
          %v1932 = vrot.slane %v1931, 1
          %v1933 = vadd.f32 %v1931, %v1932
          %v1934 = vadd.f32 %v1926, %v1933
          %1935 = vst [vmem:[#allocation7] sm:$0x1] %v1934
        $region100: #{tpu_custom_call.1} parent=71 // pred_fallthru
          _
        %p1936 = scmp.eq.s32.totalorder %s35, 3
        // Predicated region
        $region101: #{tpu_custom_call.1} parent=71 // pred_check
          %p1937 = pneg %p1936
        $region102: #{tpu_custom_call.1} parent=71 // pred_check_branch
          %1939 = sbr.rel (%p1937) target = $region104
        $region103: #{tpu_custom_call.1} parent=71 // pred_region
          %v1940 = vld [vmem:[#allocation6] sm:$0x1]
          %v1941 = vmul.f32 %v1940, 0.05
          %v1942 = vld [vmem:[#allocation7] sm:$0x1]
          %v1943 = vmul.f32 %v1942, 0.05
          %v1944 = vmul.f32 %v1941, %v1941
          %v1945 = vsub.f32 %v1943, %v1944
          %v1946 = vmax.f32 %v1945, 0.0
          %v1947 = vadd.f32 %v1946, 1e-05
          %v1948 = vrsqrt.pop %v1947
          %s1949 = scalar_lea.vmem [#allocation3], %s595
          %v1950 = vld [vmem:[%s1949] sm:$0xff]
          %v1952 = vlaneseq
          %v1953 = vshrl.u32 %v1952, 7
          %v1954 = vsub.s32 0, %v1953
          %v1955 = vrot.slane %v1941, %v1954
          %v1957 = vsub.f32 %v1950, %v1955
          %v1959 = vlaneseq
          %v1960 = vshrl.u32 %v1959, 7
          %v1961 = vsub.s32 0, %v1960
          %v1962 = vrot.slane %v1948, %v1961
          %v1964 = vmul.f32 %v1957, %v1962
          %v1965 = vld [vmem:[%s11] sm:$0x1]
          %v1967 = vlaneseq
          %v1968 = vshrl.u32 %v1967, 7
          %v1969 = vsub.s32 0, %v1968
          %v1970 = vrot.slane %v1965, %v1969
          %v1972 = vmul.f32 %v1964, %v1970
          %v1973 = vld [vmem:[%s12] sm:$0x1]
          %v1975 = vlaneseq
          %v1976 = vshrl.u32 %v1975, 7
          %v1977 = vsub.s32 0, %v1976
          %v1978 = vrot.slane %v1973, %v1977
          %v1980 = vadd.f32 %v1972, %v1978
          %v1981 = vld [vmem:[%s574] sm:$0xff]
          %v1982 = vadd.f32 %v1981, %v1980
          %vm1983 = vcmp.gt.f32.partialorder %v1982, 20.0
          %v1984 = vmin.f32 %v1982, 20.0
          %v1985 = vmul.f32 %v1984, 1.442695
          %v1986 = vpow.pop %v1985
          %v1987 = vadd.f32 %v1986, 1.0
          %v1988 = vlog2.pop %v1987
          %v1989 = vmul.f32 %v1988, 0.6931472
          %v1990 = vmul.f32 -0.5, %v1986
          %v1991 = vadd.f32 %v1990, 1.0
          %v1992 = vmul.f32 %v1991, %v1986
          %v1993 = vand.u32 2147483647, %v1986
          %vm1994 = vcmp.lt.f32.partialorder %v1993, 0.0004427343
          %v1995 = vsel %vm1994, %v1992, %v1989
          %v1996 = vsel %vm1983, %v1982, %v1995
          %1997 = vst [vmem:[%s566] sm:$0xff] %v1996
        $region104: #{tpu_custom_call.1} parent=71 // pred_fallthru
          _
        %s1998 = sand.u32 %s359, 1
        %s1999 = scalar_lea.sflag [#allocation10], %s1998
        %s2000 = sand.u32 %s359, 1
        %s2001 = smul.addr %s2000, 8
        %s2002 = scalar_lea.vmem [#allocation14], %s2001
        // Predicated region
        $region105: #{tpu_custom_call.1} parent=71 // pred_check
          %p2003 = pneg %p369
        $region106: #{tpu_custom_call.1} parent=71 // pred_check_branch
          %2005 = sbr.rel (%p2003) target = $region108
        $region107: #{tpu_custom_call.1} parent=71 // pred_region
          %p2006 = scmp.eq.s32.totalorder %s35, 3
          %s2007 = scalar_select %p2006, %s36, 0
          %s2009 = ssub.s32 128, 128
          %2010 = vsyncadd %s1999, %s2009
          %s2011 = smul.addr %s2007, 128
          %s2012 = scalar_lea.hbm %s13, %s2011
          %s2014 = sshll.u32 %s2002, 4
          %s2015 = int_to_ptr.vmem [resolvable:$true] %s2014
          %2017 = dma.vmem_to_hbm [thread:$0]  %s2015, 128, %s2012, %s1999
        $region108: #{tpu_custom_call.1} parent=71 // pred_fallthru
          _
      $region72: #{tpu_custom_call.1} parent=5 // pred_fallthru
        _
      %p2018 = scmp.le.s32.totalorder 2, %s26
      // Predicated region
      $region109: #{tpu_custom_call.1} parent=5 // pred_check
        %p2019 = pneg %p2018
      $region110: #{tpu_custom_call.1} parent=5 // pred_check_branch
        %2021 = sbr.rel (%p2019) target = $region112
      $region111: #{tpu_custom_call.1} parent=5 // pred_region
        %s2022 = ssub.s32 %s26, 2
        // Predicated region
        $region113: #{tpu_custom_call.1} parent=111 // pred_check
          %p2023 = pneg %p375
        $region114: #{tpu_custom_call.1} parent=111 // pred_check_branch
          %2025 = sbr.rel (%p2023) target = $region116
        $region115: #{tpu_custom_call.1} parent=111 // pred_region
          %s2026 = sand.u32 %s360, 1
          %s2027 = scalar_lea.sflag [#allocation10], %s2026
          %s2028 = sand.u32 %s360, 1
          %s2029 = smul.addr %s2028, 8
          %s2030 = scalar_lea.vmem [#allocation14], %s2029
          %2031 = dma.done %s2027, 128
        $region116: #{tpu_custom_call.1} parent=111 // pred_fallthru
          _
      $region112: #{tpu_custom_call.1} parent=5 // pred_fallthru
        _
    $region6: #{tpu_custom_call.1} parent=1 // loop_footer
      %s30 = sadd.s32 1, %s26
    $region7: #{tpu_custom_call.1} parent=1 // loop_footer_branch
      %25 = sbr.rel target = $region3
    $region8: #{tpu_custom_call.1} parent=1 // loop_exit
      _
    %2032 = vsyncpa [#allocation9], 1
    %s2033 = scalar_lea.sflag [#allocation9], 1
    %2034 = vsyncpa %s2033, 1
    %2035 = vsyncpa [#allocation12], 1
    %2036 = vsyncpa [#allocation10], 1
    %s2037 = scalar_lea.sflag [#allocation10], 1
    %2038 = vsyncpa %s2037, 1

</llo_original>
